<compile_context>
chip_gen: v5e
topology: v5e:2x2
jax: 0.10.0
libtpu: 0.0.40
codegen_flags: <defaults>
</compile_context>

<pallas_src>
import math

import jax
import jax.numpy as jnp
import numpy as np
from jax import lax
from jax.experimental import pallas as pl
from jax.experimental.pallas import tpu as pltpu


# ----------------------------------------------------------------------------
# q_shift (zero-padded 4-way spatial shift) — used only by the pure-JAX reference.
# ----------------------------------------------------------------------------
def q_shift(x, shift_pixel, gamma, patch_resolution):
    B, N, C = x.shape
    H, W = patch_resolution
    xi = jnp.transpose(x, (0, 2, 1)).reshape(B, C, H, W)   # NCHW view
    g = int(C * gamma)
    out = jnp.zeros_like(xi)
    out = out.at[:, 0 * g:1 * g, :, shift_pixel:].set(xi[:, 0 * g:1 * g, :, :W - shift_pixel])
    out = out.at[:, 1 * g:2 * g, :, :W - shift_pixel].set(xi[:, 1 * g:2 * g, :, shift_pixel:])
    out = out.at[:, 2 * g:3 * g, shift_pixel:, :].set(xi[:, 2 * g:3 * g, :H - shift_pixel, :])
    out = out.at[:, 3 * g:4 * g, :H - shift_pixel, :].set(xi[:, 3 * g:4 * g, shift_pixel:, :])
    out = out.at[:, 4 * g:, :, :].set(xi[:, 4 * g:, :, :])
    return jnp.transpose(out.reshape(B, C, N), (0, 2, 1))


# ----------------------------------------------------------------------------
# Pallas wrapper + kernel (kernel closes over static shape parameters).
# ----------------------------------------------------------------------------
def vrwkv_spatial_mix(x, params, patch_resolution, shift_pixel=1, channel_gamma=1 / 4):
    B, T, C = x.shape
    H, W = patch_resolution
    assert H * W == T
    assert shift_pixel > 0
    sp = shift_pixel
    g = int(C * channel_gamma)

    BT = 8                               # batch elements folded into the sublane axis
    Bp = ((B + BT - 1) // BT) * BT       # pad batch to a multiple of BT
    G = Bp // BT                         # grid size (batch tiles)
    R = T * BT                           # rows per grid step, token-major / batch-minor

    # --- batch-interleaved token layout: row index = t*BT + b (layout plumbing) ---
    xp = jnp.pad(x.astype(jnp.float32), ((0, Bp - B), (0, 0), (0, 0)))
    xi = xp.reshape(G, BT, T, C).transpose(0, 2, 1, 3).reshape(G, R, C)

    # --- small per-channel parameter pack: (10, C) f32 ---
    c_idx = np.arange(C)
    grp = [
        (c_idx < g).astype(np.float32),                       # shift right along W
        ((c_idx >= g) & (c_idx < 2 * g)).astype(np.float32),  # shift left  along W
        ((c_idx >= 2 * g) & (c_idx < 3 * g)).astype(np.float32),  # shift down along H
        ((c_idx >= 3 * g) & (c_idx < 4 * g)).astype(np.float32),  # shift up   along H
        (c_idx >= 4 * g).astype(np.float32),                  # identity group
    ]
    pvec = jnp.stack(
        [params["spatial_mix_k"].astype(jnp.float32),
         params["spatial_mix_v"].astype(jnp.float32),
         params["spatial_mix_r"].astype(jnp.float32),
         (params["spatial_decay"] / T).astype(jnp.float32),
         (params["spatial_first"] / T).astype(jnp.float32)]
        + [jnp.asarray(m) for m in grp],
        axis=0)                                                # (10, C)

    # nn.Linear stores (out, in); pre-transpose to (in, out); bf16 MXU operands.
    wk_t = params["key_w"].T.astype(jnp.bfloat16)
    wv_t = params["value_w"].T.astype(jnp.bfloat16)
    wr_t = params["receptance_w"].T.astype(jnp.bfloat16)
    wo_t = params["output_w"].T.astype(jnp.bfloat16)

    def kernel(x_ref, pv_ref, wk_ref, wv_ref, wr_ref, wo_ref, out_ref,
               k_s, v_s, wkv_s):
        xb = x_ref[0]                                # (R, C) f32, rows = t*BT + b
        pv = pv_ref[...]                             # (10, C) f32
        mix_k, mix_v, mix_r = pv[0:1], pv[1:2], pv[2:3]
        w_dec, u_fst = pv[3:4], pv[4:5]
        m0, m1, m2, m3, m4 = pv[5:6], pv[6:7], pv[7:8], pv[8:9], pv[9:10]

        # -- in-kernel q_shift: zero-padded 4-direction shift on the HxW grid --
        # Shifts are multiples of BT rows so batches never mix; W-direction
        # boundaries are zero-filled per image row by construction (no masks).
        zw = jnp.zeros((sp * BT, C), jnp.float32)
        zh = jnp.zeros((sp * W * BT, C), jnp.float32)
        prev_rows, next_rows = [], []
        for h in range(H):
            row = xb[h * W * BT:(h + 1) * W * BT]
            prev_rows.append(jnp.concatenate([zw, row[:(W - sp) * BT]], axis=0))
            next_rows.append(jnp.concatenate([row[sp * BT:], zw], axis=0))
        x_prev = jnp.concatenate(prev_rows, axis=0)                 # src (h, w-sp)
        x_next = jnp.concatenate(next_rows, axis=0)                 # src (h, w+sp)
        x_up = jnp.concatenate([zh, xb[:R - sp * W * BT]], axis=0)  # src (h-sp, w)
        x_down = jnp.concatenate([xb[sp * W * BT:], zh], axis=0)    # src (h+sp, w)
        xx = m0 * x_prev + m1 * x_next + m2 * x_up + m3 * x_down + m4 * xb

        # -- token mixing + bias-free projections (bf16 MXU, f32 accumulate) --
        xk = (xb * mix_k + xx * (1.0 - mix_k)).astype(jnp.bfloat16)
        xv = (xb * mix_v + xx * (1.0 - mix_v)).astype(jnp.bfloat16)
        xr = (xb * mix_r + xx * (1.0 - mix_r)).astype(jnp.bfloat16)
        k_s[...] = jnp.dot(xk, wk_ref[...], preferred_element_type=jnp.float32)
        v_s[...] = jnp.dot(xv, wv_ref[...], preferred_element_type=jnp.float32)
        r = jnp.dot(xr, wr_ref[...], preferred_element_type=jnp.float32)
        sr = pl.reciprocal(1.0 + jnp.exp(-r), approx=True)          # sigmoid gate

        # -- WKV recurrence over T: BT independent chains per step, state in vregs --
        def step(t, carry):
            aa, bb, pp = carry                       # (BT, C) f32 each, loop-carried
            row = pl.multiple_of(t * BT, BT)
            kk = k_s[pl.ds(row, BT), :]
            vv = v_s[pl.ds(row, BT), :]
            ww = u_fst + kk
            p = jnp.maximum(pp, ww)
            e1 = jnp.exp(pp - p)
            e2 = jnp.exp(ww - p)
            wkv_s[pl.ds(row, BT), :] = (e1 * aa + e2 * vv) * pl.reciprocal(
                e1 * bb + e2, approx=True)
            ww2 = w_dec + pp
            p2 = jnp.maximum(ww2, kk)
            e1b = jnp.exp(ww2 - p2)
            e2b = jnp.exp(kk - p2)
            return (e1b * aa + e2b * vv, e1b * bb + e2b, p2)

        init = (jnp.zeros((BT, C), jnp.float32),
                jnp.zeros((BT, C), jnp.float32),
                jnp.full((BT, C), -1e38, jnp.float32))
        lax.fori_loop(0, T, step, init)

        # TODO(synk): key_norm (LayerNorm) path not implemented (module default key_norm=False).
        y = (sr * wkv_s[...]).astype(jnp.bfloat16)
        out_ref[0] = jnp.dot(y, wo_ref[...],
                             preferred_element_type=jnp.float32).astype(out_ref.dtype)

    tok_spec = pl.BlockSpec((1, R, C), lambda b: (b, 0, 0))
    # NOTE: for very large T (e.g. dense prediction, T*C f32 buffers > VMEM) this
    # kernel should additionally be chunked over T with aa/bb/pp kept in scratch
    # across chunks; not needed at these shapes.
    out = pl.pallas_call(
        kernel,
        out_shape=jax.ShapeDtypeStruct((G, R, C), jnp.float32),
        grid_spec=pltpu.PrefetchScalarGridSpec(
            num_scalar_prefetch=0,
            grid=(G,),
            in_specs=[tok_spec,
                      pl.BlockSpec((10, C), lambda b: (0, 0)),
                      pl.BlockSpec((C, C), lambda b: (0, 0)),
                      pl.BlockSpec((C, C), lambda b: (0, 0)),
                      pl.BlockSpec((C, C), lambda b: (0, 0)),
                      pl.BlockSpec((C, C), lambda b: (0, 0))],
            out_specs=tok_spec,
            scratch_shapes=[pltpu.VMEM((R, C), jnp.float32),   # k
                            pltpu.VMEM((R, C), jnp.float32),   # v
                            pltpu.VMEM((R, C), jnp.float32)],  # wkv
        ),
        compiler_params=pltpu.CompilerParams(
            dimension_semantics=("parallel",),          # batch tiles are independent
            vmem_limit_bytes=48 * 1024 * 1024,
        ),
    )(xi, pvec, wk_t, wv_t, wr_t, wo_t)

    out = out.reshape(G, T, BT, C).transpose(0, 2, 1, 3).reshape(Bp, T, C)[:B]
    return out.astype(x.dtype)


# ----------------------------------------------------------------------------
# Deterministic parameter init (mirrors VRWKV_SpatialMix.__init__, init_mode='fancy')
# ----------------------------------------------------------------------------
def init_params(n_embd, n_layer, layer_id, key):
    ratio_0_to_1 = layer_id / (n_layer - 1)
    ratio_1_to_almost0 = 1.0 - layer_id / n_layer

    h = np.arange(n_embd, dtype=np.float64)
    decay_speed = -5.0 + 8.0 * (h / (n_embd - 1)) ** (0.7 + 1.3 * ratio_0_to_1)
    zigzag = np.array([(i + 1) % 3 - 1 for i in range(n_embd)], dtype=np.float64) * 0.5
    spatial_first = np.ones(n_embd) * math.log(0.3) + zigzag
    xarr = np.arange(n_embd, dtype=np.float64) / n_embd
    spatial_mix_k = xarr ** ratio_1_to_almost0
    spatial_mix_v = xarr ** ratio_1_to_almost0 + 0.3 * ratio_0_to_1
    spatial_mix_r = xarr ** (0.5 * ratio_1_to_almost0)

    k1, k2, k3, k4 = jax.random.split(key, 4)
    scale = 1.0 / math.sqrt(n_embd)
    lin = lambda k: jax.random.uniform(k, (n_embd, n_embd), jnp.float32, -scale, scale)

    return {
        "spatial_decay": jnp.asarray(decay_speed, jnp.float32),
        "spatial_first": jnp.asarray(spatial_first, jnp.float32),
        "spatial_mix_k": jnp.asarray(spatial_mix_k, jnp.float32),
        "spatial_mix_v": jnp.asarray(spatial_mix_v, jnp.float32),
        "spatial_mix_r": jnp.asarray(spatial_mix_r, jnp.float32),
        "key_w": lin(k1),         # (out, in)
        "value_w": lin(k2),
        "receptance_w": lin(k3),
        "output_w": lin(k4),
    }


# ----------------------------------------------------------------------------
# Pure-JAX reference (module semantics); matmul_dtype lets it mirror the
# kernel's bf16 MXU operands while keeping the recurrence in f32.
# ----------------------------------------------------------------------------
def reference(x, params, patch_resolution, shift_pixel=1, channel_gamma=1 / 4,
              matmul_dtype=jnp.float32):
    B, T, C = x.shape
    xx = q_shift(x, shift_pixel, channel_gamma, patch_resolution)
    mix_k = params["spatial_mix_k"].reshape(1, 1, C)
    mix_v = params["spatial_mix_v"].reshape(1, 1, C)
    mix_r = params["spatial_mix_r"].reshape(1, 1, C)
    xk = x * mix_k + xx * (1 - mix_k)
    xv = x * mix_v + xx * (1 - mix_v)
    xr = x * mix_r + xx * (1 - mix_r)

    def mm(a, w):   # a @ w.T with operands in matmul_dtype, f32 accumulation
        return jnp.dot(a.astype(matmul_dtype), w.T.astype(matmul_dtype),
                       preferred_element_type=jnp.float32)

    k = mm(xk, params["key_w"])
    v = mm(xv, params["value_w"])
    r = mm(xr, params["receptance_w"])
    sr = jax.nn.sigmoid(r)

    w = (params["spatial_decay"] / T)[None, :]
    u = (params["spatial_first"] / T)[None, :]
    aa = jnp.zeros((B, C), jnp.float32)
    bb = jnp.zeros((B, C), jnp.float32)
    pp = jnp.full((B, C), -1e38, jnp.float32)
    ys = []
    for t in range(T):
        kk = k[:, t]
        vv = v[:, t]
        ww = u + kk
        p = jnp.maximum(pp, ww)
        e1 = jnp.exp(pp - p)
        e2 = jnp.exp(ww - p)
        ys.append((e1 * aa + e2 * vv) / (e1 * bb + e2))
        ww2 = w + pp
        p2 = jnp.maximum(ww2, kk)
        e1 = jnp.exp(ww2 - p2)
        e2 = jnp.exp(kk - p2)
        aa = e1 * aa + e2 * vv
        bb = e1 * bb + e2
        pp = p2
    wkv = jnp.stack(ys, axis=1)
    return mm(sr * wkv, params["output_w"])


if __name__ == "__main__":
    # Small, module-consistent shapes: n_embd=32, n_layer=4, layer_id=1, B=2, 8x8 patches.
    n_embd, n_layer, layer_id = 32, 4, 1
    B, H, W = 2, 8, 8
    T = H * W

    root = jax.random.PRNGKey(0)
    kx, kp = jax.random.split(root)
    x = jax.random.normal(kx, (B, T, n_embd), jnp.float32)
    params = init_params(n_embd, n_layer, layer_id, kp)

    out = jax.block_until_ready(vrwkv_spatial_mix(x, params, (H, W)))

    # Reference mirrors the kernel's bf16 matmul operands (f32 accumulate/recurrence).
    ref = jax.block_until_ready(reference(x, params, (H, W), matmul_dtype=jnp.bfloat16))
    err = float(jnp.max(jnp.abs(out - ref)))
    scale = float(jnp.max(jnp.abs(ref))) + 1.0
    assert out.shape == (B, T, n_embd)
    assert err < 1e-2 * scale, f"mismatch: max abs err {err}"

    print("KERNEL_OK")
</pallas_src>

<mosaic_0001>
module attributes {stable_mosaic.version = 11 : i64} {
  func.func @kernel(%arg0: i32, %arg1: memref<1x512x32xf32, #tpu.memory_space<vmem>>, %arg2: memref<10x32xf32, #tpu.memory_space<vmem>>, %arg3: memref<32x32xbf16, #tpu.memory_space<vmem>>, %arg4: memref<32x32xbf16, #tpu.memory_space<vmem>>, %arg5: memref<32x32xbf16, #tpu.memory_space<vmem>>, %arg6: memref<32x32xbf16, #tpu.memory_space<vmem>>, %arg7: memref<1x512x32xf32, #tpu.memory_space<vmem>>, %arg8: memref<512x32xf32, #tpu.memory_space<vmem>>, %arg9: memref<512x32xf32, #tpu.memory_space<vmem>>, %arg10: memref<512x32xf32, #tpu.memory_space<vmem>>) attributes {dimension_semantics = [#tpu.dimension_semantics<parallel>], iteration_bounds = array<i64: 1>, scalar_prefetch = 0 : i64, scratch_operands = 3 : i64, tpu.core_type = #tpu.core_type<tc>, window_params = [{transform_indices = @transform_0, window_bounds = array<i64: 1, 512, 32>}, {pipeline_mode = #tpu.pipeline_mode<synchronous>, transform_indices = @transform_1, window_bounds = array<i64: 10, 32>}, {pipeline_mode = #tpu.pipeline_mode<synchronous>, transform_indices = @transform_2, window_bounds = array<i64: 32, 32>}, {pipeline_mode = #tpu.pipeline_mode<synchronous>, transform_indices = @transform_3, window_bounds = array<i64: 32, 32>}, {pipeline_mode = #tpu.pipeline_mode<synchronous>, transform_indices = @transform_4, window_bounds = array<i64: 32, 32>}, {pipeline_mode = #tpu.pipeline_mode<synchronous>, transform_indices = @transform_5, window_bounds = array<i64: 32, 32>}, {transform_indices = @transform_6, window_bounds = array<i64: 1, 512, 32>}]} {
    %c0 = arith.constant 0 : index
    %c0_0 = arith.constant 0 : index
    %c0_1 = arith.constant 0 : index
    %0 = vector.load %arg1[%c0, %c0_0, %c0_1] : memref<1x512x32xf32, #tpu.memory_space<vmem>>, vector<1x512x32xf32>
    %1 = vector.shape_cast %0 : vector<1x512x32xf32> to vector<512x32xf32>
    %c0_2 = arith.constant 0 : index
    %c0_3 = arith.constant 0 : index
    %2 = vector.load %arg2[%c0_2, %c0_3] : memref<10x32xf32, #tpu.memory_space<vmem>>, vector<10x32xf32>
    %3 = vector.extract_strided_slice %2 {offsets = [0, 0], sizes = [1, 32], strides = [1, 1]} : vector<10x32xf32> to vector<1x32xf32>
    %4 = vector.extract_strided_slice %2 {offsets = [1, 0], sizes = [1, 32], strides = [1, 1]} : vector<10x32xf32> to vector<1x32xf32>
    %5 = vector.extract_strided_slice %2 {offsets = [2, 0], sizes = [1, 32], strides = [1, 1]} : vector<10x32xf32> to vector<1x32xf32>
    %6 = vector.extract_strided_slice %2 {offsets = [3, 0], sizes = [1, 32], strides = [1, 1]} : vector<10x32xf32> to vector<1x32xf32>
    %7 = vector.extract_strided_slice %2 {offsets = [4, 0], sizes = [1, 32], strides = [1, 1]} : vector<10x32xf32> to vector<1x32xf32>
    %8 = vector.extract_strided_slice %2 {offsets = [5, 0], sizes = [1, 32], strides = [1, 1]} : vector<10x32xf32> to vector<1x32xf32>
    %9 = vector.extract_strided_slice %2 {offsets = [6, 0], sizes = [1, 32], strides = [1, 1]} : vector<10x32xf32> to vector<1x32xf32>
    %10 = vector.extract_strided_slice %2 {offsets = [7, 0], sizes = [1, 32], strides = [1, 1]} : vector<10x32xf32> to vector<1x32xf32>
    %11 = vector.extract_strided_slice %2 {offsets = [8, 0], sizes = [1, 32], strides = [1, 1]} : vector<10x32xf32> to vector<1x32xf32>
    %12 = vector.extract_strided_slice %2 {offsets = [9, 0], sizes = [1, 32], strides = [1, 1]} : vector<10x32xf32> to vector<1x32xf32>
    %cst = arith.constant 0.000000e+00 : f32
    %13 = vector.broadcast %cst : f32 to vector<8x32xf32>
    %cst_4 = arith.constant 0.000000e+00 : f32
    %14 = vector.broadcast %cst_4 : f32 to vector<64x32xf32>
    %15 = vector.extract_strided_slice %1 {offsets = [0, 0], sizes = [64, 32], strides = [1, 1]} : vector<512x32xf32> to vector<64x32xf32>
    %16 = vector.extract_strided_slice %15 {offsets = [0, 0], sizes = [56, 32], strides = [1, 1]} : vector<64x32xf32> to vector<56x32xf32>
    %17 = tpu.concatenate %13, %16 in 0 : vector<8x32xf32>, vector<56x32xf32> -> vector<64x32xf32>
    %18 = vector.extract_strided_slice %15 {offsets = [8, 0], sizes = [56, 32], strides = [1, 1]} : vector<64x32xf32> to vector<56x32xf32>
    %19 = tpu.concatenate %18, %13 in 0 : vector<56x32xf32>, vector<8x32xf32> -> vector<64x32xf32>
    %20 = vector.extract_strided_slice %1 {offsets = [64, 0], sizes = [64, 32], strides = [1, 1]} : vector<512x32xf32> to vector<64x32xf32>
    %21 = vector.extract_strided_slice %20 {offsets = [0, 0], sizes = [56, 32], strides = [1, 1]} : vector<64x32xf32> to vector<56x32xf32>
    %22 = tpu.concatenate %13, %21 in 0 : vector<8x32xf32>, vector<56x32xf32> -> vector<64x32xf32>
    %23 = vector.extract_strided_slice %20 {offsets = [8, 0], sizes = [56, 32], strides = [1, 1]} : vector<64x32xf32> to vector<56x32xf32>
    %24 = tpu.concatenate %23, %13 in 0 : vector<56x32xf32>, vector<8x32xf32> -> vector<64x32xf32>
    %25 = vector.extract_strided_slice %1 {offsets = [128, 0], sizes = [64, 32], strides = [1, 1]} : vector<512x32xf32> to vector<64x32xf32>
    %26 = vector.extract_strided_slice %25 {offsets = [0, 0], sizes = [56, 32], strides = [1, 1]} : vector<64x32xf32> to vector<56x32xf32>
    %27 = tpu.concatenate %13, %26 in 0 : vector<8x32xf32>, vector<56x32xf32> -> vector<64x32xf32>
    %28 = vector.extract_strided_slice %25 {offsets = [8, 0], sizes = [56, 32], strides = [1, 1]} : vector<64x32xf32> to vector<56x32xf32>
    %29 = tpu.concatenate %28, %13 in 0 : vector<56x32xf32>, vector<8x32xf32> -> vector<64x32xf32>
    %30 = vector.extract_strided_slice %1 {offsets = [192, 0], sizes = [64, 32], strides = [1, 1]} : vector<512x32xf32> to vector<64x32xf32>
    %31 = vector.extract_strided_slice %30 {offsets = [0, 0], sizes = [56, 32], strides = [1, 1]} : vector<64x32xf32> to vector<56x32xf32>
    %32 = tpu.concatenate %13, %31 in 0 : vector<8x32xf32>, vector<56x32xf32> -> vector<64x32xf32>
    %33 = vector.extract_strided_slice %30 {offsets = [8, 0], sizes = [56, 32], strides = [1, 1]} : vector<64x32xf32> to vector<56x32xf32>
    %34 = tpu.concatenate %33, %13 in 0 : vector<56x32xf32>, vector<8x32xf32> -> vector<64x32xf32>
    %35 = vector.extract_strided_slice %1 {offsets = [256, 0], sizes = [64, 32], strides = [1, 1]} : vector<512x32xf32> to vector<64x32xf32>
    %36 = vector.extract_strided_slice %35 {offsets = [0, 0], sizes = [56, 32], strides = [1, 1]} : vector<64x32xf32> to vector<56x32xf32>
    %37 = tpu.concatenate %13, %36 in 0 : vector<8x32xf32>, vector<56x32xf32> -> vector<64x32xf32>
    %38 = vector.extract_strided_slice %35 {offsets = [8, 0], sizes = [56, 32], strides = [1, 1]} : vector<64x32xf32> to vector<56x32xf32>
    %39 = tpu.concatenate %38, %13 in 0 : vector<56x32xf32>, vector<8x32xf32> -> vector<64x32xf32>
    %40 = vector.extract_strided_slice %1 {offsets = [320, 0], sizes = [64, 32], strides = [1, 1]} : vector<512x32xf32> to vector<64x32xf32>
    %41 = vector.extract_strided_slice %40 {offsets = [0, 0], sizes = [56, 32], strides = [1, 1]} : vector<64x32xf32> to vector<56x32xf32>
    %42 = tpu.concatenate %13, %41 in 0 : vector<8x32xf32>, vector<56x32xf32> -> vector<64x32xf32>
    %43 = vector.extract_strided_slice %40 {offsets = [8, 0], sizes = [56, 32], strides = [1, 1]} : vector<64x32xf32> to vector<56x32xf32>
    %44 = tpu.concatenate %43, %13 in 0 : vector<56x32xf32>, vector<8x32xf32> -> vector<64x32xf32>
    %45 = vector.extract_strided_slice %1 {offsets = [384, 0], sizes = [64, 32], strides = [1, 1]} : vector<512x32xf32> to vector<64x32xf32>
    %46 = vector.extract_strided_slice %45 {offsets = [0, 0], sizes = [56, 32], strides = [1, 1]} : vector<64x32xf32> to vector<56x32xf32>
    %47 = tpu.concatenate %13, %46 in 0 : vector<8x32xf32>, vector<56x32xf32> -> vector<64x32xf32>
    %48 = vector.extract_strided_slice %45 {offsets = [8, 0], sizes = [56, 32], strides = [1, 1]} : vector<64x32xf32> to vector<56x32xf32>
    %49 = tpu.concatenate %48, %13 in 0 : vector<56x32xf32>, vector<8x32xf32> -> vector<64x32xf32>
    %50 = vector.extract_strided_slice %1 {offsets = [448, 0], sizes = [64, 32], strides = [1, 1]} : vector<512x32xf32> to vector<64x32xf32>
    %51 = vector.extract_strided_slice %50 {offsets = [0, 0], sizes = [56, 32], strides = [1, 1]} : vector<64x32xf32> to vector<56x32xf32>
    %52 = tpu.concatenate %13, %51 in 0 : vector<8x32xf32>, vector<56x32xf32> -> vector<64x32xf32>
    %53 = vector.extract_strided_slice %50 {offsets = [8, 0], sizes = [56, 32], strides = [1, 1]} : vector<64x32xf32> to vector<56x32xf32>
    %54 = tpu.concatenate %53, %13 in 0 : vector<56x32xf32>, vector<8x32xf32> -> vector<64x32xf32>
    %55 = tpu.concatenate %17, %22, %27, %32, %37, %42, %47, %52 in 0 : vector<64x32xf32>, vector<64x32xf32>, vector<64x32xf32>, vector<64x32xf32>, vector<64x32xf32>, vector<64x32xf32>, vector<64x32xf32>, vector<64x32xf32> -> vector<512x32xf32>
    %56 = tpu.concatenate %19, %24, %29, %34, %39, %44, %49, %54 in 0 : vector<64x32xf32>, vector<64x32xf32>, vector<64x32xf32>, vector<64x32xf32>, vector<64x32xf32>, vector<64x32xf32>, vector<64x32xf32>, vector<64x32xf32> -> vector<512x32xf32>
    %57 = vector.extract_strided_slice %1 {offsets = [0, 0], sizes = [448, 32], strides = [1, 1]} : vector<512x32xf32> to vector<448x32xf32>
    %58 = tpu.concatenate %14, %57 in 0 : vector<64x32xf32>, vector<448x32xf32> -> vector<512x32xf32>
    %59 = vector.extract_strided_slice %1 {offsets = [64, 0], sizes = [448, 32], strides = [1, 1]} : vector<512x32xf32> to vector<448x32xf32>
    %60 = tpu.concatenate %59, %14 in 0 : vector<448x32xf32>, vector<64x32xf32> -> vector<512x32xf32>
    %61 = vector.broadcast %8 : vector<1x32xf32> to vector<512x32xf32>
    %62 = arith.mulf %61, %55 : vector<512x32xf32>
    %63 = vector.broadcast %9 : vector<1x32xf32> to vector<512x32xf32>
    %64 = arith.mulf %63, %56 : vector<512x32xf32>
    %65 = arith.addf %62, %64 : vector<512x32xf32>
    %66 = vector.broadcast %10 : vector<1x32xf32> to vector<512x32xf32>
    %67 = arith.mulf %66, %58 : vector<512x32xf32>
    %68 = arith.addf %65, %67 : vector<512x32xf32>
    %69 = vector.broadcast %11 : vector<1x32xf32> to vector<512x32xf32>
    %70 = arith.mulf %69, %60 : vector<512x32xf32>
    %71 = arith.addf %68, %70 : vector<512x32xf32>
    %72 = vector.broadcast %12 : vector<1x32xf32> to vector<512x32xf32>
    %73 = arith.mulf %72, %1 : vector<512x32xf32>
    %74 = arith.addf %71, %73 : vector<512x32xf32>
    %75 = vector.broadcast %3 : vector<1x32xf32> to vector<512x32xf32>
    %76 = arith.mulf %1, %75 : vector<512x32xf32>
    %cst_5 = arith.constant 1.000000e+00 : f32
    %77 = vector.broadcast %cst_5 : f32 to vector<1x32xf32>
    %78 = arith.subf %77, %3 : vector<1x32xf32>
    %79 = vector.broadcast %78 : vector<1x32xf32> to vector<512x32xf32>
    %80 = arith.mulf %74, %79 : vector<512x32xf32>
    %81 = arith.addf %76, %80 : vector<512x32xf32>
    %82 = arith.truncf %81 : vector<512x32xf32> to vector<512x32xbf16>
    %83 = vector.broadcast %4 : vector<1x32xf32> to vector<512x32xf32>
    %84 = arith.mulf %1, %83 : vector<512x32xf32>
    %cst_6 = arith.constant 1.000000e+00 : f32
    %85 = vector.broadcast %cst_6 : f32 to vector<1x32xf32>
    %86 = arith.subf %85, %4 : vector<1x32xf32>
    %87 = vector.broadcast %86 : vector<1x32xf32> to vector<512x32xf32>
    %88 = arith.mulf %74, %87 : vector<512x32xf32>
    %89 = arith.addf %84, %88 : vector<512x32xf32>
    %90 = arith.truncf %89 : vector<512x32xf32> to vector<512x32xbf16>
    %91 = vector.broadcast %5 : vector<1x32xf32> to vector<512x32xf32>
    %92 = arith.mulf %1, %91 : vector<512x32xf32>
    %cst_7 = arith.constant 1.000000e+00 : f32
    %93 = vector.broadcast %cst_7 : f32 to vector<1x32xf32>
    %94 = arith.subf %93, %5 : vector<1x32xf32>
    %95 = vector.broadcast %94 : vector<1x32xf32> to vector<512x32xf32>
    %96 = arith.mulf %74, %95 : vector<512x32xf32>
    %97 = arith.addf %92, %96 : vector<512x32xf32>
    %98 = arith.truncf %97 : vector<512x32xf32> to vector<512x32xbf16>
    %c0_8 = arith.constant 0 : index
    %c0_9 = arith.constant 0 : index
    %99 = vector.load %arg3[%c0_8, %c0_9] : memref<32x32xbf16, #tpu.memory_space<vmem>>, vector<32x32xbf16>
    %cst_10 = arith.constant dense<0.000000e+00> : vector<512x32xf32>
    %100 = tpu.matmul %82, %99, %cst_10 {dimension_numbers = #tpu.dot_dimension_numbers<[1], [0], [0], [1], [0, 0, 1, 1], [], []>} : vector<512x32xbf16>, vector<32x32xbf16>, vector<512x32xf32> -> vector<512x32xf32>
    %c0_11 = arith.constant 0 : index
    %c0_12 = arith.constant 0 : index
    %101 = vector.load %arg8[%c0_11, %c0_12] : memref<512x32xf32, #tpu.memory_space<vmem>>, vector<512x32xf32>
    tpu.vector_store %arg8[%c0_11, %c0_12], %100 {strides = array<i32>} : memref<512x32xf32, #tpu.memory_space<vmem>>, vector<512x32xf32>,
    %c0_13 = arith.constant 0 : index
    %c0_14 = arith.constant 0 : index
    %102 = vector.load %arg4[%c0_13, %c0_14] : memref<32x32xbf16, #tpu.memory_space<vmem>>, vector<32x32xbf16>
    %cst_15 = arith.constant dense<0.000000e+00> : vector<512x32xf32>
    %103 = tpu.matmul %90, %102, %cst_15 {dimension_numbers = #tpu.dot_dimension_numbers<[1], [0], [0], [1], [0, 0, 1, 1], [], []>} : vector<512x32xbf16>, vector<32x32xbf16>, vector<512x32xf32> -> vector<512x32xf32>
    %c0_16 = arith.constant 0 : index
    %c0_17 = arith.constant 0 : index
    %104 = vector.load %arg9[%c0_16, %c0_17] : memref<512x32xf32, #tpu.memory_space<vmem>>, vector<512x32xf32>
    tpu.vector_store %arg9[%c0_16, %c0_17], %103 {strides = array<i32>} : memref<512x32xf32, #tpu.memory_space<vmem>>, vector<512x32xf32>,
    %c0_18 = arith.constant 0 : index
    %c0_19 = arith.constant 0 : index
    %105 = vector.load %arg5[%c0_18, %c0_19] : memref<32x32xbf16, #tpu.memory_space<vmem>>, vector<32x32xbf16>
    %cst_20 = arith.constant dense<0.000000e+00> : vector<512x32xf32>
    %106 = tpu.matmul %98, %105, %cst_20 {dimension_numbers = #tpu.dot_dimension_numbers<[1], [0], [0], [1], [0, 0, 1, 1], [], []>} : vector<512x32xbf16>, vector<32x32xbf16>, vector<512x32xf32> -> vector<512x32xf32>
    %cst_21 = arith.constant 0.000000e+00 : f32
    %107 = vector.broadcast %cst_21 : f32 to vector<512x32xf32>
    %108 = arith.subf %107, %106 : vector<512x32xf32>
    %109 = math.exp %108 : vector<512x32xf32>
    %cst_22 = arith.constant 1.000000e+00 : f32
    %110 = vector.broadcast %cst_22 : f32 to vector<512x32xf32>
    %111 = arith.addf %110, %109 : vector<512x32xf32>
    %112 = tpu.reciprocal %111 {approx = true} : vector<512x32xf32> -> vector<512x32xf32>
    %cst_23 = arith.constant 0.000000e+00 : f32
    %113 = vector.broadcast %cst_23 : f32 to vector<8x32xf32>
    %cst_24 = arith.constant 0.000000e+00 : f32
    %114 = vector.broadcast %cst_24 : f32 to vector<8x32xf32>
    %cst_25 = arith.constant -9.99999968E+37 : f32
    %115 = vector.broadcast %cst_25 : f32 to vector<8x32xf32>
    %c0_i32 = arith.constant 0 : i32
    %c64_i32 = arith.constant 64 : i32
    %116 = arith.addi %c0_i32, %c64_i32 : i32
    %c1_i32 = arith.constant 1 : i32
    %117:3 = scf.for %arg11 = %c0_i32 to %116 step %c1_i32 iter_args(%arg12 = %113, %arg13 = %114, %arg14 = %115) -> (vector<8x32xf32>, vector<8x32xf32>, vector<8x32xf32>)  : i32 {
      %c8_i32 = arith.constant 8 : i32
      %126 = arith.muli %arg11, %c8_i32 : i32
      %127 = tpu.assume_multiple %126, 8 : i32
      %128 = arith.index_cast %127 : i32 to index
      %c0_35 = arith.constant 0 : index
      %129 = vector.load %arg8[%128, %c0_35] : memref<512x32xf32, #tpu.memory_space<vmem>>, vector<8x32xf32>
      %130 = arith.index_cast %127 : i32 to index
      %c0_36 = arith.constant 0 : index
      %131 = vector.load %arg9[%130, %c0_36] : memref<512x32xf32, #tpu.memory_space<vmem>>, vector<8x32xf32>
      %132 = vector.broadcast %7 : vector<1x32xf32> to vector<8x32xf32>
      %133 = arith.addf %132, %129 : vector<8x32xf32>
      %134 = arith.maximumf %arg14, %133 : vector<8x32xf32>
      %135 = arith.subf %arg14, %134 : vector<8x32xf32>
      %136 = math.exp %135 : vector<8x32xf32>
      %137 = arith.subf %133, %134 : vector<8x32xf32>
      %138 = math.exp %137 : vector<8x32xf32>
      %139 = arith.mulf %136, %arg12 : vector<8x32xf32>
      %140 = arith.mulf %138, %131 : vector<8x32xf32>
      %141 = arith.addf %139, %140 : vector<8x32xf32>
      %142 = arith.mulf %136, %arg13 : vector<8x32xf32>
      %143 = arith.addf %142, %138 : vector<8x32xf32>
      %144 = tpu.reciprocal %143 {approx = true} : vector<8x32xf32> -> vector<8x32xf32>
      %145 = arith.mulf %141, %144 : vector<8x32xf32>
      %146 = arith.index_cast %127 : i32 to index
      %c0_37 = arith.constant 0 : index
      %147 = vector.load %arg10[%146, %c0_37] : memref<512x32xf32, #tpu.memory_space<vmem>>, vector<8x32xf32>
      tpu.vector_store %arg10[%146, %c0_37], %145 {strides = array<i32>} : memref<512x32xf32, #tpu.memory_space<vmem>>, vector<8x32xf32>,
      %148 = vector.broadcast %6 : vector<1x32xf32> to vector<8x32xf32>
      %149 = arith.addf %148, %arg14 : vector<8x32xf32>
      %150 = arith.maximumf %149, %129 : vector<8x32xf32>
      %151 = arith.subf %149, %150 : vector<8x32xf32>
      %152 = math.exp %151 : vector<8x32xf32>
      %153 = arith.subf %129, %150 : vector<8x32xf32>
      %154 = math.exp %153 : vector<8x32xf32>
      %155 = arith.mulf %152, %arg12 : vector<8x32xf32>
      %156 = arith.mulf %154, %131 : vector<8x32xf32>
      %157 = arith.addf %155, %156 : vector<8x32xf32>
      %158 = arith.mulf %152, %arg13 : vector<8x32xf32>
      %159 = arith.addf %158, %154 : vector<8x32xf32>
      scf.yield %157, %159, %150 : vector<8x32xf32>, vector<8x32xf32>, vector<8x32xf32>
    }
    %c64_i32_26 = arith.constant 64 : i32
    %c0_27 = arith.constant 0 : index
    %c0_28 = arith.constant 0 : index
    %118 = vector.load %arg10[%c0_27, %c0_28] : memref<512x32xf32, #tpu.memory_space<vmem>>, vector<512x32xf32>
    %119 = arith.mulf %112, %118 : vector<512x32xf32>
    %120 = arith.truncf %119 : vector<512x32xf32> to vector<512x32xbf16>
    %c0_29 = arith.constant 0 : index
    %c0_30 = arith.constant 0 : index
    %121 = vector.load %arg6[%c0_29, %c0_30] : memref<32x32xbf16, #tpu.memory_space<vmem>>, vector<32x32xbf16>
    %cst_31 = arith.constant dense<0.000000e+00> : vector<512x32xf32>
    %122 = tpu.matmul %120, %121, %cst_31 {dimension_numbers = #tpu.dot_dimension_numbers<[1], [0], [0], [1], [0, 0, 1, 1], [], []>} : vector<512x32xbf16>, vector<32x32xbf16>, vector<512x32xf32> -> vector<512x32xf32>
    %c0_32 = arith.constant 0 : index
    %c0_33 = arith.constant 0 : index
    %c0_34 = arith.constant 0 : index
    %123 = vector.load %arg7[%c0_32, %c0_33, %c0_34] : memref<1x512x32xf32, #tpu.memory_space<vmem>>, vector<1x512x32xf32>
    %124 = vector.shape_cast %123 : vector<1x512x32xf32> to vector<512x32xf32>
    %125 = vector.shape_cast %122 : vector<512x32xf32> to vector<1x512x32xf32>
    tpu.vector_store %arg7[%c0_32, %c0_33, %c0_34], %125 {strides = array<i32>} : memref<1x512x32xf32, #tpu.memory_space<vmem>>, vector<1x512x32xf32>,
    return
  }
  func.func @transform_0(%arg0: i32) -> (i32, i32, i32) {
    %c0_i32 = arith.constant 0 : i32
    %c0_i32_0 = arith.constant 0 : i32
    %c0_i32_1 = arith.constant 0 : i32
    return %arg0, %c0_i32, %c0_i32_0 : i32, i32, i32
  }
  func.func @transform_1(%arg0: i32) -> (i32, i32) {
    %c0_i32 = arith.constant 0 : i32
    %c0_i32_0 = arith.constant 0 : i32
    %c0_i32_1 = arith.constant 0 : i32
    return %c0_i32, %c0_i32_0 : i32, i32
  }
  func.func @transform_2(%arg0: i32) -> (i32, i32) {
    %c0_i32 = arith.constant 0 : i32
    %c0_i32_0 = arith.constant 0 : i32
    %c0_i32_1 = arith.constant 0 : i32
    return %c0_i32, %c0_i32_0 : i32, i32
  }
  func.func @transform_3(%arg0: i32) -> (i32, i32) {
    %c0_i32 = arith.constant 0 : i32
    %c0_i32_0 = arith.constant 0 : i32
    %c0_i32_1 = arith.constant 0 : i32
    return %c0_i32, %c0_i32_0 : i32, i32
  }
  func.func @transform_4(%arg0: i32) -> (i32, i32) {
    %c0_i32 = arith.constant 0 : i32
    %c0_i32_0 = arith.constant 0 : i32
    %c0_i32_1 = arith.constant 0 : i32
    return %c0_i32, %c0_i32_0 : i32, i32
  }
  func.func @transform_5(%arg0: i32) -> (i32, i32) {
    %c0_i32 = arith.constant 0 : i32
    %c0_i32_0 = arith.constant 0 : i32
    %c0_i32_1 = arith.constant 0 : i32
    return %c0_i32, %c0_i32_0 : i32, i32
  }
  func.func @transform_6(%arg0: i32) -> (i32, i32, i32) {
    %c0_i32 = arith.constant 0 : i32
    %c0_i32_0 = arith.constant 0 : i32
    %c0_i32_1 = arith.constant 0 : i32
    return %arg0, %c0_i32, %c0_i32_0 : i32, i32, i32
  }
}

</mosaic_0001>

<llo_original>
// kernel: tpu_custom_call.1
$region0: #{tpu_custom_call.1}
  #allocation0 [shape = 'u32[]', space=smem, size = 0x4, offset = 0x4, fixed_abs, tag = 'smem constant byte address 0x4 - core index']
  #allocation1 [shape = 'u32[72,128]{1,0:T(1,128)}', space=vmem, size = 0x9000, scoped, tag = 'internal scratch']
  #allocation2 [shape = 'f32[512,32]{1,0:T(8,128)}', space=vmem, size = 0x40000, scoped, tag = 'scratch operand']
  #allocation3 [shape = 'f32[512,32]{1,0:T(8,128)}', space=vmem, size = 0x40000, scoped, tag = 'scratch operand']
  #allocation4 [shape = 'f32[512,32]{1,0:T(8,128)}', space=vmem, size = 0x40000, scoped, tag = 'scratch operand']
  %s0 = inlined_call_operand.vmem [shape: f32[1,512,32], index: 0, kind: input, shape index: {}]
  %s1 = inlined_call_operand.vmem [shape: f32[10,32], index: 1, kind: input, shape index: {}]
  %s2 = inlined_call_operand.vmem [shape: bf16[32,32], index: 2, kind: input, shape index: {}]
  %s3 = inlined_call_operand.vmem [shape: bf16[32,32], index: 3, kind: input, shape index: {}]
  %s4 = inlined_call_operand.vmem [shape: bf16[32,32], index: 4, kind: input, shape index: {}]
  %s5 = inlined_call_operand.vmem [shape: bf16[32,32], index: 5, kind: input, shape index: {}]
  %s6 = inlined_call_operand.vmem [shape: f32[1,512,32], index: 6, kind: output, shape index: {}]
  %s7 = sld [smem:[#allocation0]]
  $region41: #{tpu_custom_call.1} parent=0
    _
  %s9 = ssub.s32 1, %s7
  %s10 = scalar_select 0, %s9, %s7
  // Predicated region
  $region2: #{tpu_custom_call.1} parent=0 // pred_check
    _
  $region3: #{tpu_custom_call.1} parent=0 // pred_check_branch
    %12 = sbr.rel (0) target = $region5
  $region4: #{tpu_custom_call.1} parent=0 // pred_region
    _
  $region5: #{tpu_custom_call.1} parent=0 // pred_fallthru
    _
  // Predicated region
  $region6: #{tpu_custom_call.1} parent=0 // pred_check
    _
  $region7: #{tpu_custom_call.1} parent=0 // pred_check_branch
    %14 = sbr.rel (0) target = $region9
  $region8: #{tpu_custom_call.1} parent=0 // pred_region
    _
  $region9: #{tpu_custom_call.1} parent=0 // pred_fallthru
    _
  // Predicated region
  $region10: #{tpu_custom_call.1} parent=0 // pred_check
    _
  $region11: #{tpu_custom_call.1} parent=0 // pred_check_branch
    %16 = sbr.rel (0) target = $region13
  $region12: #{tpu_custom_call.1} parent=0 // pred_region
    _
  $region13: #{tpu_custom_call.1} parent=0 // pred_fallthru
    _
  // Predicated region
  $region14: #{tpu_custom_call.1} parent=0 // pred_check
    _
  $region15: #{tpu_custom_call.1} parent=0 // pred_check_branch
    %18 = sbr.rel (0) target = $region17
  $region16: #{tpu_custom_call.1} parent=0 // pred_region
    _
  $region17: #{tpu_custom_call.1} parent=0 // pred_fallthru
    _
  // Predicated region
  $region18: #{tpu_custom_call.1} parent=0 // pred_check
    _
  $region19: #{tpu_custom_call.1} parent=0 // pred_check_branch
    %20 = sbr.rel (0) target = $region21
  $region20: #{tpu_custom_call.1} parent=0 // pred_region
    _
  $region21: #{tpu_custom_call.1} parent=0 // pred_fallthru
    _
  // Predicated region
  $region22: #{tpu_custom_call.1} parent=0 // pred_check
    _
  $region23: #{tpu_custom_call.1} parent=0 // pred_check_branch
    %22 = sbr.rel (0) target = $region25
  $region24: #{tpu_custom_call.1} parent=0 // pred_region
    _
  $region25: #{tpu_custom_call.1} parent=0 // pred_fallthru
    _
  %v24 = vld [vmem:[%s0] sm:$0xff]
  %v25 = vld [vmem:[%s0 + $0x8] sm:$0xff]
  %v26 = vld [vmem:[%s0 + $0x10] sm:$0xff]
  %v27 = vld [vmem:[%s0 + $0x18] sm:$0xff]
  %v28 = vld [vmem:[%s0 + $0x20] sm:$0xff]
  %v29 = vld [vmem:[%s0 + $0x28] sm:$0xff]
  %v30 = vld [vmem:[%s0 + $0x30] sm:$0xff]
  %v31 = vld [vmem:[%s0 + $0x38] sm:$0xff]
  %v32 = vld [vmem:[%s0 + $0x40] sm:$0xff]
  %v33 = vld [vmem:[%s0 + $0x48] sm:$0xff]
  %v34 = vld [vmem:[%s0 + $0x50] sm:$0xff]
  %v35 = vld [vmem:[%s0 + $0x58] sm:$0xff]
  %v36 = vld [vmem:[%s0 + $0x60] sm:$0xff]
  %v37 = vld [vmem:[%s0 + $0x68] sm:$0xff]
  %v38 = vld [vmem:[%s0 + $0x70] sm:$0xff]
  %v39 = vld [vmem:[%s0 + $0x78] sm:$0xff]
  %v40 = vld [vmem:[%s0 + $0x80] sm:$0xff]
  %v41 = vld [vmem:[%s0 + $0x88] sm:$0xff]
  %v42 = vld [vmem:[%s0 + $0x90] sm:$0xff]
  %v43 = vld [vmem:[%s0 + $0x98] sm:$0xff]
  %v44 = vld [vmem:[%s0 + $0xa0] sm:$0xff]
  %v45 = vld [vmem:[%s0 + $0xa8] sm:$0xff]
  %v46 = vld [vmem:[%s0 + $0xb0] sm:$0xff]
  %v47 = vld [vmem:[%s0 + $0xb8] sm:$0xff]
  %v48 = vld [vmem:[%s0 + $0xc0] sm:$0xff]
  %v49 = vld [vmem:[%s0 + $0xc8] sm:$0xff]
  %v50 = vld [vmem:[%s0 + $0xd0] sm:$0xff]
  %v51 = vld [vmem:[%s0 + $0xd8] sm:$0xff]
  %v52 = vld [vmem:[%s0 + $0xe0] sm:$0xff]
  %v53 = vld [vmem:[%s0 + $0xe8] sm:$0xff]
  %v54 = vld [vmem:[%s0 + $0xf0] sm:$0xff]
  %v55 = vld [vmem:[%s0 + $0xf8] sm:$0xff]
  %v56 = vld [vmem:[%s0 + $0x100] sm:$0xff]
  %v57 = vld [vmem:[%s0 + $0x108] sm:$0xff]
  %v58 = vld [vmem:[%s0 + $0x110] sm:$0xff]
  %v59 = vld [vmem:[%s0 + $0x118] sm:$0xff]
  %v60 = vld [vmem:[%s0 + $0x120] sm:$0xff]
  %v61 = vld [vmem:[%s0 + $0x128] sm:$0xff]
  %v62 = vld [vmem:[%s0 + $0x130] sm:$0xff]
  %v63 = vld [vmem:[%s0 + $0x138] sm:$0xff]
  %v64 = vld [vmem:[%s0 + $0x140] sm:$0xff]
  %v65 = vld [vmem:[%s0 + $0x148] sm:$0xff]
  %v66 = vld [vmem:[%s0 + $0x150] sm:$0xff]
  %v67 = vld [vmem:[%s0 + $0x158] sm:$0xff]
  %v68 = vld [vmem:[%s0 + $0x160] sm:$0xff]
  %v69 = vld [vmem:[%s0 + $0x168] sm:$0xff]
  %v70 = vld [vmem:[%s0 + $0x170] sm:$0xff]
  %v71 = vld [vmem:[%s0 + $0x178] sm:$0xff]
  %v72 = vld [vmem:[%s0 + $0x180] sm:$0xff]
  %v73 = vld [vmem:[%s0 + $0x188] sm:$0xff]
  %v74 = vld [vmem:[%s0 + $0x190] sm:$0xff]
  %v75 = vld [vmem:[%s0 + $0x198] sm:$0xff]
  %v76 = vld [vmem:[%s0 + $0x1a0] sm:$0xff]
  %v77 = vld [vmem:[%s0 + $0x1a8] sm:$0xff]
  %v78 = vld [vmem:[%s0 + $0x1b0] sm:$0xff]
  %v79 = vld [vmem:[%s0 + $0x1b8] sm:$0xff]
  %v80 = vld [vmem:[%s0 + $0x1c0] sm:$0xff]
  %v81 = vld [vmem:[%s0 + $0x1c8] sm:$0xff]
  %v82 = vld [vmem:[%s0 + $0x1d0] sm:$0xff]
  %v83 = vld [vmem:[%s0 + $0x1d8] sm:$0xff]
  %v84 = vld [vmem:[%s0 + $0x1e0] sm:$0xff]
  %v85 = vld [vmem:[%s0 + $0x1e8] sm:$0xff]
  %v86 = vld [vmem:[%s0 + $0x1f0] sm:$0xff]
  %v87 = vld [vmem:[%s0 + $0x1f8] sm:$0xff]
  %v88 = vld [vmem:[%s1] sm:$0xff]
  %v89 = vld [vmem:[%s1 + $0x8] sm:$0x3]
  %v90 = vperm.slane %v88, 5
  %v91 = vmul.f32 %v90, 0.0
  %v92 = vmul.f32 %v90, %v24
  %v93 = vmul.f32 %v90, %v25
  %v94 = vmul.f32 %v90, %v26
  %v95 = vmul.f32 %v90, %v27
  %v96 = vmul.f32 %v90, %v28
  %v97 = vmul.f32 %v90, %v29
  %v98 = vmul.f32 %v90, %v30
  %v99 = vmul.f32 %v90, %v32
  %v100 = vmul.f32 %v90, %v33
  %v101 = vmul.f32 %v90, %v34
  %v102 = vmul.f32 %v90, %v35
  %v103 = vmul.f32 %v90, %v36
  %v104 = vmul.f32 %v90, %v37
  %v105 = vmul.f32 %v90, %v38
  %v106 = vmul.f32 %v90, %v40
  %v107 = vmul.f32 %v90, %v41
  %v108 = vmul.f32 %v90, %v42
  %v109 = vmul.f32 %v90, %v43
  %v110 = vmul.f32 %v90, %v44
  %v111 = vmul.f32 %v90, %v45
  %v112 = vmul.f32 %v90, %v46
  %v113 = vmul.f32 %v90, %v48
  %v114 = vmul.f32 %v90, %v49
  %v115 = vmul.f32 %v90, %v50
  %v116 = vmul.f32 %v90, %v51
  %v117 = vmul.f32 %v90, %v52
  %v118 = vmul.f32 %v90, %v53
  %v119 = vmul.f32 %v90, %v54
  %v120 = vmul.f32 %v90, %v56
  %v121 = vmul.f32 %v90, %v57
  %v122 = vmul.f32 %v90, %v58
  %v123 = vmul.f32 %v90, %v59
  %v124 = vmul.f32 %v90, %v60
  %v125 = vmul.f32 %v90, %v61
  %v126 = vmul.f32 %v90, %v62
  %v127 = vmul.f32 %v90, %v64
  %v128 = vmul.f32 %v90, %v65
  %v129 = vmul.f32 %v90, %v66
  %v130 = vmul.f32 %v90, %v67
  %v131 = vmul.f32 %v90, %v68
  %v132 = vmul.f32 %v90, %v69
  %v133 = vmul.f32 %v90, %v70
  %v134 = vmul.f32 %v90, %v72
  %v135 = vmul.f32 %v90, %v73
  %v136 = vmul.f32 %v90, %v74
  %v137 = vmul.f32 %v90, %v75
  %v138 = vmul.f32 %v90, %v76
  %v139 = vmul.f32 %v90, %v77
  %v140 = vmul.f32 %v90, %v78
  %v141 = vmul.f32 %v90, %v80
  %v142 = vmul.f32 %v90, %v81
  %v143 = vmul.f32 %v90, %v82
  %v144 = vmul.f32 %v90, %v83
  %v145 = vmul.f32 %v90, %v84
  %v146 = vmul.f32 %v90, %v85
  %v147 = vmul.f32 %v90, %v86
  %v148 = vperm.slane %v88, 6
  %v149 = vmul.f32 %v148, %v25
  %v150 = vmul.f32 %v148, %v26
  %v151 = vmul.f32 %v148, %v27
  %v152 = vmul.f32 %v148, %v28
  %v153 = vmul.f32 %v148, %v29
  %v154 = vmul.f32 %v148, %v30
  %v155 = vmul.f32 %v148, %v31
  %v156 = vmul.f32 %v148, 0.0
  %v157 = vmul.f32 %v148, %v33
  %v158 = vmul.f32 %v148, %v34
  %v159 = vmul.f32 %v148, %v35
  %v160 = vmul.f32 %v148, %v36
  %v161 = vmul.f32 %v148, %v37
  %v162 = vmul.f32 %v148, %v38
  %v163 = vmul.f32 %v148, %v39
  %v164 = vmul.f32 %v148, %v41
  %v165 = vmul.f32 %v148, %v42
  %v166 = vmul.f32 %v148, %v43
  %v167 = vmul.f32 %v148, %v44
  %v168 = vmul.f32 %v148, %v45
  %v169 = vmul.f32 %v148, %v46
  %v170 = vmul.f32 %v148, %v47
  %v171 = vmul.f32 %v148, %v49
  %v172 = vmul.f32 %v148, %v50
  %v173 = vmul.f32 %v148, %v51
  %v174 = vmul.f32 %v148, %v52
  %v175 = vmul.f32 %v148, %v53
  %v176 = vmul.f32 %v148, %v54
  %v177 = vmul.f32 %v148, %v55
  %v178 = vmul.f32 %v148, %v57
  %v179 = vmul.f32 %v148, %v58
  %v180 = vmul.f32 %v148, %v59
  %v181 = vmul.f32 %v148, %v60
  %v182 = vmul.f32 %v148, %v61
  %v183 = vmul.f32 %v148, %v62
  %v184 = vmul.f32 %v148, %v63
  %v185 = vmul.f32 %v148, %v65
  %v186 = vmul.f32 %v148, %v66
  %v187 = vmul.f32 %v148, %v67
  %v188 = vmul.f32 %v148, %v68
  %v189 = vmul.f32 %v148, %v69
  %v190 = vmul.f32 %v148, %v70
  %v191 = vmul.f32 %v148, %v71
  %v192 = vmul.f32 %v148, %v73
  %v193 = vmul.f32 %v148, %v74
  %v194 = vmul.f32 %v148, %v75
  %v195 = vmul.f32 %v148, %v76
  %v196 = vmul.f32 %v148, %v77
  %v197 = vmul.f32 %v148, %v78
  %v198 = vmul.f32 %v148, %v79
  %v199 = vmul.f32 %v148, %v81
  %v200 = vmul.f32 %v148, %v82
  %v201 = vmul.f32 %v148, %v83
  %v202 = vmul.f32 %v148, %v84
  %v203 = vmul.f32 %v148, %v85
  %v204 = vmul.f32 %v148, %v86
  %v205 = vmul.f32 %v148, %v87
  %v206 = vadd.f32 %v91, %v149
  %v207 = vadd.f32 %v92, %v150
  %v208 = vadd.f32 %v93, %v151
  %v209 = vadd.f32 %v94, %v152
  %v210 = vadd.f32 %v95, %v153
  %v211 = vadd.f32 %v96, %v154
  %v212 = vadd.f32 %v97, %v155
  %v213 = vadd.f32 %v98, %v156
  %v214 = vadd.f32 %v91, %v157
  %v215 = vadd.f32 %v99, %v158
  %v216 = vadd.f32 %v100, %v159
  %v217 = vadd.f32 %v101, %v160
  %v218 = vadd.f32 %v102, %v161
  %v219 = vadd.f32 %v103, %v162
  %v220 = vadd.f32 %v104, %v163
  %v221 = vadd.f32 %v105, %v156
  %v222 = vadd.f32 %v91, %v164
  %v223 = vadd.f32 %v106, %v165
  %v224 = vadd.f32 %v107, %v166
  %v225 = vadd.f32 %v108, %v167
  %v226 = vadd.f32 %v109, %v168
  %v227 = vadd.f32 %v110, %v169
  %v228 = vadd.f32 %v111, %v170
  %v229 = vadd.f32 %v112, %v156
  %v230 = vadd.f32 %v91, %v171
  %v231 = vadd.f32 %v113, %v172
  %v232 = vadd.f32 %v114, %v173
  %v233 = vadd.f32 %v115, %v174
  %v234 = vadd.f32 %v116, %v175
  %v235 = vadd.f32 %v117, %v176
  %v236 = vadd.f32 %v118, %v177
  %v237 = vadd.f32 %v119, %v156
  %v238 = vadd.f32 %v91, %v178
  %v239 = vadd.f32 %v120, %v179
  %v240 = vadd.f32 %v121, %v180
  %v241 = vadd.f32 %v122, %v181
  %v242 = vadd.f32 %v123, %v182
  %v243 = vadd.f32 %v124, %v183
  %v244 = vadd.f32 %v125, %v184
  %v245 = vadd.f32 %v126, %v156
  %v246 = vadd.f32 %v91, %v185
  %v247 = vadd.f32 %v127, %v186
  %v248 = vadd.f32 %v128, %v187
  %v249 = vadd.f32 %v129, %v188
  %v250 = vadd.f32 %v130, %v189
  %v251 = vadd.f32 %v131, %v190
  %v252 = vadd.f32 %v132, %v191
  %v253 = vadd.f32 %v133, %v156
  %v254 = vadd.f32 %v91, %v192
  %v255 = vadd.f32 %v134, %v193
  %v256 = vadd.f32 %v135, %v194
  %v257 = vadd.f32 %v136, %v195
  %v258 = vadd.f32 %v137, %v196
  %v259 = vadd.f32 %v138, %v197
  %v260 = vadd.f32 %v139, %v198
  %v261 = vadd.f32 %v140, %v156
  %v262 = vadd.f32 %v91, %v199
  %v263 = vadd.f32 %v141, %v200
  %v264 = vadd.f32 %v142, %v201
  %v265 = vadd.f32 %v143, %v202
  %v266 = vadd.f32 %v144, %v203
  %v267 = vadd.f32 %v145, %v204
  %v268 = vadd.f32 %v146, %v205
  %v269 = vadd.f32 %v147, %v156
  %v270 = vperm.slane %v88, 7
  %v271 = vmul.f32 %v270, 0.0
  %v272 = vmul.f32 %v270, %v24
  %v273 = vmul.f32 %v270, %v25
  %v274 = vmul.f32 %v270, %v26
  %v275 = vmul.f32 %v270, %v27
  %v276 = vmul.f32 %v270, %v28
  %v277 = vmul.f32 %v270, %v29
  %v278 = vmul.f32 %v270, %v30
  %v279 = vmul.f32 %v270, %v31
  %v280 = vmul.f32 %v270, %v32
  %v281 = vmul.f32 %v270, %v33
  %v282 = vmul.f32 %v270, %v34
  %v283 = vmul.f32 %v270, %v35
  %v284 = vmul.f32 %v270, %v36
  %v285 = vmul.f32 %v270, %v37
  %v286 = vmul.f32 %v270, %v38
  %v287 = vmul.f32 %v270, %v39
  %v288 = vmul.f32 %v270, %v40
  %v289 = vmul.f32 %v270, %v41
  %v290 = vmul.f32 %v270, %v42
  %v291 = vmul.f32 %v270, %v43
  %v292 = vmul.f32 %v270, %v44
  %v293 = vmul.f32 %v270, %v45
  %v294 = vmul.f32 %v270, %v46
  %v295 = vmul.f32 %v270, %v47
  %v296 = vmul.f32 %v270, %v48
  %v297 = vmul.f32 %v270, %v49
  %v298 = vmul.f32 %v270, %v50
  %v299 = vmul.f32 %v270, %v51
  %v300 = vmul.f32 %v270, %v52
  %v301 = vmul.f32 %v270, %v53
  %v302 = vmul.f32 %v270, %v54
  %v303 = vmul.f32 %v270, %v55
  %v304 = vmul.f32 %v270, %v56
  %v305 = vmul.f32 %v270, %v57
  %v306 = vmul.f32 %v270, %v58
  %v307 = vmul.f32 %v270, %v59
  %v308 = vmul.f32 %v270, %v60
  %v309 = vmul.f32 %v270, %v61
  %v310 = vmul.f32 %v270, %v62
  %v311 = vmul.f32 %v270, %v63
  %v312 = vmul.f32 %v270, %v64
  %v313 = vmul.f32 %v270, %v65
  %v314 = vmul.f32 %v270, %v66
  %v315 = vmul.f32 %v270, %v67
  %v316 = vmul.f32 %v270, %v68
  %v317 = vmul.f32 %v270, %v69
  %v318 = vmul.f32 %v270, %v70
  %v319 = vmul.f32 %v270, %v71
  %v320 = vmul.f32 %v270, %v72
  %v321 = vmul.f32 %v270, %v73
  %v322 = vmul.f32 %v270, %v74
  %v323 = vmul.f32 %v270, %v75
  %v324 = vmul.f32 %v270, %v76
  %v325 = vmul.f32 %v270, %v77
  %v326 = vmul.f32 %v270, %v78
  %v327 = vmul.f32 %v270, %v79
  %v328 = vadd.f32 %v206, %v271
  %v329 = vadd.f32 %v207, %v271
  %v330 = vadd.f32 %v208, %v271
  %v331 = vadd.f32 %v209, %v271
  %v332 = vadd.f32 %v210, %v271
  %v333 = vadd.f32 %v211, %v271
  %v334 = vadd.f32 %v212, %v271
  %v335 = vadd.f32 %v213, %v271
  %v336 = vadd.f32 %v214, %v272
  %v337 = vadd.f32 %v215, %v273
  %v338 = vadd.f32 %v216, %v274
  %v339 = vadd.f32 %v217, %v275
  %v340 = vadd.f32 %v218, %v276
  %v341 = vadd.f32 %v219, %v277
  %v342 = vadd.f32 %v220, %v278
  %v343 = vadd.f32 %v221, %v279
  %v344 = vadd.f32 %v222, %v280
  %v345 = vadd.f32 %v223, %v281
  %v346 = vadd.f32 %v224, %v282
  %v347 = vadd.f32 %v225, %v283
  %v348 = vadd.f32 %v226, %v284
  %v349 = vadd.f32 %v227, %v285
  %v350 = vadd.f32 %v228, %v286
  %v351 = vadd.f32 %v229, %v287
  %v352 = vadd.f32 %v230, %v288
  %v353 = vadd.f32 %v231, %v289
  %v354 = vadd.f32 %v232, %v290
  %v355 = vadd.f32 %v233, %v291
  %v356 = vadd.f32 %v234, %v292
  %v357 = vadd.f32 %v235, %v293
  %v358 = vadd.f32 %v236, %v294
  %v359 = vadd.f32 %v237, %v295
  %v360 = vadd.f32 %v238, %v296
  %v361 = vadd.f32 %v239, %v297
  %v362 = vadd.f32 %v240, %v298
  %v363 = vadd.f32 %v241, %v299
  %v364 = vadd.f32 %v242, %v300
  %v365 = vadd.f32 %v243, %v301
  %v366 = vadd.f32 %v244, %v302
  %v367 = vadd.f32 %v245, %v303
  %v368 = vadd.f32 %v246, %v304
  %v369 = vadd.f32 %v247, %v305
  %v370 = vadd.f32 %v248, %v306
  %v371 = vadd.f32 %v249, %v307
  %v372 = vadd.f32 %v250, %v308
  %v373 = vadd.f32 %v251, %v309
  %v374 = vadd.f32 %v252, %v310
  %v375 = vadd.f32 %v253, %v311
  %v376 = vadd.f32 %v254, %v312
  %v377 = vadd.f32 %v255, %v313
  %v378 = vadd.f32 %v256, %v314
  %v379 = vadd.f32 %v257, %v315
  %v380 = vadd.f32 %v258, %v316
  %v381 = vadd.f32 %v259, %v317
  %v382 = vadd.f32 %v260, %v318
  %v383 = vadd.f32 %v261, %v319
  %v384 = vadd.f32 %v262, %v320
  %v385 = vadd.f32 %v263, %v321
  %v386 = vadd.f32 %v264, %v322
  %v387 = vadd.f32 %v265, %v323
  %v388 = vadd.f32 %v266, %v324
  %v389 = vadd.f32 %v267, %v325
  %v390 = vadd.f32 %v268, %v326
  %v391 = vadd.f32 %v269, %v327
  %v392 = vperm.slane %v89, 0
  %v393 = vmul.f32 %v392, %v32
  %v394 = vmul.f32 %v392, %v33
  %v395 = vmul.f32 %v392, %v34
  %v396 = vmul.f32 %v392, %v35
  %v397 = vmul.f32 %v392, %v36
  %v398 = vmul.f32 %v392, %v37
  %v399 = vmul.f32 %v392, %v38
  %v400 = vmul.f32 %v392, %v39
  %v401 = vmul.f32 %v392, %v40
  %v402 = vmul.f32 %v392, %v41
  %v403 = vmul.f32 %v392, %v42
  %v404 = vmul.f32 %v392, %v43
  %v405 = vmul.f32 %v392, %v44
  %v406 = vmul.f32 %v392, %v45
  %v407 = vmul.f32 %v392, %v46
  %v408 = vmul.f32 %v392, %v47
  %v409 = vmul.f32 %v392, %v48
  %v410 = vmul.f32 %v392, %v49
  %v411 = vmul.f32 %v392, %v50
  %v412 = vmul.f32 %v392, %v51
  %v413 = vmul.f32 %v392, %v52
  %v414 = vmul.f32 %v392, %v53
  %v415 = vmul.f32 %v392, %v54
  %v416 = vmul.f32 %v392, %v55
  %v417 = vmul.f32 %v392, %v56
  %v418 = vmul.f32 %v392, %v57
  %v419 = vmul.f32 %v392, %v58
  %v420 = vmul.f32 %v392, %v59
  %v421 = vmul.f32 %v392, %v60
  %v422 = vmul.f32 %v392, %v61
  %v423 = vmul.f32 %v392, %v62
  %v424 = vmul.f32 %v392, %v63
  %v425 = vmul.f32 %v392, %v64
  %v426 = vmul.f32 %v392, %v65
  %v427 = vmul.f32 %v392, %v66
  %v428 = vmul.f32 %v392, %v67
  %v429 = vmul.f32 %v392, %v68
  %v430 = vmul.f32 %v392, %v69
  %v431 = vmul.f32 %v392, %v70
  %v432 = vmul.f32 %v392, %v71
  %v433 = vmul.f32 %v392, %v72
  %v434 = vmul.f32 %v392, %v73
  %v435 = vmul.f32 %v392, %v74
  %v436 = vmul.f32 %v392, %v75
  %v437 = vmul.f32 %v392, %v76
  %v438 = vmul.f32 %v392, %v77
  %v439 = vmul.f32 %v392, %v78
  %v440 = vmul.f32 %v392, %v79
  %v441 = vmul.f32 %v392, %v80
  %v442 = vmul.f32 %v392, %v81
  %v443 = vmul.f32 %v392, %v82
  %v444 = vmul.f32 %v392, %v83
  %v445 = vmul.f32 %v392, %v84
  %v446 = vmul.f32 %v392, %v85
  %v447 = vmul.f32 %v392, %v86
  %v448 = vmul.f32 %v392, %v87
  %v449 = vmul.f32 %v392, 0.0
  %v450 = vadd.f32 %v328, %v393
  %v451 = vadd.f32 %v329, %v394
  %v452 = vadd.f32 %v330, %v395
  %v453 = vadd.f32 %v331, %v396
  %v454 = vadd.f32 %v332, %v397
  %v455 = vadd.f32 %v333, %v398
  %v456 = vadd.f32 %v334, %v399
  %v457 = vadd.f32 %v335, %v400
  %v458 = vadd.f32 %v336, %v401
  %v459 = vadd.f32 %v337, %v402
  %v460 = vadd.f32 %v338, %v403
  %v461 = vadd.f32 %v339, %v404
  %v462 = vadd.f32 %v340, %v405
  %v463 = vadd.f32 %v341, %v406
  %v464 = vadd.f32 %v342, %v407
  %v465 = vadd.f32 %v343, %v408
  %v466 = vadd.f32 %v344, %v409
  %v467 = vadd.f32 %v345, %v410
  %v468 = vadd.f32 %v346, %v411
  %v469 = vadd.f32 %v347, %v412
  %v470 = vadd.f32 %v348, %v413
  %v471 = vadd.f32 %v349, %v414
  %v472 = vadd.f32 %v350, %v415
  %v473 = vadd.f32 %v351, %v416
  %v474 = vadd.f32 %v352, %v417
  %v475 = vadd.f32 %v353, %v418
  %v476 = vadd.f32 %v354, %v419
  %v477 = vadd.f32 %v355, %v420
  %v478 = vadd.f32 %v356, %v421
  %v479 = vadd.f32 %v357, %v422
  %v480 = vadd.f32 %v358, %v423
  %v481 = vadd.f32 %v359, %v424
  %v482 = vadd.f32 %v360, %v425
  %v483 = vadd.f32 %v361, %v426
  %v484 = vadd.f32 %v362, %v427
  %v485 = vadd.f32 %v363, %v428
  %v486 = vadd.f32 %v364, %v429
  %v487 = vadd.f32 %v365, %v430
  %v488 = vadd.f32 %v366, %v431
  %v489 = vadd.f32 %v367, %v432
  %v490 = vadd.f32 %v368, %v433
  %v491 = vadd.f32 %v369, %v434
  %v492 = vadd.f32 %v370, %v435
  %v493 = vadd.f32 %v371, %v436
  %v494 = vadd.f32 %v372, %v437
  %v495 = vadd.f32 %v373, %v438
  %v496 = vadd.f32 %v374, %v439
  %v497 = vadd.f32 %v375, %v440
  %v498 = vadd.f32 %v376, %v441
  %v499 = vadd.f32 %v377, %v442
  %v500 = vadd.f32 %v378, %v443
  %v501 = vadd.f32 %v379, %v444
  %v502 = vadd.f32 %v380, %v445
  %v503 = vadd.f32 %v381, %v446
  %v504 = vadd.f32 %v382, %v447
  %v505 = vadd.f32 %v383, %v448
  %v506 = vadd.f32 %v384, %v449
  %v507 = vadd.f32 %v385, %v449
  %v508 = vadd.f32 %v386, %v449
  %v509 = vadd.f32 %v387, %v449
  %v510 = vadd.f32 %v388, %v449
  %v511 = vadd.f32 %v389, %v449
  %v512 = vadd.f32 %v390, %v449
  %v513 = vadd.f32 %v391, %v449
  %v514 = vperm.slane %v89, 1
  %v515 = vmul.f32 %v514, %v24
  %v516 = vmul.f32 %v514, %v25
  %v517 = vmul.f32 %v514, %v26
  %v518 = vmul.f32 %v514, %v27
  %v519 = vmul.f32 %v514, %v28
  %v520 = vmul.f32 %v514, %v29
  %v521 = vmul.f32 %v514, %v30
  %v522 = vmul.f32 %v514, %v31
  %v523 = vmul.f32 %v514, %v32
  %v524 = vmul.f32 %v514, %v33
  %v525 = vmul.f32 %v514, %v34
  %v526 = vmul.f32 %v514, %v35
  %v527 = vmul.f32 %v514, %v36
  %v528 = vmul.f32 %v514, %v37
  %v529 = vmul.f32 %v514, %v38
  %v530 = vmul.f32 %v514, %v39
  %v531 = vmul.f32 %v514, %v40
  %v532 = vmul.f32 %v514, %v41
  %v533 = vmul.f32 %v514, %v42
  %v534 = vmul.f32 %v514, %v43
  %v535 = vmul.f32 %v514, %v44
  %v536 = vmul.f32 %v514, %v45
  %v537 = vmul.f32 %v514, %v46
  %v538 = vmul.f32 %v514, %v47
  %v539 = vmul.f32 %v514, %v48
  %v540 = vmul.f32 %v514, %v49
  %v541 = vmul.f32 %v514, %v50
  %v542 = vmul.f32 %v514, %v51
  %v543 = vmul.f32 %v514, %v52
  %v544 = vmul.f32 %v514, %v53
  %v545 = vmul.f32 %v514, %v54
  %v546 = vmul.f32 %v514, %v55
  %v547 = vmul.f32 %v514, %v56
  %v548 = vmul.f32 %v514, %v57
  %v549 = vmul.f32 %v514, %v58
  %v550 = vmul.f32 %v514, %v59
  %v551 = vmul.f32 %v514, %v60
  %v552 = vmul.f32 %v514, %v61
  %v553 = vmul.f32 %v514, %v62
  %v554 = vmul.f32 %v514, %v63
  %v555 = vmul.f32 %v514, %v64
  %v556 = vmul.f32 %v514, %v65
  %v557 = vmul.f32 %v514, %v66
  %v558 = vmul.f32 %v514, %v67
  %v559 = vmul.f32 %v514, %v68
  %v560 = vmul.f32 %v514, %v69
  %v561 = vmul.f32 %v514, %v70
  %v562 = vmul.f32 %v514, %v71
  %v563 = vmul.f32 %v514, %v72
  %v564 = vmul.f32 %v514, %v73
  %v565 = vmul.f32 %v514, %v74
  %v566 = vmul.f32 %v514, %v75
  %v567 = vmul.f32 %v514, %v76
  %v568 = vmul.f32 %v514, %v77
  %v569 = vmul.f32 %v514, %v78
  %v570 = vmul.f32 %v514, %v79
  %v571 = vmul.f32 %v514, %v80
  %v572 = vmul.f32 %v514, %v81
  %v573 = vmul.f32 %v514, %v82
  %v574 = vmul.f32 %v514, %v83
  %v575 = vmul.f32 %v514, %v84
  %v576 = vmul.f32 %v514, %v85
  %v577 = vmul.f32 %v514, %v86
  %v578 = vmul.f32 %v514, %v87
  %v579 = vadd.f32 %v450, %v515
  %v580 = vadd.f32 %v451, %v516
  %v581 = vadd.f32 %v452, %v517
  %v582 = vadd.f32 %v453, %v518
  %v583 = vadd.f32 %v454, %v519
  %v584 = vadd.f32 %v455, %v520
  %v585 = vadd.f32 %v456, %v521
  %v586 = vadd.f32 %v457, %v522
  %v587 = vadd.f32 %v458, %v523
  %v588 = vadd.f32 %v459, %v524
  %v589 = vadd.f32 %v460, %v525
  %v590 = vadd.f32 %v461, %v526
  %v591 = vadd.f32 %v462, %v527
  %v592 = vadd.f32 %v463, %v528
  %v593 = vadd.f32 %v464, %v529
  %v594 = vadd.f32 %v465, %v530
  %v595 = vadd.f32 %v466, %v531
  %v596 = vadd.f32 %v467, %v532
  %v597 = vadd.f32 %v468, %v533
  %v598 = vadd.f32 %v469, %v534
  %v599 = vadd.f32 %v470, %v535
  %v600 = vadd.f32 %v471, %v536
  %v601 = vadd.f32 %v472, %v537
  %v602 = vadd.f32 %v473, %v538
  %v603 = vadd.f32 %v474, %v539
  %v604 = vadd.f32 %v475, %v540
  %v605 = vadd.f32 %v476, %v541
  %v606 = vadd.f32 %v477, %v542
  %v607 = vadd.f32 %v478, %v543
  %v608 = vadd.f32 %v479, %v544
  %v609 = vadd.f32 %v480, %v545
  %v610 = vadd.f32 %v481, %v546
  %v611 = vadd.f32 %v482, %v547
  %v612 = vadd.f32 %v483, %v548
  %v613 = vadd.f32 %v484, %v549
  %v614 = vadd.f32 %v485, %v550
  %v615 = vadd.f32 %v486, %v551
  %v616 = vadd.f32 %v487, %v552
  %v617 = vadd.f32 %v488, %v553
  %v618 = vadd.f32 %v489, %v554
  %v619 = vadd.f32 %v490, %v555
  %v620 = vadd.f32 %v491, %v556
  %v621 = vadd.f32 %v492, %v557
  %v622 = vadd.f32 %v493, %v558
  %v623 = vadd.f32 %v494, %v559
  %v624 = vadd.f32 %v495, %v560
  %v625 = vadd.f32 %v496, %v561
  %v626 = vadd.f32 %v497, %v562
  %v627 = vadd.f32 %v498, %v563
  %v628 = vadd.f32 %v499, %v564
  %v629 = vadd.f32 %v500, %v565
  %v630 = vadd.f32 %v501, %v566
  %v631 = vadd.f32 %v502, %v567
  %v632 = vadd.f32 %v503, %v568
  %v633 = vadd.f32 %v504, %v569
  %v634 = vadd.f32 %v505, %v570
  %v635 = vadd.f32 %v506, %v571
  %v636 = vadd.f32 %v507, %v572
  %v637 = vadd.f32 %v508, %v573
  %v638 = vadd.f32 %v509, %v574
  %v639 = vadd.f32 %v510, %v575
  %v640 = vadd.f32 %v511, %v576
  %v641 = vadd.f32 %v512, %v577
  %v642 = vadd.f32 %v513, %v578
  %v643 = vperm.slane %v88, 0
  %v644 = vmul.f32 %v24, %v643
  %v645 = vmul.f32 %v25, %v643
  %v646 = vmul.f32 %v26, %v643
  %v647 = vmul.f32 %v27, %v643
  %v648 = vmul.f32 %v28, %v643
  %v649 = vmul.f32 %v29, %v643
  %v650 = vmul.f32 %v30, %v643
  %v651 = vmul.f32 %v31, %v643
  %v652 = vmul.f32 %v32, %v643
  %v653 = vmul.f32 %v33, %v643
  %v654 = vmul.f32 %v34, %v643
  %v655 = vmul.f32 %v35, %v643
  %v656 = vmul.f32 %v36, %v643
  %v657 = vmul.f32 %v37, %v643
  %v658 = vmul.f32 %v38, %v643
  %v659 = vmul.f32 %v39, %v643
  %v660 = vmul.f32 %v40, %v643
  %v661 = vmul.f32 %v41, %v643
  %v662 = vmul.f32 %v42, %v643
  %v663 = vmul.f32 %v43, %v643
  %v664 = vmul.f32 %v44, %v643
  %v665 = vmul.f32 %v45, %v643
  %v666 = vmul.f32 %v46, %v643
  %v667 = vmul.f32 %v47, %v643
  %v668 = vmul.f32 %v48, %v643
  %v669 = vmul.f32 %v49, %v643
  %v670 = vmul.f32 %v50, %v643
  %v671 = vmul.f32 %v51, %v643
  %v672 = vmul.f32 %v52, %v643
  %v673 = vmul.f32 %v53, %v643
  %v674 = vmul.f32 %v54, %v643
  %v675 = vmul.f32 %v55, %v643
  %v676 = vmul.f32 %v56, %v643
  %v677 = vmul.f32 %v57, %v643
  %v678 = vmul.f32 %v58, %v643
  %v679 = vmul.f32 %v59, %v643
  %v680 = vmul.f32 %v60, %v643
  %v681 = vmul.f32 %v61, %v643
  %v682 = vmul.f32 %v62, %v643
  %v683 = vmul.f32 %v63, %v643
  %v684 = vmul.f32 %v64, %v643
  %v685 = vmul.f32 %v65, %v643
  %v686 = vmul.f32 %v66, %v643
  %v687 = vmul.f32 %v67, %v643
  %v688 = vmul.f32 %v68, %v643
  %v689 = vmul.f32 %v69, %v643
  %v690 = vmul.f32 %v70, %v643
  %v691 = vmul.f32 %v71, %v643
  %v692 = vmul.f32 %v72, %v643
  %v693 = vmul.f32 %v73, %v643
  %v694 = vmul.f32 %v74, %v643
  %v695 = vmul.f32 %v75, %v643
  %v696 = vmul.f32 %v76, %v643
  %v697 = vmul.f32 %v77, %v643
  %v698 = vmul.f32 %v78, %v643
  %v699 = vmul.f32 %v79, %v643
  %v700 = vmul.f32 %v80, %v643
  %v701 = vmul.f32 %v81, %v643
  %v702 = vmul.f32 %v82, %v643
  %v703 = vmul.f32 %v83, %v643
  %v704 = vmul.f32 %v84, %v643
  %v705 = vmul.f32 %v85, %v643
  %v706 = vmul.f32 %v86, %v643
  %v707 = vmul.f32 %v87, %v643
  %v708 = vsub.f32 1.0, %v88
  %v709 = vperm.slane %v708, 0
  %v710 = vmul.f32 %v579, %v709
  %v711 = vmul.f32 %v580, %v709
  %v712 = vmul.f32 %v581, %v709
  %v713 = vmul.f32 %v582, %v709
  %v714 = vmul.f32 %v583, %v709
  %v715 = vmul.f32 %v584, %v709
  %v716 = vmul.f32 %v585, %v709
  %v717 = vmul.f32 %v586, %v709
  %v718 = vmul.f32 %v587, %v709
  %v719 = vmul.f32 %v588, %v709
  %v720 = vmul.f32 %v589, %v709
  %v721 = vmul.f32 %v590, %v709
  %v722 = vmul.f32 %v591, %v709
  %v723 = vmul.f32 %v592, %v709
  %v724 = vmul.f32 %v593, %v709
  %v725 = vmul.f32 %v594, %v709
  %v726 = vmul.f32 %v595, %v709
  %v727 = vmul.f32 %v596, %v709
  %v728 = vmul.f32 %v597, %v709
  %v729 = vmul.f32 %v598, %v709
  %v730 = vmul.f32 %v599, %v709
  %v731 = vmul.f32 %v600, %v709
  %v732 = vmul.f32 %v601, %v709
  %v733 = vmul.f32 %v602, %v709
  %v734 = vmul.f32 %v603, %v709
  %v735 = vmul.f32 %v604, %v709
  %v736 = vmul.f32 %v605, %v709
  %v737 = vmul.f32 %v606, %v709
  %v738 = vmul.f32 %v607, %v709
  %v739 = vmul.f32 %v608, %v709
  %v740 = vmul.f32 %v609, %v709
  %v741 = vmul.f32 %v610, %v709
  %v742 = vmul.f32 %v611, %v709
  %v743 = vmul.f32 %v612, %v709
  %v744 = vmul.f32 %v613, %v709
  %v745 = vmul.f32 %v614, %v709
  %v746 = vmul.f32 %v615, %v709
  %v747 = vmul.f32 %v616, %v709
  %v748 = vmul.f32 %v617, %v709
  %v749 = vmul.f32 %v618, %v709
  %v750 = vmul.f32 %v619, %v709
  %v751 = vmul.f32 %v620, %v709
  %v752 = vmul.f32 %v621, %v709
  %v753 = vmul.f32 %v622, %v709
  %v754 = vmul.f32 %v623, %v709
  %v755 = vmul.f32 %v624, %v709
  %v756 = vmul.f32 %v625, %v709
  %v757 = vmul.f32 %v626, %v709
  %v758 = vmul.f32 %v627, %v709
  %v759 = vmul.f32 %v628, %v709
  %v760 = vmul.f32 %v629, %v709
  %v761 = vmul.f32 %v630, %v709
  %v762 = vmul.f32 %v631, %v709
  %v763 = vmul.f32 %v632, %v709
  %v764 = vmul.f32 %v633, %v709
  %v765 = vmul.f32 %v634, %v709
  %v766 = vmul.f32 %v635, %v709
  %v767 = vmul.f32 %v636, %v709
  %v768 = vmul.f32 %v637, %v709
  %v769 = vmul.f32 %v638, %v709
  %v770 = vmul.f32 %v639, %v709
  %v771 = vmul.f32 %v640, %v709
  %v772 = vmul.f32 %v641, %v709
  %v773 = vmul.f32 %v642, %v709
  %v774 = vadd.f32 %v644, %v710
  %v775 = vadd.f32 %v645, %v711
  %v776 = vadd.f32 %v646, %v712
  %v777 = vadd.f32 %v647, %v713
  %v778 = vadd.f32 %v648, %v714
  %v779 = vadd.f32 %v649, %v715
  %v780 = vadd.f32 %v650, %v716
  %v781 = vadd.f32 %v651, %v717
  %v782 = vadd.f32 %v652, %v718
  %v783 = vadd.f32 %v653, %v719
  %v784 = vadd.f32 %v654, %v720
  %v785 = vadd.f32 %v655, %v721
  %v786 = vadd.f32 %v656, %v722
  %v787 = vadd.f32 %v657, %v723
  %v788 = vadd.f32 %v658, %v724
  %v789 = vadd.f32 %v659, %v725
  %v790 = vadd.f32 %v660, %v726
  %v791 = vadd.f32 %v661, %v727
  %v792 = vadd.f32 %v662, %v728
  %v793 = vadd.f32 %v663, %v729
  %v794 = vadd.f32 %v664, %v730
  %v795 = vadd.f32 %v665, %v731
  %v796 = vadd.f32 %v666, %v732
  %v797 = vadd.f32 %v667, %v733
  %v798 = vadd.f32 %v668, %v734
  %v799 = vadd.f32 %v669, %v735
  %v800 = vadd.f32 %v670, %v736
  %v801 = vadd.f32 %v671, %v737
  %v802 = vadd.f32 %v672, %v738
  %v803 = vadd.f32 %v673, %v739
  %v804 = vadd.f32 %v674, %v740
  %v805 = vadd.f32 %v675, %v741
  %v806 = vadd.f32 %v676, %v742
  %v807 = vadd.f32 %v677, %v743
  %v808 = vadd.f32 %v678, %v744
  %v809 = vadd.f32 %v679, %v745
  %v810 = vadd.f32 %v680, %v746
  %v811 = vadd.f32 %v681, %v747
  %v812 = vadd.f32 %v682, %v748
  %v813 = vadd.f32 %v683, %v749
  %v814 = vadd.f32 %v684, %v750
  %v815 = vadd.f32 %v685, %v751
  %v816 = vadd.f32 %v686, %v752
  %v817 = vadd.f32 %v687, %v753
  %v818 = vadd.f32 %v688, %v754
  %v819 = vadd.f32 %v689, %v755
  %v820 = vadd.f32 %v690, %v756
  %v821 = vadd.f32 %v691, %v757
  %v822 = vadd.f32 %v692, %v758
  %v823 = vadd.f32 %v693, %v759
  %v824 = vadd.f32 %v694, %v760
  %v825 = vadd.f32 %v695, %v761
  %v826 = vadd.f32 %v696, %v762
  %v827 = vadd.f32 %v697, %v763
  %v828 = vadd.f32 %v698, %v764
  %v829 = vadd.f32 %v699, %v765
  %v830 = vadd.f32 %v700, %v766
  %v831 = vadd.f32 %v701, %v767
  %v832 = vadd.f32 %v702, %v768
  %v833 = vadd.f32 %v703, %v769
  %v834 = vadd.f32 %v704, %v770
  %v835 = vadd.f32 %v705, %v771
  %v836 = vadd.f32 %v706, %v772
  %v837 = vadd.f32 %v707, %v773
  %v838 = vpack.c.bf16 %v775, %v774
  %v839 = vpack.c.bf16 %v777, %v776
  %v840 = vpack.c.bf16 %v779, %v778
  %v841 = vpack.c.bf16 %v781, %v780
  %v842 = vpack.c.bf16 %v783, %v782
  %v843 = vpack.c.bf16 %v785, %v784
  %v844 = vpack.c.bf16 %v787, %v786
  %v845 = vpack.c.bf16 %v789, %v788
  %v846 = vpack.c.bf16 %v791, %v790
  %v847 = vpack.c.bf16 %v793, %v792
  %v848 = vpack.c.bf16 %v795, %v794
  %v849 = vpack.c.bf16 %v797, %v796
  %v850 = vpack.c.bf16 %v799, %v798
  %v851 = vpack.c.bf16 %v801, %v800
  %v852 = vpack.c.bf16 %v803, %v802
  %v853 = vpack.c.bf16 %v805, %v804
  %v854 = vpack.c.bf16 %v807, %v806
  %v855 = vpack.c.bf16 %v809, %v808
  %v856 = vpack.c.bf16 %v811, %v810
  %v857 = vpack.c.bf16 %v813, %v812
  %v858 = vpack.c.bf16 %v815, %v814
  %v859 = vpack.c.bf16 %v817, %v816
  %v860 = vpack.c.bf16 %v819, %v818
  %v861 = vpack.c.bf16 %v821, %v820
  %v862 = vpack.c.bf16 %v823, %v822
  %v863 = vpack.c.bf16 %v825, %v824
  %v864 = vpack.c.bf16 %v827, %v826
  %v865 = vpack.c.bf16 %v829, %v828
  %v866 = vpack.c.bf16 %v831, %v830
  %v867 = vpack.c.bf16 %v833, %v832
  %v868 = vpack.c.bf16 %v835, %v834
  %v869 = vpack.c.bf16 %v837, %v836
  %v870 = vperm.slane %v88, 1
  %v871 = vmul.f32 %v24, %v870
  %v872 = vmul.f32 %v25, %v870
  %v873 = vmul.f32 %v26, %v870
  %v874 = vmul.f32 %v27, %v870
  %v875 = vmul.f32 %v28, %v870
  %v876 = vmul.f32 %v29, %v870
  %v877 = vmul.f32 %v30, %v870
  %v878 = vmul.f32 %v31, %v870
  %v879 = vmul.f32 %v32, %v870
  %v880 = vmul.f32 %v33, %v870
  %v881 = vmul.f32 %v34, %v870
  %v882 = vmul.f32 %v35, %v870
  %v883 = vmul.f32 %v36, %v870
  %v884 = vmul.f32 %v37, %v870
  %v885 = vmul.f32 %v38, %v870
  %v886 = vmul.f32 %v39, %v870
  %v887 = vmul.f32 %v40, %v870
  %v888 = vmul.f32 %v41, %v870
  %v889 = vmul.f32 %v42, %v870
  %v890 = vmul.f32 %v43, %v870
  %v891 = vmul.f32 %v44, %v870
  %v892 = vmul.f32 %v45, %v870
  %v893 = vmul.f32 %v46, %v870
  %v894 = vmul.f32 %v47, %v870
  %v895 = vmul.f32 %v48, %v870
  %v896 = vmul.f32 %v49, %v870
  %v897 = vmul.f32 %v50, %v870
  %v898 = vmul.f32 %v51, %v870
  %v899 = vmul.f32 %v52, %v870
  %v900 = vmul.f32 %v53, %v870
  %v901 = vmul.f32 %v54, %v870
  %v902 = vmul.f32 %v55, %v870
  %v903 = vmul.f32 %v56, %v870
  %v904 = vmul.f32 %v57, %v870
  %v905 = vmul.f32 %v58, %v870
  %v906 = vmul.f32 %v59, %v870
  %v907 = vmul.f32 %v60, %v870
  %v908 = vmul.f32 %v61, %v870
  %v909 = vmul.f32 %v62, %v870
  %v910 = vmul.f32 %v63, %v870
  %v911 = vmul.f32 %v64, %v870
  %v912 = vmul.f32 %v65, %v870
  %v913 = vmul.f32 %v66, %v870
  %v914 = vmul.f32 %v67, %v870
  %v915 = vmul.f32 %v68, %v870
  %v916 = vmul.f32 %v69, %v870
  %v917 = vmul.f32 %v70, %v870
  %v918 = vmul.f32 %v71, %v870
  %v919 = vmul.f32 %v72, %v870
  %v920 = vmul.f32 %v73, %v870
  %v921 = vmul.f32 %v74, %v870
  %v922 = vmul.f32 %v75, %v870
  %v923 = vmul.f32 %v76, %v870
  %v924 = vmul.f32 %v77, %v870
  %v925 = vmul.f32 %v78, %v870
  %v926 = vmul.f32 %v79, %v870
  %v927 = vmul.f32 %v80, %v870
  %v928 = vmul.f32 %v81, %v870
  %v929 = vmul.f32 %v82, %v870
  %v930 = vmul.f32 %v83, %v870
  %v931 = vmul.f32 %v84, %v870
  %v932 = vmul.f32 %v85, %v870
  %v933 = vmul.f32 %v86, %v870
  %v934 = vmul.f32 %v87, %v870
  %v935 = vperm.slane %v708, 1
  %v936 = vmul.f32 %v579, %v935
  %v937 = vmul.f32 %v580, %v935
  %v938 = vmul.f32 %v581, %v935
  %v939 = vmul.f32 %v582, %v935
  %v940 = vmul.f32 %v583, %v935
  %v941 = vmul.f32 %v584, %v935
  %v942 = vmul.f32 %v585, %v935
  %v943 = vmul.f32 %v586, %v935
  %v944 = vmul.f32 %v587, %v935
  %v945 = vmul.f32 %v588, %v935
  %v946 = vmul.f32 %v589, %v935
  %v947 = vmul.f32 %v590, %v935
  %v948 = vmul.f32 %v591, %v935
  %v949 = vmul.f32 %v592, %v935
  %v950 = vmul.f32 %v593, %v935
  %v951 = vmul.f32 %v594, %v935
  %v952 = vmul.f32 %v595, %v935
  %v953 = vmul.f32 %v596, %v935
  %v954 = vmul.f32 %v597, %v935
  %v955 = vmul.f32 %v598, %v935
  %v956 = vmul.f32 %v599, %v935
  %v957 = vmul.f32 %v600, %v935
  %v958 = vmul.f32 %v601, %v935
  %v959 = vmul.f32 %v602, %v935
  %v960 = vmul.f32 %v603, %v935
  %v961 = vmul.f32 %v604, %v935
  %v962 = vmul.f32 %v605, %v935
  %v963 = vmul.f32 %v606, %v935
  %v964 = vmul.f32 %v607, %v935
  %v965 = vmul.f32 %v608, %v935
  %v966 = vmul.f32 %v609, %v935
  %v967 = vmul.f32 %v610, %v935
  %v968 = vmul.f32 %v611, %v935
  %v969 = vmul.f32 %v612, %v935
  %v970 = vmul.f32 %v613, %v935
  %v971 = vmul.f32 %v614, %v935
  %v972 = vmul.f32 %v615, %v935
  %v973 = vmul.f32 %v616, %v935
  %v974 = vmul.f32 %v617, %v935
  %v975 = vmul.f32 %v618, %v935
  %v976 = vmul.f32 %v619, %v935
  %v977 = vmul.f32 %v620, %v935
  %v978 = vmul.f32 %v621, %v935
  %v979 = vmul.f32 %v622, %v935
  %v980 = vmul.f32 %v623, %v935
  %v981 = vmul.f32 %v624, %v935
  %v982 = vmul.f32 %v625, %v935
  %v983 = vmul.f32 %v626, %v935
  %v984 = vmul.f32 %v627, %v935
  %v985 = vmul.f32 %v628, %v935
  %v986 = vmul.f32 %v629, %v935
  %v987 = vmul.f32 %v630, %v935
  %v988 = vmul.f32 %v631, %v935
  %v989 = vmul.f32 %v632, %v935
  %v990 = vmul.f32 %v633, %v935
  %v991 = vmul.f32 %v634, %v935
  %v992 = vmul.f32 %v635, %v935
  %v993 = vmul.f32 %v636, %v935
  %v994 = vmul.f32 %v637, %v935
  %v995 = vmul.f32 %v638, %v935
  %v996 = vmul.f32 %v639, %v935
  %v997 = vmul.f32 %v640, %v935
  %v998 = vmul.f32 %v641, %v935
  %v999 = vmul.f32 %v642, %v935
  %v1000 = vadd.f32 %v871, %v936
  %v1001 = vadd.f32 %v872, %v937
  %v1002 = vadd.f32 %v873, %v938
  %v1003 = vadd.f32 %v874, %v939
  %v1004 = vadd.f32 %v875, %v940
  %v1005 = vadd.f32 %v876, %v941
  %v1006 = vadd.f32 %v877, %v942
  %v1007 = vadd.f32 %v878, %v943
  %v1008 = vadd.f32 %v879, %v944
  %v1009 = vadd.f32 %v880, %v945
  %v1010 = vadd.f32 %v881, %v946
  %v1011 = vadd.f32 %v882, %v947
  %v1012 = vadd.f32 %v883, %v948
  %v1013 = vadd.f32 %v884, %v949
  %v1014 = vadd.f32 %v885, %v950
  %v1015 = vadd.f32 %v886, %v951
  %v1016 = vadd.f32 %v887, %v952
  %v1017 = vadd.f32 %v888, %v953
  %v1018 = vadd.f32 %v889, %v954
  %v1019 = vadd.f32 %v890, %v955
  %v1020 = vadd.f32 %v891, %v956
  %v1021 = vadd.f32 %v892, %v957
  %v1022 = vadd.f32 %v893, %v958
  %v1023 = vadd.f32 %v894, %v959
  %v1024 = vadd.f32 %v895, %v960
  %v1025 = vadd.f32 %v896, %v961
  %v1026 = vadd.f32 %v897, %v962
  %v1027 = vadd.f32 %v898, %v963
  %v1028 = vadd.f32 %v899, %v964
  %v1029 = vadd.f32 %v900, %v965
  %v1030 = vadd.f32 %v901, %v966
  %v1031 = vadd.f32 %v902, %v967
  %v1032 = vadd.f32 %v903, %v968
  %v1033 = vadd.f32 %v904, %v969
  %v1034 = vadd.f32 %v905, %v970
  %v1035 = vadd.f32 %v906, %v971
  %v1036 = vadd.f32 %v907, %v972
  %v1037 = vadd.f32 %v908, %v973
  %v1038 = vadd.f32 %v909, %v974
  %v1039 = vadd.f32 %v910, %v975
  %v1040 = vadd.f32 %v911, %v976
  %v1041 = vadd.f32 %v912, %v977
  %v1042 = vadd.f32 %v913, %v978
  %v1043 = vadd.f32 %v914, %v979
  %v1044 = vadd.f32 %v915, %v980
  %v1045 = vadd.f32 %v916, %v981
  %v1046 = vadd.f32 %v917, %v982
  %v1047 = vadd.f32 %v918, %v983
  %v1048 = vadd.f32 %v919, %v984
  %v1049 = vadd.f32 %v920, %v985
  %v1050 = vadd.f32 %v921, %v986
  %v1051 = vadd.f32 %v922, %v987
  %v1052 = vadd.f32 %v923, %v988
  %v1053 = vadd.f32 %v924, %v989
  %v1054 = vadd.f32 %v925, %v990
  %v1055 = vadd.f32 %v926, %v991
  %v1056 = vadd.f32 %v927, %v992
  %v1057 = vadd.f32 %v928, %v993
  %v1058 = vadd.f32 %v929, %v994
  %v1059 = vadd.f32 %v930, %v995
  %v1060 = vadd.f32 %v931, %v996
  %v1061 = vadd.f32 %v932, %v997
  %v1062 = vadd.f32 %v933, %v998
  %v1063 = vadd.f32 %v934, %v999
  %v1064 = vpack.c.bf16 %v1001, %v1000
  %v1065 = vpack.c.bf16 %v1003, %v1002
  %v1066 = vpack.c.bf16 %v1005, %v1004
  %v1067 = vpack.c.bf16 %v1007, %v1006
  %v1068 = vpack.c.bf16 %v1009, %v1008
  %v1069 = vpack.c.bf16 %v1011, %v1010
  %v1070 = vpack.c.bf16 %v1013, %v1012
  %v1071 = vpack.c.bf16 %v1015, %v1014
  %v1072 = vpack.c.bf16 %v1017, %v1016
  %v1073 = vpack.c.bf16 %v1019, %v1018
  %v1074 = vpack.c.bf16 %v1021, %v1020
  %v1075 = vpack.c.bf16 %v1023, %v1022
  %v1076 = vpack.c.bf16 %v1025, %v1024
  %v1077 = vpack.c.bf16 %v1027, %v1026
  %v1078 = vpack.c.bf16 %v1029, %v1028
  %v1079 = vpack.c.bf16 %v1031, %v1030
  %v1080 = vpack.c.bf16 %v1033, %v1032
  %v1081 = vpack.c.bf16 %v1035, %v1034
  %v1082 = vpack.c.bf16 %v1037, %v1036
  %v1083 = vpack.c.bf16 %v1039, %v1038
  %v1084 = vpack.c.bf16 %v1041, %v1040
  %v1085 = vpack.c.bf16 %v1043, %v1042
  %v1086 = vpack.c.bf16 %v1045, %v1044
  %v1087 = vpack.c.bf16 %v1047, %v1046
  %v1088 = vpack.c.bf16 %v1049, %v1048
  %v1089 = vpack.c.bf16 %v1051, %v1050
  %v1090 = vpack.c.bf16 %v1053, %v1052
  %v1091 = vpack.c.bf16 %v1055, %v1054
  %v1092 = vpack.c.bf16 %v1057, %v1056
  %v1093 = vpack.c.bf16 %v1059, %v1058
  %v1094 = vpack.c.bf16 %v1061, %v1060
  %v1095 = vpack.c.bf16 %v1063, %v1062
  %v1096 = vperm.slane %v88, 2
  %v1097 = vmul.f32 %v24, %v1096
  %v1098 = vmul.f32 %v25, %v1096
  %v1099 = vmul.f32 %v26, %v1096
  %v1100 = vmul.f32 %v27, %v1096
  %v1101 = vmul.f32 %v28, %v1096
  %v1102 = vmul.f32 %v29, %v1096
  %v1103 = vmul.f32 %v30, %v1096
  %v1104 = vmul.f32 %v31, %v1096
  %v1105 = vmul.f32 %v32, %v1096
  %v1106 = vmul.f32 %v33, %v1096
  %v1107 = vmul.f32 %v34, %v1096
  %v1108 = vmul.f32 %v35, %v1096
  %v1109 = vmul.f32 %v36, %v1096
  %v1110 = vmul.f32 %v37, %v1096
  %v1111 = vmul.f32 %v38, %v1096
  %v1112 = vmul.f32 %v39, %v1096
  %v1113 = vmul.f32 %v40, %v1096
  %v1114 = vmul.f32 %v41, %v1096
  %v1115 = vmul.f32 %v42, %v1096
  %v1116 = vmul.f32 %v43, %v1096
  %v1117 = vmul.f32 %v44, %v1096
  %v1118 = vmul.f32 %v45, %v1096
  %v1119 = vmul.f32 %v46, %v1096
  %v1120 = vmul.f32 %v47, %v1096
  %v1121 = vmul.f32 %v48, %v1096
  %v1122 = vmul.f32 %v49, %v1096
  %v1123 = vmul.f32 %v50, %v1096
  %v1124 = vmul.f32 %v51, %v1096
  %v1125 = vmul.f32 %v52, %v1096
  %v1126 = vmul.f32 %v53, %v1096
  %v1127 = vmul.f32 %v54, %v1096
  %v1128 = vmul.f32 %v55, %v1096
  %v1129 = vmul.f32 %v56, %v1096
  %v1130 = vmul.f32 %v57, %v1096
  %v1131 = vmul.f32 %v58, %v1096
  %v1132 = vmul.f32 %v59, %v1096
  %v1133 = vmul.f32 %v60, %v1096
  %v1134 = vmul.f32 %v61, %v1096
  %v1135 = vmul.f32 %v62, %v1096
  %v1136 = vmul.f32 %v63, %v1096
  %v1137 = vmul.f32 %v64, %v1096
  %v1138 = vmul.f32 %v65, %v1096
  %v1139 = vmul.f32 %v66, %v1096
  %v1140 = vmul.f32 %v67, %v1096
  %v1141 = vmul.f32 %v68, %v1096
  %v1142 = vmul.f32 %v69, %v1096
  %v1143 = vmul.f32 %v70, %v1096
  %v1144 = vmul.f32 %v71, %v1096
  %v1145 = vmul.f32 %v72, %v1096
  %v1146 = vmul.f32 %v73, %v1096
  %v1147 = vmul.f32 %v74, %v1096
  %v1148 = vmul.f32 %v75, %v1096
  %v1149 = vmul.f32 %v76, %v1096
  %v1150 = vmul.f32 %v77, %v1096
  %v1151 = vmul.f32 %v78, %v1096
  %v1152 = vmul.f32 %v79, %v1096
  %v1153 = vmul.f32 %v80, %v1096
  %v1154 = vmul.f32 %v81, %v1096
  %v1155 = vmul.f32 %v82, %v1096
  %v1156 = vmul.f32 %v83, %v1096
  %v1157 = vmul.f32 %v84, %v1096
  %v1158 = vmul.f32 %v85, %v1096
  %v1159 = vmul.f32 %v86, %v1096
  %v1160 = vmul.f32 %v87, %v1096
  %v1161 = vperm.slane %v708, 2
  %v1162 = vmul.f32 %v579, %v1161
  %v1163 = vmul.f32 %v580, %v1161
  %v1164 = vmul.f32 %v581, %v1161
  %v1165 = vmul.f32 %v582, %v1161
  %v1166 = vmul.f32 %v583, %v1161
  %v1167 = vmul.f32 %v584, %v1161
  %v1168 = vmul.f32 %v585, %v1161
  %v1169 = vmul.f32 %v586, %v1161
  %v1170 = vmul.f32 %v587, %v1161
  %v1171 = vmul.f32 %v588, %v1161
  %v1172 = vmul.f32 %v589, %v1161
  %v1173 = vmul.f32 %v590, %v1161
  %v1174 = vmul.f32 %v591, %v1161
  %v1175 = vmul.f32 %v592, %v1161
  %v1176 = vmul.f32 %v593, %v1161
  %v1177 = vmul.f32 %v594, %v1161
  %v1178 = vmul.f32 %v595, %v1161
  %v1179 = vmul.f32 %v596, %v1161
  %v1180 = vmul.f32 %v597, %v1161
  %v1181 = vmul.f32 %v598, %v1161
  %v1182 = vmul.f32 %v599, %v1161
  %v1183 = vmul.f32 %v600, %v1161
  %v1184 = vmul.f32 %v601, %v1161
  %v1185 = vmul.f32 %v602, %v1161
  %v1186 = vmul.f32 %v603, %v1161
  %v1187 = vmul.f32 %v604, %v1161
  %v1188 = vmul.f32 %v605, %v1161
  %v1189 = vmul.f32 %v606, %v1161
  %v1190 = vmul.f32 %v607, %v1161
  %v1191 = vmul.f32 %v608, %v1161
  %v1192 = vmul.f32 %v609, %v1161
  %v1193 = vmul.f32 %v610, %v1161
  %v1194 = vmul.f32 %v611, %v1161
  %v1195 = vmul.f32 %v612, %v1161
  %v1196 = vmul.f32 %v613, %v1161
  %v1197 = vmul.f32 %v614, %v1161
  %v1198 = vmul.f32 %v615, %v1161
  %v1199 = vmul.f32 %v616, %v1161
  %v1200 = vmul.f32 %v617, %v1161
  %v1201 = vmul.f32 %v618, %v1161
  %v1202 = vmul.f32 %v619, %v1161
  %v1203 = vmul.f32 %v620, %v1161
  %v1204 = vmul.f32 %v621, %v1161
  %v1205 = vmul.f32 %v622, %v1161
  %v1206 = vmul.f32 %v623, %v1161
  %v1207 = vmul.f32 %v624, %v1161
  %v1208 = vmul.f32 %v625, %v1161
  %v1209 = vmul.f32 %v626, %v1161
  %v1210 = vmul.f32 %v627, %v1161
  %v1211 = vmul.f32 %v628, %v1161
  %v1212 = vmul.f32 %v629, %v1161
  %v1213 = vmul.f32 %v630, %v1161
  %v1214 = vmul.f32 %v631, %v1161
  %v1215 = vmul.f32 %v632, %v1161
  %v1216 = vmul.f32 %v633, %v1161
  %v1217 = vmul.f32 %v634, %v1161
  %v1218 = vmul.f32 %v635, %v1161
  %v1219 = vmul.f32 %v636, %v1161
  %v1220 = vmul.f32 %v637, %v1161
  %v1221 = vmul.f32 %v638, %v1161
  %v1222 = vmul.f32 %v639, %v1161
  %v1223 = vmul.f32 %v640, %v1161
  %v1224 = vmul.f32 %v641, %v1161
  %v1225 = vmul.f32 %v642, %v1161
  %v1226 = vadd.f32 %v1097, %v1162
  %v1227 = vadd.f32 %v1098, %v1163
  %v1228 = vadd.f32 %v1099, %v1164
  %v1229 = vadd.f32 %v1100, %v1165
  %v1230 = vadd.f32 %v1101, %v1166
  %v1231 = vadd.f32 %v1102, %v1167
  %v1232 = vadd.f32 %v1103, %v1168
  %v1233 = vadd.f32 %v1104, %v1169
  %v1234 = vadd.f32 %v1105, %v1170
  %v1235 = vadd.f32 %v1106, %v1171
  %v1236 = vadd.f32 %v1107, %v1172
  %v1237 = vadd.f32 %v1108, %v1173
  %v1238 = vadd.f32 %v1109, %v1174
  %v1239 = vadd.f32 %v1110, %v1175
  %v1240 = vadd.f32 %v1111, %v1176
  %v1241 = vadd.f32 %v1112, %v1177
  %v1242 = vadd.f32 %v1113, %v1178
  %v1243 = vadd.f32 %v1114, %v1179
  %v1244 = vadd.f32 %v1115, %v1180
  %v1245 = vadd.f32 %v1116, %v1181
  %v1246 = vadd.f32 %v1117, %v1182
  %v1247 = vadd.f32 %v1118, %v1183
  %v1248 = vadd.f32 %v1119, %v1184
  %v1249 = vadd.f32 %v1120, %v1185
  %v1250 = vadd.f32 %v1121, %v1186
  %v1251 = vadd.f32 %v1122, %v1187
  %v1252 = vadd.f32 %v1123, %v1188
  %v1253 = vadd.f32 %v1124, %v1189
  %v1254 = vadd.f32 %v1125, %v1190
  %v1255 = vadd.f32 %v1126, %v1191
  %v1256 = vadd.f32 %v1127, %v1192
  %v1257 = vadd.f32 %v1128, %v1193
  %v1258 = vadd.f32 %v1129, %v1194
  %v1259 = vadd.f32 %v1130, %v1195
  %v1260 = vadd.f32 %v1131, %v1196
  %v1261 = vadd.f32 %v1132, %v1197
  %v1262 = vadd.f32 %v1133, %v1198
  %v1263 = vadd.f32 %v1134, %v1199
  %v1264 = vadd.f32 %v1135, %v1200
  %v1265 = vadd.f32 %v1136, %v1201
  %v1266 = vadd.f32 %v1137, %v1202
  %v1267 = vadd.f32 %v1138, %v1203
  %v1268 = vadd.f32 %v1139, %v1204
  %v1269 = vadd.f32 %v1140, %v1205
  %v1270 = vadd.f32 %v1141, %v1206
  %v1271 = vadd.f32 %v1142, %v1207
  %v1272 = vadd.f32 %v1143, %v1208
  %v1273 = vadd.f32 %v1144, %v1209
  %v1274 = vadd.f32 %v1145, %v1210
  %v1275 = vadd.f32 %v1146, %v1211
  %v1276 = vadd.f32 %v1147, %v1212
  %v1277 = vadd.f32 %v1148, %v1213
  %v1278 = vadd.f32 %v1149, %v1214
  %v1279 = vadd.f32 %v1150, %v1215
  %v1280 = vadd.f32 %v1151, %v1216
  %v1281 = vadd.f32 %v1152, %v1217
  %v1282 = vadd.f32 %v1153, %v1218
  %v1283 = vadd.f32 %v1154, %v1219
  %v1284 = vadd.f32 %v1155, %v1220
  %v1285 = vadd.f32 %v1156, %v1221
  %v1286 = vadd.f32 %v1157, %v1222
  %v1287 = vadd.f32 %v1158, %v1223
  %v1288 = vadd.f32 %v1159, %v1224
  %v1289 = vadd.f32 %v1160, %v1225
  %v1290 = vpack.c.bf16 %v1227, %v1226
  %v1291 = vpack.c.bf16 %v1229, %v1228
  %v1292 = vpack.c.bf16 %v1231, %v1230
  %v1293 = vpack.c.bf16 %v1233, %v1232
  %v1294 = vpack.c.bf16 %v1235, %v1234
  %v1295 = vpack.c.bf16 %v1237, %v1236
  %v1296 = vpack.c.bf16 %v1239, %v1238
  %v1297 = vpack.c.bf16 %v1241, %v1240
  %v1298 = vpack.c.bf16 %v1243, %v1242
  %v1299 = vpack.c.bf16 %v1245, %v1244
  %v1300 = vpack.c.bf16 %v1247, %v1246
  %v1301 = vpack.c.bf16 %v1249, %v1248
  %v1302 = vpack.c.bf16 %v1251, %v1250
  %v1303 = vpack.c.bf16 %v1253, %v1252
  %v1304 = vpack.c.bf16 %v1255, %v1254
  %v1305 = vpack.c.bf16 %v1257, %v1256
  %v1306 = vpack.c.bf16 %v1259, %v1258
  %v1307 = vpack.c.bf16 %v1261, %v1260
  %v1308 = vpack.c.bf16 %v1263, %v1262
  %v1309 = vpack.c.bf16 %v1265, %v1264
  %v1310 = vpack.c.bf16 %v1267, %v1266
  %v1311 = vpack.c.bf16 %v1269, %v1268
  %v1312 = vpack.c.bf16 %v1271, %v1270
  %v1313 = vpack.c.bf16 %v1273, %v1272
  %v1314 = vpack.c.bf16 %v1275, %v1274
  %v1315 = vpack.c.bf16 %v1277, %v1276
  %v1316 = vpack.c.bf16 %v1279, %v1278
  %v1317 = vpack.c.bf16 %v1281, %v1280
  %v1318 = vpack.c.bf16 %v1283, %v1282
  %v1319 = vpack.c.bf16 %v1285, %v1284
  %v1320 = vpack.c.bf16 %v1287, %v1286
  %v1321 = vpack.c.bf16 %v1289, %v1288
  %v1322 = vld [vmem:[%s2] sm:$0xf]
  %v1323 = vld [vmem:[%s2 + $0x4] sm:$0xf]
  %v1324 = vld [vmem:[%s2 + $0x8] sm:$0xf]
  %v1325 = vld [vmem:[%s2 + $0xc] sm:$0xf]
  %v1330 = vunpack.c.l.b16 %v1322
  %v1331 = vunpack.c.l.b16 %v1323
  %v1332 = vunpack.c.l.b16 %v1324
  %v1333 = vunpack.c.l.b16 %v1325
  %v1334 = vpack.c.b16 %v1331, %v1330
  %v1335 = vpack.c.b16 %v1333, %v1332
  %vm1338 = vcmask 261120
  %v1340 = vsel %vm1338, %v838, 0
  %v1343 = vsel %vm1338, %v839, 0
  %v1346 = vsel %vm1338, %v840, 0
  %v1349 = vsel %vm1338, %v841, 0
  %v1352 = vsel %vm1338, %v842, 0
  %v1355 = vsel %vm1338, %v843, 0
  %v1358 = vsel %vm1338, %v844, 0
  %v1361 = vsel %vm1338, %v845, 0
  %v1364 = vsel %vm1338, %v846, 0
  %v1367 = vsel %vm1338, %v847, 0
  %v1370 = vsel %vm1338, %v848, 0
  %v1373 = vsel %vm1338, %v849, 0
  %v1376 = vsel %vm1338, %v850, 0
  %v1379 = vsel %vm1338, %v851, 0
  %v1382 = vsel %vm1338, %v852, 0
  %v1385 = vsel %vm1338, %v853, 0
  %v1388 = vsel %vm1338, %v854, 0
  %v1391 = vsel %vm1338, %v855, 0
  %v1394 = vsel %vm1338, %v856, 0
  %v1397 = vsel %vm1338, %v857, 0
  %v1400 = vsel %vm1338, %v858, 0
  %v1403 = vsel %vm1338, %v859, 0
  %v1406 = vsel %vm1338, %v860, 0
  %v1409 = vsel %vm1338, %v861, 0
  %v1412 = vsel %vm1338, %v862, 0
  %v1415 = vsel %vm1338, %v863, 0
  %v1418 = vsel %vm1338, %v864, 0
  %v1421 = vsel %vm1338, %v865, 0
  %v1424 = vsel %vm1338, %v866, 0
  %v1427 = vsel %vm1338, %v867, 0
  %v1430 = vsel %vm1338, %v868, 0
  %v1433 = vsel %vm1338, %v869, 0
  %1435 = vmatpush.bf16.msra.mxu0 0
  %1436 = vmatpush.bf16.msra.mxu0 0
  %1437 = vmatpush.bf16.msra.mxu0 0
  %1438 = vmatpush.bf16.msra.mxu0 0
  %1439 = vmatpush.bf16.msra.mxu0 0
  %1440 = vmatpush.bf16.msra.mxu0 0
  %1441 = vmatpush.bf16.msra.mxu0 %v1335
  %1442 = vmatpush.bf16.msra.mxu0 %v1334
  %1443 = vmatmul.bf16.gmra.mxu0 %v1340
  %v1444 = vpop.f32.mrf.mxu0
  %v1445 = vadd.f32 0.0, %v1444
  %v1446 = vpop.f32.mrf.mxu0
  %v1447 = vadd.f32 0.0, %v1446
  %1448 = vmatmul.bf16.gmra.mxu0 %v1343
  %v1449 = vpop.f32.mrf.mxu0
  %v1450 = vadd.f32 0.0, %v1449
  %v1451 = vpop.f32.mrf.mxu0
  %v1452 = vadd.f32 0.0, %v1451
  %1453 = vmatmul.bf16.gmra.mxu0 %v1346
  %v1454 = vpop.f32.mrf.mxu0
  %v1455 = vadd.f32 0.0, %v1454
  %v1456 = vpop.f32.mrf.mxu0
  %v1457 = vadd.f32 0.0, %v1456
  %1458 = vmatmul.bf16.gmra.mxu0 %v1349
  %v1459 = vpop.f32.mrf.mxu0
  %v1460 = vadd.f32 0.0, %v1459
  %v1461 = vpop.f32.mrf.mxu0
  %v1462 = vadd.f32 0.0, %v1461
  %1463 = vmatmul.bf16.gmra.mxu0 %v1352
  %v1464 = vpop.f32.mrf.mxu0
  %v1465 = vadd.f32 0.0, %v1464
  %v1466 = vpop.f32.mrf.mxu0
  %v1467 = vadd.f32 0.0, %v1466
  %1468 = vmatmul.bf16.gmra.mxu0 %v1355
  %v1469 = vpop.f32.mrf.mxu0
  %v1470 = vadd.f32 0.0, %v1469
  %v1471 = vpop.f32.mrf.mxu0
  %v1472 = vadd.f32 0.0, %v1471
  %1473 = vmatmul.bf16.gmra.mxu0 %v1358
  %v1474 = vpop.f32.mrf.mxu0
  %v1475 = vadd.f32 0.0, %v1474
  %v1476 = vpop.f32.mrf.mxu0
  %v1477 = vadd.f32 0.0, %v1476
  %1478 = vmatmul.bf16.gmra.mxu0 %v1361
  %v1479 = vpop.f32.mrf.mxu0
  %v1480 = vadd.f32 0.0, %v1479
  %v1481 = vpop.f32.mrf.mxu0
  %v1482 = vadd.f32 0.0, %v1481
  %1483 = vmatmul.bf16.gmra.mxu0 %v1364
  %v1484 = vpop.f32.mrf.mxu0
  %v1485 = vadd.f32 0.0, %v1484
  %v1486 = vpop.f32.mrf.mxu0
  %v1487 = vadd.f32 0.0, %v1486
  %1488 = vmatmul.bf16.gmra.mxu0 %v1367
  %v1489 = vpop.f32.mrf.mxu0
  %v1490 = vadd.f32 0.0, %v1489
  %v1491 = vpop.f32.mrf.mxu0
  %v1492 = vadd.f32 0.0, %v1491
  %1493 = vmatmul.bf16.gmra.mxu0 %v1370
  %v1494 = vpop.f32.mrf.mxu0
  %v1495 = vadd.f32 0.0, %v1494
  %v1496 = vpop.f32.mrf.mxu0
  %v1497 = vadd.f32 0.0, %v1496
  %1498 = vmatmul.bf16.gmra.mxu0 %v1373
  %v1499 = vpop.f32.mrf.mxu0
  %v1500 = vadd.f32 0.0, %v1499
  %v1501 = vpop.f32.mrf.mxu0
  %v1502 = vadd.f32 0.0, %v1501
  %1503 = vmatmul.bf16.gmra.mxu0 %v1376
  %v1504 = vpop.f32.mrf.mxu0
  %v1505 = vadd.f32 0.0, %v1504
  %v1506 = vpop.f32.mrf.mxu0
  %v1507 = vadd.f32 0.0, %v1506
  %1508 = vmatmul.bf16.gmra.mxu0 %v1379
  %v1509 = vpop.f32.mrf.mxu0
  %v1510 = vadd.f32 0.0, %v1509
  %v1511 = vpop.f32.mrf.mxu0
  %v1512 = vadd.f32 0.0, %v1511
  %1513 = vmatmul.bf16.gmra.mxu0 %v1382
  %v1514 = vpop.f32.mrf.mxu0
  %v1515 = vadd.f32 0.0, %v1514
  %v1516 = vpop.f32.mrf.mxu0
  %v1517 = vadd.f32 0.0, %v1516
  %1518 = vmatmul.bf16.gmra.mxu0 %v1385
  %v1519 = vpop.f32.mrf.mxu0
  %v1520 = vadd.f32 0.0, %v1519
  %v1521 = vpop.f32.mrf.mxu0
  %v1522 = vadd.f32 0.0, %v1521
  %1523 = vmatmul.bf16.gmra.mxu0 %v1388
  %v1524 = vpop.f32.mrf.mxu0
  %v1525 = vadd.f32 0.0, %v1524
  %v1526 = vpop.f32.mrf.mxu0
  %v1527 = vadd.f32 0.0, %v1526
  %1528 = vmatmul.bf16.gmra.mxu0 %v1391
  %v1529 = vpop.f32.mrf.mxu0
  %v1530 = vadd.f32 0.0, %v1529
  %v1531 = vpop.f32.mrf.mxu0
  %v1532 = vadd.f32 0.0, %v1531
  %1533 = vmatmul.bf16.gmra.mxu0 %v1394
  %v1534 = vpop.f32.mrf.mxu0
  %v1535 = vadd.f32 0.0, %v1534
  %v1536 = vpop.f32.mrf.mxu0
  %v1537 = vadd.f32 0.0, %v1536
  %1538 = vmatmul.bf16.gmra.mxu0 %v1397
  %v1539 = vpop.f32.mrf.mxu0
  %v1540 = vadd.f32 0.0, %v1539
  %v1541 = vpop.f32.mrf.mxu0
  %v1542 = vadd.f32 0.0, %v1541
  %1543 = vmatmul.bf16.gmra.mxu0 %v1400
  %v1544 = vpop.f32.mrf.mxu0
  %v1545 = vadd.f32 0.0, %v1544
  %v1546 = vpop.f32.mrf.mxu0
  %v1547 = vadd.f32 0.0, %v1546
  %1548 = vmatmul.bf16.gmra.mxu0 %v1403
  %v1549 = vpop.f32.mrf.mxu0
  %v1550 = vadd.f32 0.0, %v1549
  %v1551 = vpop.f32.mrf.mxu0
  %v1552 = vadd.f32 0.0, %v1551
  %1553 = vmatmul.bf16.gmra.mxu0 %v1406
  %v1554 = vpop.f32.mrf.mxu0
  %v1555 = vadd.f32 0.0, %v1554
  %v1556 = vpop.f32.mrf.mxu0
  %v1557 = vadd.f32 0.0, %v1556
  %1558 = vmatmul.bf16.gmra.mxu0 %v1409
  %v1559 = vpop.f32.mrf.mxu0
  %v1560 = vadd.f32 0.0, %v1559
  %v1561 = vpop.f32.mrf.mxu0
  %v1562 = vadd.f32 0.0, %v1561
  %1563 = vmatmul.bf16.gmra.mxu0 %v1412
  %v1564 = vpop.f32.mrf.mxu0
  %v1565 = vadd.f32 0.0, %v1564
  %v1566 = vpop.f32.mrf.mxu0
  %v1567 = vadd.f32 0.0, %v1566
  %1568 = vmatmul.bf16.gmra.mxu0 %v1415
  %v1569 = vpop.f32.mrf.mxu0
  %v1570 = vadd.f32 0.0, %v1569
  %v1571 = vpop.f32.mrf.mxu0
  %v1572 = vadd.f32 0.0, %v1571
  %1573 = vmatmul.bf16.gmra.mxu0 %v1418
  %v1574 = vpop.f32.mrf.mxu0
  %v1575 = vadd.f32 0.0, %v1574
  %v1576 = vpop.f32.mrf.mxu0
  %v1577 = vadd.f32 0.0, %v1576
  %1578 = vmatmul.bf16.gmra.mxu0 %v1421
  %v1579 = vpop.f32.mrf.mxu0
  %v1580 = vadd.f32 0.0, %v1579
  %v1581 = vpop.f32.mrf.mxu0
  %v1582 = vadd.f32 0.0, %v1581
  %1583 = vmatmul.bf16.gmra.mxu0 %v1424
  %v1584 = vpop.f32.mrf.mxu0
  %v1585 = vadd.f32 0.0, %v1584
  %v1586 = vpop.f32.mrf.mxu0
  %v1587 = vadd.f32 0.0, %v1586
  %1588 = vmatmul.bf16.gmra.mxu0 %v1427
  %v1589 = vpop.f32.mrf.mxu0
  %v1590 = vadd.f32 0.0, %v1589
  %v1591 = vpop.f32.mrf.mxu0
  %v1592 = vadd.f32 0.0, %v1591
  %1593 = vmatmul.bf16.gmra.mxu0 %v1430
  %v1594 = vpop.f32.mrf.mxu0
  %v1595 = vadd.f32 0.0, %v1594
  %v1596 = vpop.f32.mrf.mxu0
  %v1597 = vadd.f32 0.0, %v1596
  %1598 = vmatmul.bf16.gmra.mxu0 %v1433
  %v1599 = vpop.f32.mrf.mxu0
  %v1600 = vadd.f32 0.0, %v1599
  %v1601 = vpop.f32.mrf.mxu0
  %v1602 = vadd.f32 0.0, %v1601
  %1603 = vdwg.mxu0
  %1604 = vst.msk [vmem:[#allocation2] sm:$0xff] %vm1338, %v1445
  %1605 = vst.msk [vmem:[#allocation2 + $0x8] sm:$0xff] %vm1338, %v1447
  %1606 = vst.msk [vmem:[#allocation2 + $0x10] sm:$0xff] %vm1338, %v1450
  %1607 = vst.msk [vmem:[#allocation2 + $0x18] sm:$0xff] %vm1338, %v1452
  %1608 = vst.msk [vmem:[#allocation2 + $0x20] sm:$0xff] %vm1338, %v1455
  %1609 = vst.msk [vmem:[#allocation2 + $0x28] sm:$0xff] %vm1338, %v1457
  %1610 = vst.msk [vmem:[#allocation2 + $0x30] sm:$0xff] %vm1338, %v1460
  %1611 = vst.msk [vmem:[#allocation2 + $0x38] sm:$0xff] %vm1338, %v1462
  %1612 = vst.msk [vmem:[#allocation2 + $0x40] sm:$0xff] %vm1338, %v1465
  %1613 = vst.msk [vmem:[#allocation2 + $0x48] sm:$0xff] %vm1338, %v1467
  %1614 = vst.msk [vmem:[#allocation2 + $0x50] sm:$0xff] %vm1338, %v1470
  %1615 = vst.msk [vmem:[#allocation2 + $0x58] sm:$0xff] %vm1338, %v1472
  %1616 = vst.msk [vmem:[#allocation2 + $0x60] sm:$0xff] %vm1338, %v1475
  %1617 = vst.msk [vmem:[#allocation2 + $0x68] sm:$0xff] %vm1338, %v1477
  %1618 = vst.msk [vmem:[#allocation2 + $0x70] sm:$0xff] %vm1338, %v1480
  %1619 = vst.msk [vmem:[#allocation2 + $0x78] sm:$0xff] %vm1338, %v1482
  %1620 = vst.msk [vmem:[#allocation2 + $0x80] sm:$0xff] %vm1338, %v1485
  %1621 = vst.msk [vmem:[#allocation2 + $0x88] sm:$0xff] %vm1338, %v1487
  %1622 = vst.msk [vmem:[#allocation2 + $0x90] sm:$0xff] %vm1338, %v1490
  %1623 = vst.msk [vmem:[#allocation2 + $0x98] sm:$0xff] %vm1338, %v1492
  %1624 = vst.msk [vmem:[#allocation2 + $0xa0] sm:$0xff] %vm1338, %v1495
  %1625 = vst.msk [vmem:[#allocation2 + $0xa8] sm:$0xff] %vm1338, %v1497
  %1626 = vst.msk [vmem:[#allocation2 + $0xb0] sm:$0xff] %vm1338, %v1500
  %1627 = vst.msk [vmem:[#allocation2 + $0xb8] sm:$0xff] %vm1338, %v1502
  %1628 = vst.msk [vmem:[#allocation2 + $0xc0] sm:$0xff] %vm1338, %v1505
  %1629 = vst.msk [vmem:[#allocation2 + $0xc8] sm:$0xff] %vm1338, %v1507
  %1630 = vst.msk [vmem:[#allocation2 + $0xd0] sm:$0xff] %vm1338, %v1510
  %1631 = vst.msk [vmem:[#allocation2 + $0xd8] sm:$0xff] %vm1338, %v1512
  %1632 = vst.msk [vmem:[#allocation2 + $0xe0] sm:$0xff] %vm1338, %v1515
  %1633 = vst.msk [vmem:[#allocation2 + $0xe8] sm:$0xff] %vm1338, %v1517
  %1634 = vst.msk [vmem:[#allocation2 + $0xf0] sm:$0xff] %vm1338, %v1520
  %1635 = vst.msk [vmem:[#allocation2 + $0xf8] sm:$0xff] %vm1338, %v1522
  %1636 = vst.msk [vmem:[#allocation2 + $0x100] sm:$0xff] %vm1338, %v1525
  %1637 = vst.msk [vmem:[#allocation2 + $0x108] sm:$0xff] %vm1338, %v1527
  %1638 = vst.msk [vmem:[#allocation2 + $0x110] sm:$0xff] %vm1338, %v1530
  %1639 = vst.msk [vmem:[#allocation2 + $0x118] sm:$0xff] %vm1338, %v1532
  %1640 = vst.msk [vmem:[#allocation2 + $0x120] sm:$0xff] %vm1338, %v1535
  %1641 = vst.msk [vmem:[#allocation2 + $0x128] sm:$0xff] %vm1338, %v1537
  %1642 = vst.msk [vmem:[#allocation2 + $0x130] sm:$0xff] %vm1338, %v1540
  %1643 = vst.msk [vmem:[#allocation2 + $0x138] sm:$0xff] %vm1338, %v1542
  %1644 = vst.msk [vmem:[#allocation2 + $0x140] sm:$0xff] %vm1338, %v1545
  %1645 = vst.msk [vmem:[#allocation2 + $0x148] sm:$0xff] %vm1338, %v1547
  %1646 = vst.msk [vmem:[#allocation2 + $0x150] sm:$0xff] %vm1338, %v1550
  %1647 = vst.msk [vmem:[#allocation2 + $0x158] sm:$0xff] %vm1338, %v1552
  %1648 = vst.msk [vmem:[#allocation2 + $0x160] sm:$0xff] %vm1338, %v1555
  %1649 = vst.msk [vmem:[#allocation2 + $0x168] sm:$0xff] %vm1338, %v1557
  %1650 = vst.msk [vmem:[#allocation2 + $0x170] sm:$0xff] %vm1338, %v1560
  %1651 = vst.msk [vmem:[#allocation2 + $0x178] sm:$0xff] %vm1338, %v1562
  %1652 = vst.msk [vmem:[#allocation2 + $0x180] sm:$0xff] %vm1338, %v1565
  %1653 = vst.msk [vmem:[#allocation2 + $0x188] sm:$0xff] %vm1338, %v1567
  %1654 = vst.msk [vmem:[#allocation2 + $0x190] sm:$0xff] %vm1338, %v1570
  %1655 = vst.msk [vmem:[#allocation2 + $0x198] sm:$0xff] %vm1338, %v1572
  %1656 = vst.msk [vmem:[#allocation2 + $0x1a0] sm:$0xff] %vm1338, %v1575
  %1657 = vst.msk [vmem:[#allocation2 + $0x1a8] sm:$0xff] %vm1338, %v1577
  %1658 = vst.msk [vmem:[#allocation2 + $0x1b0] sm:$0xff] %vm1338, %v1580
  %1659 = vst.msk [vmem:[#allocation2 + $0x1b8] sm:$0xff] %vm1338, %v1582
  %1660 = vst.msk [vmem:[#allocation2 + $0x1c0] sm:$0xff] %vm1338, %v1585
  %1661 = vst.msk [vmem:[#allocation2 + $0x1c8] sm:$0xff] %vm1338, %v1587
  %1662 = vst.msk [vmem:[#allocation2 + $0x1d0] sm:$0xff] %vm1338, %v1590
  %1663 = vst.msk [vmem:[#allocation2 + $0x1d8] sm:$0xff] %vm1338, %v1592
  %1664 = vst.msk [vmem:[#allocation2 + $0x1e0] sm:$0xff] %vm1338, %v1595
  %1665 = vst.msk [vmem:[#allocation2 + $0x1e8] sm:$0xff] %vm1338, %v1597
  %1666 = vst.msk [vmem:[#allocation2 + $0x1f0] sm:$0xff] %vm1338, %v1600
  %1667 = vst.msk [vmem:[#allocation2 + $0x1f8] sm:$0xff] %vm1338, %v1602
  %v1668 = vld [vmem:[%s3] sm:$0xf]
  %v1669 = vld [vmem:[%s3 + $0x4] sm:$0xf]
  %v1670 = vld [vmem:[%s3 + $0x8] sm:$0xf]
  %v1671 = vld [vmem:[%s3 + $0xc] sm:$0xf]
  %v1676 = vunpack.c.l.b16 %v1668
  %v1677 = vunpack.c.l.b16 %v1669
  %v1678 = vunpack.c.l.b16 %v1670
  %v1679 = vunpack.c.l.b16 %v1671
  %v1680 = vpack.c.b16 %v1677, %v1676
  %v1681 = vpack.c.b16 %v1679, %v1678
  %v1685 = vsel %vm1338, %v1064, 0
  %v1688 = vsel %vm1338, %v1065, 0
  %v1691 = vsel %vm1338, %v1066, 0
  %v1694 = vsel %vm1338, %v1067, 0
  %v1697 = vsel %vm1338, %v1068, 0
  %v1700 = vsel %vm1338, %v1069, 0
  %v1703 = vsel %vm1338, %v1070, 0
  %v1706 = vsel %vm1338, %v1071, 0
  %v1709 = vsel %vm1338, %v1072, 0
  %v1712 = vsel %vm1338, %v1073, 0
  %v1715 = vsel %vm1338, %v1074, 0
  %v1718 = vsel %vm1338, %v1075, 0
  %v1721 = vsel %vm1338, %v1076, 0
  %v1724 = vsel %vm1338, %v1077, 0
  %v1727 = vsel %vm1338, %v1078, 0
  %v1730 = vsel %vm1338, %v1079, 0
  %v1733 = vsel %vm1338, %v1080, 0
  %v1736 = vsel %vm1338, %v1081, 0
  %v1739 = vsel %vm1338, %v1082, 0
  %v1742 = vsel %vm1338, %v1083, 0
  %v1745 = vsel %vm1338, %v1084, 0
  %v1748 = vsel %vm1338, %v1085, 0
  %v1751 = vsel %vm1338, %v1086, 0
  %v1754 = vsel %vm1338, %v1087, 0
  %v1757 = vsel %vm1338, %v1088, 0
  %v1760 = vsel %vm1338, %v1089, 0
  %v1763 = vsel %vm1338, %v1090, 0
  %v1766 = vsel %vm1338, %v1091, 0
  %v1769 = vsel %vm1338, %v1092, 0
  %v1772 = vsel %vm1338, %v1093, 0
  %v1775 = vsel %vm1338, %v1094, 0
  %v1778 = vsel %vm1338, %v1095, 0
  %1780 = vmatpush.bf16.msra.mxu0 0
  %1781 = vmatpush.bf16.msra.mxu0 0
  %1782 = vmatpush.bf16.msra.mxu0 0
  %1783 = vmatpush.bf16.msra.mxu0 0
  %1784 = vmatpush.bf16.msra.mxu0 0
  %1785 = vmatpush.bf16.msra.mxu0 0
  %1786 = vmatpush.bf16.msra.mxu0 %v1681
  %1787 = vmatpush.bf16.msra.mxu0 %v1680
  %1788 = vmatmul.bf16.gmra.mxu0 %v1685
  %v1789 = vpop.f32.mrf.mxu0
  %v1790 = vadd.f32 0.0, %v1789
  %v1791 = vpop.f32.mrf.mxu0
  %v1792 = vadd.f32 0.0, %v1791
  %1793 = vmatmul.bf16.gmra.mxu0 %v1688
  %v1794 = vpop.f32.mrf.mxu0
  %v1795 = vadd.f32 0.0, %v1794
  %v1796 = vpop.f32.mrf.mxu0
  %v1797 = vadd.f32 0.0, %v1796
  %1798 = vmatmul.bf16.gmra.mxu0 %v1691
  %v1799 = vpop.f32.mrf.mxu0
  %v1800 = vadd.f32 0.0, %v1799
  %v1801 = vpop.f32.mrf.mxu0
  %v1802 = vadd.f32 0.0, %v1801
  %1803 = vmatmul.bf16.gmra.mxu0 %v1694
  %v1804 = vpop.f32.mrf.mxu0
  %v1805 = vadd.f32 0.0, %v1804
  %v1806 = vpop.f32.mrf.mxu0
  %v1807 = vadd.f32 0.0, %v1806
  %1808 = vmatmul.bf16.gmra.mxu0 %v1697
  %v1809 = vpop.f32.mrf.mxu0
  %v1810 = vadd.f32 0.0, %v1809
  %v1811 = vpop.f32.mrf.mxu0
  %v1812 = vadd.f32 0.0, %v1811
  %1813 = vmatmul.bf16.gmra.mxu0 %v1700
  %v1814 = vpop.f32.mrf.mxu0
  %v1815 = vadd.f32 0.0, %v1814
  %v1816 = vpop.f32.mrf.mxu0
  %v1817 = vadd.f32 0.0, %v1816
  %1818 = vmatmul.bf16.gmra.mxu0 %v1703
  %v1819 = vpop.f32.mrf.mxu0
  %v1820 = vadd.f32 0.0, %v1819
  %v1821 = vpop.f32.mrf.mxu0
  %v1822 = vadd.f32 0.0, %v1821
  %1823 = vmatmul.bf16.gmra.mxu0 %v1706
  %v1824 = vpop.f32.mrf.mxu0
  %v1825 = vadd.f32 0.0, %v1824
  %v1826 = vpop.f32.mrf.mxu0
  %v1827 = vadd.f32 0.0, %v1826
  %1828 = vmatmul.bf16.gmra.mxu0 %v1709
  %v1829 = vpop.f32.mrf.mxu0
  %v1830 = vadd.f32 0.0, %v1829
  %v1831 = vpop.f32.mrf.mxu0
  %v1832 = vadd.f32 0.0, %v1831
  %1833 = vmatmul.bf16.gmra.mxu0 %v1712
  %v1834 = vpop.f32.mrf.mxu0
  %v1835 = vadd.f32 0.0, %v1834
  %v1836 = vpop.f32.mrf.mxu0
  %v1837 = vadd.f32 0.0, %v1836
  %1838 = vmatmul.bf16.gmra.mxu0 %v1715
  %v1839 = vpop.f32.mrf.mxu0
  %v1840 = vadd.f32 0.0, %v1839
  %v1841 = vpop.f32.mrf.mxu0
  %v1842 = vadd.f32 0.0, %v1841
  %1843 = vmatmul.bf16.gmra.mxu0 %v1718
  %v1844 = vpop.f32.mrf.mxu0
  %v1845 = vadd.f32 0.0, %v1844
  %v1846 = vpop.f32.mrf.mxu0
  %v1847 = vadd.f32 0.0, %v1846
  %1848 = vmatmul.bf16.gmra.mxu0 %v1721
  %v1849 = vpop.f32.mrf.mxu0
  %v1850 = vadd.f32 0.0, %v1849
  %v1851 = vpop.f32.mrf.mxu0
  %v1852 = vadd.f32 0.0, %v1851
  %1853 = vmatmul.bf16.gmra.mxu0 %v1724
  %v1854 = vpop.f32.mrf.mxu0
  %v1855 = vadd.f32 0.0, %v1854
  %v1856 = vpop.f32.mrf.mxu0
  %v1857 = vadd.f32 0.0, %v1856
  %1858 = vmatmul.bf16.gmra.mxu0 %v1727
  %v1859 = vpop.f32.mrf.mxu0
  %v1860 = vadd.f32 0.0, %v1859
  %v1861 = vpop.f32.mrf.mxu0
  %v1862 = vadd.f32 0.0, %v1861
  %1863 = vmatmul.bf16.gmra.mxu0 %v1730
  %v1864 = vpop.f32.mrf.mxu0
  %v1865 = vadd.f32 0.0, %v1864
  %v1866 = vpop.f32.mrf.mxu0
  %v1867 = vadd.f32 0.0, %v1866
  %1868 = vmatmul.bf16.gmra.mxu0 %v1733
  %v1869 = vpop.f32.mrf.mxu0
  %v1870 = vadd.f32 0.0, %v1869
  %v1871 = vpop.f32.mrf.mxu0
  %v1872 = vadd.f32 0.0, %v1871
  %1873 = vmatmul.bf16.gmra.mxu0 %v1736
  %v1874 = vpop.f32.mrf.mxu0
  %v1875 = vadd.f32 0.0, %v1874
  %v1876 = vpop.f32.mrf.mxu0
  %v1877 = vadd.f32 0.0, %v1876
  %1878 = vmatmul.bf16.gmra.mxu0 %v1739
  %v1879 = vpop.f32.mrf.mxu0
  %v1880 = vadd.f32 0.0, %v1879
  %v1881 = vpop.f32.mrf.mxu0
  %v1882 = vadd.f32 0.0, %v1881
  %1883 = vmatmul.bf16.gmra.mxu0 %v1742
  %v1884 = vpop.f32.mrf.mxu0
  %v1885 = vadd.f32 0.0, %v1884
  %v1886 = vpop.f32.mrf.mxu0
  %v1887 = vadd.f32 0.0, %v1886
  %1888 = vmatmul.bf16.gmra.mxu0 %v1745
  %v1889 = vpop.f32.mrf.mxu0
  %v1890 = vadd.f32 0.0, %v1889
  %v1891 = vpop.f32.mrf.mxu0
  %v1892 = vadd.f32 0.0, %v1891
  %1893 = vmatmul.bf16.gmra.mxu0 %v1748
  %v1894 = vpop.f32.mrf.mxu0
  %v1895 = vadd.f32 0.0, %v1894
  %v1896 = vpop.f32.mrf.mxu0
  %v1897 = vadd.f32 0.0, %v1896
  %1898 = vmatmul.bf16.gmra.mxu0 %v1751
  %v1899 = vpop.f32.mrf.mxu0
  %v1900 = vadd.f32 0.0, %v1899
  %v1901 = vpop.f32.mrf.mxu0
  %v1902 = vadd.f32 0.0, %v1901
  %1903 = vmatmul.bf16.gmra.mxu0 %v1754
  %v1904 = vpop.f32.mrf.mxu0
  %v1905 = vadd.f32 0.0, %v1904
  %v1906 = vpop.f32.mrf.mxu0
  %v1907 = vadd.f32 0.0, %v1906
  %1908 = vmatmul.bf16.gmra.mxu0 %v1757
  %v1909 = vpop.f32.mrf.mxu0
  %v1910 = vadd.f32 0.0, %v1909
  %v1911 = vpop.f32.mrf.mxu0
  %v1912 = vadd.f32 0.0, %v1911
  %1913 = vmatmul.bf16.gmra.mxu0 %v1760
  %v1914 = vpop.f32.mrf.mxu0
  %v1915 = vadd.f32 0.0, %v1914
  %v1916 = vpop.f32.mrf.mxu0
  %v1917 = vadd.f32 0.0, %v1916
  %1918 = vmatmul.bf16.gmra.mxu0 %v1763
  %v1919 = vpop.f32.mrf.mxu0
  %v1920 = vadd.f32 0.0, %v1919
  %v1921 = vpop.f32.mrf.mxu0
  %v1922 = vadd.f32 0.0, %v1921
  %1923 = vmatmul.bf16.gmra.mxu0 %v1766
  %v1924 = vpop.f32.mrf.mxu0
  %v1925 = vadd.f32 0.0, %v1924
  %v1926 = vpop.f32.mrf.mxu0
  %v1927 = vadd.f32 0.0, %v1926
  %1928 = vmatmul.bf16.gmra.mxu0 %v1769
  %v1929 = vpop.f32.mrf.mxu0
  %v1930 = vadd.f32 0.0, %v1929
  %v1931 = vpop.f32.mrf.mxu0
  %v1932 = vadd.f32 0.0, %v1931
  %1933 = vmatmul.bf16.gmra.mxu0 %v1772
  %v1934 = vpop.f32.mrf.mxu0
  %v1935 = vadd.f32 0.0, %v1934
  %v1936 = vpop.f32.mrf.mxu0
  %v1937 = vadd.f32 0.0, %v1936
  %1938 = vmatmul.bf16.gmra.mxu0 %v1775
  %v1939 = vpop.f32.mrf.mxu0
  %v1940 = vadd.f32 0.0, %v1939
  %v1941 = vpop.f32.mrf.mxu0
  %v1942 = vadd.f32 0.0, %v1941
  %1943 = vmatmul.bf16.gmra.mxu0 %v1778
  %v1944 = vpop.f32.mrf.mxu0
  %v1945 = vadd.f32 0.0, %v1944
  %v1946 = vpop.f32.mrf.mxu0
  %v1947 = vadd.f32 0.0, %v1946
  %1948 = vdwg.mxu0
  %1949 = vst.msk [vmem:[#allocation3] sm:$0xff] %vm1338, %v1790
  %1950 = vst.msk [vmem:[#allocation3 + $0x8] sm:$0xff] %vm1338, %v1792
  %1951 = vst.msk [vmem:[#allocation3 + $0x10] sm:$0xff] %vm1338, %v1795
  %1952 = vst.msk [vmem:[#allocation3 + $0x18] sm:$0xff] %vm1338, %v1797
  %1953 = vst.msk [vmem:[#allocation3 + $0x20] sm:$0xff] %vm1338, %v1800
  %1954 = vst.msk [vmem:[#allocation3 + $0x28] sm:$0xff] %vm1338, %v1802
  %1955 = vst.msk [vmem:[#allocation3 + $0x30] sm:$0xff] %vm1338, %v1805
  %1956 = vst.msk [vmem:[#allocation3 + $0x38] sm:$0xff] %vm1338, %v1807
  %1957 = vst.msk [vmem:[#allocation3 + $0x40] sm:$0xff] %vm1338, %v1810
  %1958 = vst.msk [vmem:[#allocation3 + $0x48] sm:$0xff] %vm1338, %v1812
  %1959 = vst.msk [vmem:[#allocation3 + $0x50] sm:$0xff] %vm1338, %v1815
  %1960 = vst.msk [vmem:[#allocation3 + $0x58] sm:$0xff] %vm1338, %v1817
  %1961 = vst.msk [vmem:[#allocation3 + $0x60] sm:$0xff] %vm1338, %v1820
  %1962 = vst.msk [vmem:[#allocation3 + $0x68] sm:$0xff] %vm1338, %v1822
  %1963 = vst.msk [vmem:[#allocation3 + $0x70] sm:$0xff] %vm1338, %v1825
  %1964 = vst.msk [vmem:[#allocation3 + $0x78] sm:$0xff] %vm1338, %v1827
  %1965 = vst.msk [vmem:[#allocation3 + $0x80] sm:$0xff] %vm1338, %v1830
  %1966 = vst.msk [vmem:[#allocation3 + $0x88] sm:$0xff] %vm1338, %v1832
  %1967 = vst.msk [vmem:[#allocation3 + $0x90] sm:$0xff] %vm1338, %v1835
  %1968 = vst.msk [vmem:[#allocation3 + $0x98] sm:$0xff] %vm1338, %v1837
  %1969 = vst.msk [vmem:[#allocation3 + $0xa0] sm:$0xff] %vm1338, %v1840
  %1970 = vst.msk [vmem:[#allocation3 + $0xa8] sm:$0xff] %vm1338, %v1842
  %1971 = vst.msk [vmem:[#allocation3 + $0xb0] sm:$0xff] %vm1338, %v1845
  %1972 = vst.msk [vmem:[#allocation3 + $0xb8] sm:$0xff] %vm1338, %v1847
  %1973 = vst.msk [vmem:[#allocation3 + $0xc0] sm:$0xff] %vm1338, %v1850
  %1974 = vst.msk [vmem:[#allocation3 + $0xc8] sm:$0xff] %vm1338, %v1852
  %1975 = vst.msk [vmem:[#allocation3 + $0xd0] sm:$0xff] %vm1338, %v1855
  %1976 = vst.msk [vmem:[#allocation3 + $0xd8] sm:$0xff] %vm1338, %v1857
  %1977 = vst.msk [vmem:[#allocation3 + $0xe0] sm:$0xff] %vm1338, %v1860
  %1978 = vst.msk [vmem:[#allocation3 + $0xe8] sm:$0xff] %vm1338, %v1862
  %1979 = vst.msk [vmem:[#allocation3 + $0xf0] sm:$0xff] %vm1338, %v1865
  %1980 = vst.msk [vmem:[#allocation3 + $0xf8] sm:$0xff] %vm1338, %v1867
  %1981 = vst.msk [vmem:[#allocation3 + $0x100] sm:$0xff] %vm1338, %v1870
  %1982 = vst.msk [vmem:[#allocation3 + $0x108] sm:$0xff] %vm1338, %v1872
  %1983 = vst.msk [vmem:[#allocation3 + $0x110] sm:$0xff] %vm1338, %v1875
  %1984 = vst.msk [vmem:[#allocation3 + $0x118] sm:$0xff] %vm1338, %v1877
  %1985 = vst.msk [vmem:[#allocation3 + $0x120] sm:$0xff] %vm1338, %v1880
  %1986 = vst.msk [vmem:[#allocation3 + $0x128] sm:$0xff] %vm1338, %v1882
  %1987 = vst.msk [vmem:[#allocation3 + $0x130] sm:$0xff] %vm1338, %v1885
  %1988 = vst.msk [vmem:[#allocation3 + $0x138] sm:$0xff] %vm1338, %v1887
  %1989 = vst.msk [vmem:[#allocation3 + $0x140] sm:$0xff] %vm1338, %v1890
  %1990 = vst.msk [vmem:[#allocation3 + $0x148] sm:$0xff] %vm1338, %v1892
  %1991 = vst.msk [vmem:[#allocation3 + $0x150] sm:$0xff] %vm1338, %v1895
  %1992 = vst.msk [vmem:[#allocation3 + $0x158] sm:$0xff] %vm1338, %v1897
  %1993 = vst.msk [vmem:[#allocation3 + $0x160] sm:$0xff] %vm1338, %v1900
  %1994 = vst.msk [vmem:[#allocation3 + $0x168] sm:$0xff] %vm1338, %v1902
  %1995 = vst.msk [vmem:[#allocation3 + $0x170] sm:$0xff] %vm1338, %v1905
  %1996 = vst.msk [vmem:[#allocation3 + $0x178] sm:$0xff] %vm1338, %v1907
  %1997 = vst.msk [vmem:[#allocation3 + $0x180] sm:$0xff] %vm1338, %v1910
  %1998 = vst.msk [vmem:[#allocation3 + $0x188] sm:$0xff] %vm1338, %v1912
  %1999 = vst.msk [vmem:[#allocation3 + $0x190] sm:$0xff] %vm1338, %v1915
  %2000 = vst.msk [vmem:[#allocation3 + $0x198] sm:$0xff] %vm1338, %v1917
  %2001 = vst.msk [vmem:[#allocation3 + $0x1a0] sm:$0xff] %vm1338, %v1920
  %2002 = vst.msk [vmem:[#allocation3 + $0x1a8] sm:$0xff] %vm1338, %v1922
  %2003 = vst.msk [vmem:[#allocation3 + $0x1b0] sm:$0xff] %vm1338, %v1925
  %2004 = vst.msk [vmem:[#allocation3 + $0x1b8] sm:$0xff] %vm1338, %v1927
  %2005 = vst.msk [vmem:[#allocation3 + $0x1c0] sm:$0xff] %vm1338, %v1930
  %2006 = vst.msk [vmem:[#allocation3 + $0x1c8] sm:$0xff] %vm1338, %v1932
  %2007 = vst.msk [vmem:[#allocation3 + $0x1d0] sm:$0xff] %vm1338, %v1935
  %2008 = vst.msk [vmem:[#allocation3 + $0x1d8] sm:$0xff] %vm1338, %v1937
  %2009 = vst.msk [vmem:[#allocation3 + $0x1e0] sm:$0xff] %vm1338, %v1940
  %2010 = vst.msk [vmem:[#allocation3 + $0x1e8] sm:$0xff] %vm1338, %v1942
  %2011 = vst.msk [vmem:[#allocation3 + $0x1f0] sm:$0xff] %vm1338, %v1945
  %2012 = vst.msk [vmem:[#allocation3 + $0x1f8] sm:$0xff] %vm1338, %v1947
  %v2013 = vld [vmem:[%s4] sm:$0xf]
  %v2014 = vld [vmem:[%s4 + $0x4] sm:$0xf]
  %v2015 = vld [vmem:[%s4 + $0x8] sm:$0xf]
  %v2016 = vld [vmem:[%s4 + $0xc] sm:$0xf]
  %v2021 = vunpack.c.l.b16 %v2013
  %v2022 = vunpack.c.l.b16 %v2014
  %v2023 = vunpack.c.l.b16 %v2015
  %v2024 = vunpack.c.l.b16 %v2016
  %v2025 = vpack.c.b16 %v2022, %v2021
  %v2026 = vpack.c.b16 %v2024, %v2023
  %v2030 = vsel %vm1338, %v1290, 0
  %v2033 = vsel %vm1338, %v1291, 0
  %v2036 = vsel %vm1338, %v1292, 0
  %v2039 = vsel %vm1338, %v1293, 0
  %v2042 = vsel %vm1338, %v1294, 0
  %v2045 = vsel %vm1338, %v1295, 0
  %v2048 = vsel %vm1338, %v1296, 0
  %v2051 = vsel %vm1338, %v1297, 0
  %v2054 = vsel %vm1338, %v1298, 0
  %v2057 = vsel %vm1338, %v1299, 0
  %v2060 = vsel %vm1338, %v1300, 0
  %v2063 = vsel %vm1338, %v1301, 0
  %v2066 = vsel %vm1338, %v1302, 0
  %v2069 = vsel %vm1338, %v1303, 0
  %v2072 = vsel %vm1338, %v1304, 0
  %v2075 = vsel %vm1338, %v1305, 0
  %v2078 = vsel %vm1338, %v1306, 0
  %v2081 = vsel %vm1338, %v1307, 0
  %v2084 = vsel %vm1338, %v1308, 0
  %v2087 = vsel %vm1338, %v1309, 0
  %v2090 = vsel %vm1338, %v1310, 0
  %v2093 = vsel %vm1338, %v1311, 0
  %v2096 = vsel %vm1338, %v1312, 0
  %v2099 = vsel %vm1338, %v1313, 0
  %v2102 = vsel %vm1338, %v1314, 0
  %v2105 = vsel %vm1338, %v1315, 0
  %v2108 = vsel %vm1338, %v1316, 0
  %v2111 = vsel %vm1338, %v1317, 0
  %v2114 = vsel %vm1338, %v1318, 0
  %v2117 = vsel %vm1338, %v1319, 0
  %v2120 = vsel %vm1338, %v1320, 0
  %v2123 = vsel %vm1338, %v1321, 0
  %2125 = vmatpush.bf16.msra.mxu0 0
  %2126 = vmatpush.bf16.msra.mxu0 0
  %2127 = vmatpush.bf16.msra.mxu0 0
  %2128 = vmatpush.bf16.msra.mxu0 0
  %2129 = vmatpush.bf16.msra.mxu0 0
  %2130 = vmatpush.bf16.msra.mxu0 0
  %2131 = vmatpush.bf16.msra.mxu0 %v2026
  %2132 = vmatpush.bf16.msra.mxu0 %v2025
  %2133 = vmatmul.bf16.gmra.mxu0 %v2030
  %v2134 = vpop.f32.mrf.mxu0
  %v2135 = vadd.f32 0.0, %v2134
  %v2136 = vpop.f32.mrf.mxu0
  %v2137 = vadd.f32 0.0, %v2136
  %2138 = vmatmul.bf16.gmra.mxu0 %v2033
  %v2139 = vpop.f32.mrf.mxu0
  %v2140 = vadd.f32 0.0, %v2139
  %v2141 = vpop.f32.mrf.mxu0
  %v2142 = vadd.f32 0.0, %v2141
  %2143 = vmatmul.bf16.gmra.mxu0 %v2036
  %v2144 = vpop.f32.mrf.mxu0
  %v2145 = vadd.f32 0.0, %v2144
  %v2146 = vpop.f32.mrf.mxu0
  %v2147 = vadd.f32 0.0, %v2146
  %2148 = vmatmul.bf16.gmra.mxu0 %v2039
  %v2149 = vpop.f32.mrf.mxu0
  %v2150 = vadd.f32 0.0, %v2149
  %v2151 = vpop.f32.mrf.mxu0
  %v2152 = vadd.f32 0.0, %v2151
  %2153 = vmatmul.bf16.gmra.mxu0 %v2042
  %v2154 = vpop.f32.mrf.mxu0
  %v2155 = vadd.f32 0.0, %v2154
  %v2156 = vpop.f32.mrf.mxu0
  %v2157 = vadd.f32 0.0, %v2156
  %2158 = vmatmul.bf16.gmra.mxu0 %v2045
  %v2159 = vpop.f32.mrf.mxu0
  %v2160 = vadd.f32 0.0, %v2159
  %v2161 = vpop.f32.mrf.mxu0
  %v2162 = vadd.f32 0.0, %v2161
  %2163 = vmatmul.bf16.gmra.mxu0 %v2048
  %v2164 = vpop.f32.mrf.mxu0
  %v2165 = vadd.f32 0.0, %v2164
  %v2166 = vpop.f32.mrf.mxu0
  %v2167 = vadd.f32 0.0, %v2166
  %2168 = vmatmul.bf16.gmra.mxu0 %v2051
  %v2169 = vpop.f32.mrf.mxu0
  %v2170 = vadd.f32 0.0, %v2169
  %v2171 = vpop.f32.mrf.mxu0
  %v2172 = vadd.f32 0.0, %v2171
  %2173 = vmatmul.bf16.gmra.mxu0 %v2054
  %v2174 = vpop.f32.mrf.mxu0
  %v2175 = vadd.f32 0.0, %v2174
  %v2176 = vpop.f32.mrf.mxu0
  %v2177 = vadd.f32 0.0, %v2176
  %2178 = vmatmul.bf16.gmra.mxu0 %v2057
  %v2179 = vpop.f32.mrf.mxu0
  %v2180 = vadd.f32 0.0, %v2179
  %v2181 = vpop.f32.mrf.mxu0
  %v2182 = vadd.f32 0.0, %v2181
  %2183 = vmatmul.bf16.gmra.mxu0 %v2060
  %v2184 = vpop.f32.mrf.mxu0
  %v2185 = vadd.f32 0.0, %v2184
  %v2186 = vpop.f32.mrf.mxu0
  %v2187 = vadd.f32 0.0, %v2186
  %2188 = vmatmul.bf16.gmra.mxu0 %v2063
  %v2189 = vpop.f32.mrf.mxu0
  %v2190 = vadd.f32 0.0, %v2189
  %v2191 = vpop.f32.mrf.mxu0
  %v2192 = vadd.f32 0.0, %v2191
  %2193 = vmatmul.bf16.gmra.mxu0 %v2066
  %v2194 = vpop.f32.mrf.mxu0
  %v2195 = vadd.f32 0.0, %v2194
  %v2196 = vpop.f32.mrf.mxu0
  %v2197 = vadd.f32 0.0, %v2196
  %2198 = vmatmul.bf16.gmra.mxu0 %v2069
  %v2199 = vpop.f32.mrf.mxu0
  %v2200 = vadd.f32 0.0, %v2199
  %v2201 = vpop.f32.mrf.mxu0
  %v2202 = vadd.f32 0.0, %v2201
  %2203 = vmatmul.bf16.gmra.mxu0 %v2072
  %v2204 = vpop.f32.mrf.mxu0
  %v2205 = vadd.f32 0.0, %v2204
  %v2206 = vpop.f32.mrf.mxu0
  %v2207 = vadd.f32 0.0, %v2206
  %2208 = vmatmul.bf16.gmra.mxu0 %v2075
  %v2209 = vpop.f32.mrf.mxu0
  %v2210 = vadd.f32 0.0, %v2209
  %v2211 = vpop.f32.mrf.mxu0
  %v2212 = vadd.f32 0.0, %v2211
  %2213 = vmatmul.bf16.gmra.mxu0 %v2078
  %v2214 = vpop.f32.mrf.mxu0
  %v2215 = vadd.f32 0.0, %v2214
  %v2216 = vpop.f32.mrf.mxu0
  %v2217 = vadd.f32 0.0, %v2216
  %2218 = vmatmul.bf16.gmra.mxu0 %v2081
  %v2219 = vpop.f32.mrf.mxu0
  %v2220 = vadd.f32 0.0, %v2219
  %v2221 = vpop.f32.mrf.mxu0
  %v2222 = vadd.f32 0.0, %v2221
  %2223 = vmatmul.bf16.gmra.mxu0 %v2084
  %v2224 = vpop.f32.mrf.mxu0
  %v2225 = vadd.f32 0.0, %v2224
  %v2226 = vpop.f32.mrf.mxu0
  %v2227 = vadd.f32 0.0, %v2226
  %2228 = vmatmul.bf16.gmra.mxu0 %v2087
  %v2229 = vpop.f32.mrf.mxu0
  %v2230 = vadd.f32 0.0, %v2229
  %v2231 = vpop.f32.mrf.mxu0
  %v2232 = vadd.f32 0.0, %v2231
  %2233 = vmatmul.bf16.gmra.mxu0 %v2090
  %v2234 = vpop.f32.mrf.mxu0
  %v2235 = vadd.f32 0.0, %v2234
  %v2236 = vpop.f32.mrf.mxu0
  %v2237 = vadd.f32 0.0, %v2236
  %2238 = vmatmul.bf16.gmra.mxu0 %v2093
  %v2239 = vpop.f32.mrf.mxu0
  %v2240 = vadd.f32 0.0, %v2239
  %v2241 = vpop.f32.mrf.mxu0
  %v2242 = vadd.f32 0.0, %v2241
  %2243 = vmatmul.bf16.gmra.mxu0 %v2096
  %v2244 = vpop.f32.mrf.mxu0
  %v2245 = vadd.f32 0.0, %v2244
  %v2246 = vpop.f32.mrf.mxu0
  %v2247 = vadd.f32 0.0, %v2246
  %2248 = vmatmul.bf16.gmra.mxu0 %v2099
  %v2249 = vpop.f32.mrf.mxu0
  %v2250 = vadd.f32 0.0, %v2249
  %v2251 = vpop.f32.mrf.mxu0
  %v2252 = vadd.f32 0.0, %v2251
  %2253 = vmatmul.bf16.gmra.mxu0 %v2102
  %v2254 = vpop.f32.mrf.mxu0
  %v2255 = vadd.f32 0.0, %v2254
  %v2256 = vpop.f32.mrf.mxu0
  %v2257 = vadd.f32 0.0, %v2256
  %2258 = vmatmul.bf16.gmra.mxu0 %v2105
  %v2259 = vpop.f32.mrf.mxu0
  %v2260 = vadd.f32 0.0, %v2259
  %v2261 = vpop.f32.mrf.mxu0
  %v2262 = vadd.f32 0.0, %v2261
  %2263 = vmatmul.bf16.gmra.mxu0 %v2108
  %v2264 = vpop.f32.mrf.mxu0
  %v2265 = vadd.f32 0.0, %v2264
  %v2266 = vpop.f32.mrf.mxu0
  %v2267 = vadd.f32 0.0, %v2266
  %2268 = vmatmul.bf16.gmra.mxu0 %v2111
  %v2269 = vpop.f32.mrf.mxu0
  %v2270 = vadd.f32 0.0, %v2269
  %v2271 = vpop.f32.mrf.mxu0
  %v2272 = vadd.f32 0.0, %v2271
  %2273 = vmatmul.bf16.gmra.mxu0 %v2114
  %v2274 = vpop.f32.mrf.mxu0
  %v2275 = vadd.f32 0.0, %v2274
  %v2276 = vpop.f32.mrf.mxu0
  %v2277 = vadd.f32 0.0, %v2276
  %2278 = vmatmul.bf16.gmra.mxu0 %v2117
  %v2279 = vpop.f32.mrf.mxu0
  %v2280 = vadd.f32 0.0, %v2279
  %v2281 = vpop.f32.mrf.mxu0
  %v2282 = vadd.f32 0.0, %v2281
  %2283 = vmatmul.bf16.gmra.mxu0 %v2120
  %v2284 = vpop.f32.mrf.mxu0
  %v2285 = vadd.f32 0.0, %v2284
  %v2286 = vpop.f32.mrf.mxu0
  %v2287 = vadd.f32 0.0, %v2286
  %2288 = vmatmul.bf16.gmra.mxu0 %v2123
  %v2289 = vpop.f32.mrf.mxu0
  %v2290 = vadd.f32 0.0, %v2289
  %v2291 = vpop.f32.mrf.mxu0
  %v2292 = vadd.f32 0.0, %v2291
  %2293 = vdwg.mxu0
  %v2294 = vsub.f32 0.0, %v2135
  %v2295 = vsub.f32 0.0, %v2137
  %v2296 = vsub.f32 0.0, %v2140
  %v2297 = vsub.f32 0.0, %v2142
  %v2298 = vsub.f32 0.0, %v2145
  %v2299 = vsub.f32 0.0, %v2147
  %v2300 = vsub.f32 0.0, %v2150
  %v2301 = vsub.f32 0.0, %v2152
  %v2302 = vsub.f32 0.0, %v2155
  %v2303 = vsub.f32 0.0, %v2157
  %v2304 = vsub.f32 0.0, %v2160
  %v2305 = vsub.f32 0.0, %v2162
  %v2306 = vsub.f32 0.0, %v2165
  %v2307 = vsub.f32 0.0, %v2167
  %v2308 = vsub.f32 0.0, %v2170
  %v2309 = vsub.f32 0.0, %v2172
  %v2310 = vsub.f32 0.0, %v2175
  %v2311 = vsub.f32 0.0, %v2177
  %v2312 = vsub.f32 0.0, %v2180
  %v2313 = vsub.f32 0.0, %v2182
  %v2314 = vsub.f32 0.0, %v2185
  %v2315 = vsub.f32 0.0, %v2187
  %v2316 = vsub.f32 0.0, %v2190
  %v2317 = vsub.f32 0.0, %v2192
  %v2318 = vsub.f32 0.0, %v2195
  %v2319 = vsub.f32 0.0, %v2197
  %v2320 = vsub.f32 0.0, %v2200
  %v2321 = vsub.f32 0.0, %v2202
  %v2322 = vsub.f32 0.0, %v2205
  %v2323 = vsub.f32 0.0, %v2207
  %v2324 = vsub.f32 0.0, %v2210
  %v2325 = vsub.f32 0.0, %v2212
  %v2326 = vsub.f32 0.0, %v2215
  %v2327 = vsub.f32 0.0, %v2217
  %v2328 = vsub.f32 0.0, %v2220
  %v2329 = vsub.f32 0.0, %v2222
  %v2330 = vsub.f32 0.0, %v2225
  %v2331 = vsub.f32 0.0, %v2227
  %v2332 = vsub.f32 0.0, %v2230
  %v2333 = vsub.f32 0.0, %v2232
  %v2334 = vsub.f32 0.0, %v2235
  %v2335 = vsub.f32 0.0, %v2237
  %v2336 = vsub.f32 0.0, %v2240
  %v2337 = vsub.f32 0.0, %v2242
  %v2338 = vsub.f32 0.0, %v2245
  %v2339 = vsub.f32 0.0, %v2247
  %v2340 = vsub.f32 0.0, %v2250
  %v2341 = vsub.f32 0.0, %v2252
  %v2342 = vsub.f32 0.0, %v2255
  %v2343 = vsub.f32 0.0, %v2257
  %v2344 = vsub.f32 0.0, %v2260
  %v2345 = vsub.f32 0.0, %v2262
  %v2346 = vsub.f32 0.0, %v2265
  %v2347 = vsub.f32 0.0, %v2267
  %v2348 = vsub.f32 0.0, %v2270
  %v2349 = vsub.f32 0.0, %v2272
  %v2350 = vsub.f32 0.0, %v2275
  %v2351 = vsub.f32 0.0, %v2277
  %v2352 = vsub.f32 0.0, %v2280
  %v2353 = vsub.f32 0.0, %v2282
  %v2354 = vsub.f32 0.0, %v2285
  %v2355 = vsub.f32 0.0, %v2287
  %v2356 = vsub.f32 0.0, %v2290
  %v2357 = vsub.f32 0.0, %v2292
  %v2358 = vmul.f32 %v2294, 1.442695
  %v2359 = vpow.pop %v2358
  %v2360 = vmul.f32 %v2295, 1.442695
  %v2361 = vpow.pop %v2360
  %v2362 = vmul.f32 %v2296, 1.442695
  %v2363 = vpow.pop %v2362
  %v2364 = vmul.f32 %v2297, 1.442695
  %v2365 = vpow.pop %v2364
  %v2366 = vmul.f32 %v2298, 1.442695
  %v2367 = vpow.pop %v2366
  %v2368 = vmul.f32 %v2299, 1.442695
  %v2369 = vpow.pop %v2368
  %v2370 = vmul.f32 %v2300, 1.442695
  %v2371 = vpow.pop %v2370
  %v2372 = vmul.f32 %v2301, 1.442695
  %v2373 = vpow.pop %v2372
  %v2374 = vmul.f32 %v2302, 1.442695
  %v2375 = vpow.pop %v2374
  %v2376 = vmul.f32 %v2303, 1.442695
  %v2377 = vpow.pop %v2376
  %v2378 = vmul.f32 %v2304, 1.442695
  %v2379 = vpow.pop %v2378
  %v2380 = vmul.f32 %v2305, 1.442695
  %v2381 = vpow.pop %v2380
  %v2382 = vmul.f32 %v2306, 1.442695
  %v2383 = vpow.pop %v2382
  %v2384 = vmul.f32 %v2307, 1.442695
  %v2385 = vpow.pop %v2384
  %v2386 = vmul.f32 %v2308, 1.442695
  %v2387 = vpow.pop %v2386
  %v2388 = vmul.f32 %v2309, 1.442695
  %v2389 = vpow.pop %v2388
  %v2390 = vmul.f32 %v2310, 1.442695
  %v2391 = vpow.pop %v2390
  %v2392 = vmul.f32 %v2311, 1.442695
  %v2393 = vpow.pop %v2392
  %v2394 = vmul.f32 %v2312, 1.442695
  %v2395 = vpow.pop %v2394
  %v2396 = vmul.f32 %v2313, 1.442695
  %v2397 = vpow.pop %v2396
  %v2398 = vmul.f32 %v2314, 1.442695
  %v2399 = vpow.pop %v2398
  %v2400 = vmul.f32 %v2315, 1.442695
  %v2401 = vpow.pop %v2400
  %v2402 = vmul.f32 %v2316, 1.442695
  %v2403 = vpow.pop %v2402
  %v2404 = vmul.f32 %v2317, 1.442695
  %v2405 = vpow.pop %v2404
  %v2406 = vmul.f32 %v2318, 1.442695
  %v2407 = vpow.pop %v2406
  %v2408 = vmul.f32 %v2319, 1.442695
  %v2409 = vpow.pop %v2408
  %v2410 = vmul.f32 %v2320, 1.442695
  %v2411 = vpow.pop %v2410
  %v2412 = vmul.f32 %v2321, 1.442695
  %v2413 = vpow.pop %v2412
  %v2414 = vmul.f32 %v2322, 1.442695
  %v2415 = vpow.pop %v2414
  %v2416 = vmul.f32 %v2323, 1.442695
  %v2417 = vpow.pop %v2416
  %v2418 = vmul.f32 %v2324, 1.442695
  %v2419 = vpow.pop %v2418
  %v2420 = vmul.f32 %v2325, 1.442695
  %v2421 = vpow.pop %v2420
  %v2422 = vmul.f32 %v2326, 1.442695
  %v2423 = vpow.pop %v2422
  %v2424 = vmul.f32 %v2327, 1.442695
  %v2425 = vpow.pop %v2424
  %v2426 = vmul.f32 %v2328, 1.442695
  %v2427 = vpow.pop %v2426
  %v2428 = vmul.f32 %v2329, 1.442695
  %v2429 = vpow.pop %v2428
  %v2430 = vmul.f32 %v2330, 1.442695
  %v2431 = vpow.pop %v2430
  %v2432 = vmul.f32 %v2331, 1.442695
  %v2433 = vpow.pop %v2432
  %v2434 = vmul.f32 %v2332, 1.442695
  %v2435 = vpow.pop %v2434
  %v2436 = vmul.f32 %v2333, 1.442695
  %v2437 = vpow.pop %v2436
  %v2438 = vmul.f32 %v2334, 1.442695
  %v2439 = vpow.pop %v2438
  %v2440 = vmul.f32 %v2335, 1.442695
  %v2441 = vpow.pop %v2440
  %v2442 = vmul.f32 %v2336, 1.442695
  %v2443 = vpow.pop %v2442
  %v2444 = vmul.f32 %v2337, 1.442695
  %v2445 = vpow.pop %v2444
  %v2446 = vmul.f32 %v2338, 1.442695
  %v2447 = vpow.pop %v2446
  %v2448 = vmul.f32 %v2339, 1.442695
  %v2449 = vpow.pop %v2448
  %v2450 = vmul.f32 %v2340, 1.442695
  %v2451 = vpow.pop %v2450
  %v2452 = vmul.f32 %v2341, 1.442695
  %v2453 = vpow.pop %v2452
  %v2454 = vmul.f32 %v2342, 1.442695
  %v2455 = vpow.pop %v2454
  %v2456 = vmul.f32 %v2343, 1.442695
  %v2457 = vpow.pop %v2456
  %v2458 = vmul.f32 %v2344, 1.442695
  %v2459 = vpow.pop %v2458
  %v2460 = vmul.f32 %v2345, 1.442695
  %v2461 = vpow.pop %v2460
  %v2462 = vmul.f32 %v2346, 1.442695
  %v2463 = vpow.pop %v2462
  %v2464 = vmul.f32 %v2347, 1.442695
  %v2465 = vpow.pop %v2464
  %v2466 = vmul.f32 %v2348, 1.442695
  %v2467 = vpow.pop %v2466
  %v2468 = vmul.f32 %v2349, 1.442695
  %v2469 = vpow.pop %v2468
  %v2470 = vmul.f32 %v2350, 1.442695
  %v2471 = vpow.pop %v2470
  %v2472 = vmul.f32 %v2351, 1.442695
  %v2473 = vpow.pop %v2472
  %v2474 = vmul.f32 %v2352, 1.442695
  %v2475 = vpow.pop %v2474
  %v2476 = vmul.f32 %v2353, 1.442695
  %v2477 = vpow.pop %v2476
  %v2478 = vmul.f32 %v2354, 1.442695
  %v2479 = vpow.pop %v2478
  %v2480 = vmul.f32 %v2355, 1.442695
  %v2481 = vpow.pop %v2480
  %v2482 = vmul.f32 %v2356, 1.442695
  %v2483 = vpow.pop %v2482
  %v2484 = vmul.f32 %v2357, 1.442695
  %v2485 = vpow.pop %v2484
  %v2486 = vadd.f32 %v2359, 1.0
  %v2487 = vadd.f32 %v2361, 1.0
  %v2488 = vadd.f32 %v2363, 1.0
  %v2489 = vadd.f32 %v2365, 1.0
  %v2490 = vadd.f32 %v2367, 1.0
  %v2491 = vadd.f32 %v2369, 1.0
  %v2492 = vadd.f32 %v2371, 1.0
  %v2493 = vadd.f32 %v2373, 1.0
  %v2494 = vadd.f32 %v2375, 1.0
  %v2495 = vadd.f32 %v2377, 1.0
  %v2496 = vadd.f32 %v2379, 1.0
  %v2497 = vadd.f32 %v2381, 1.0
  %v2498 = vadd.f32 %v2383, 1.0
  %v2499 = vadd.f32 %v2385, 1.0
  %v2500 = vadd.f32 %v2387, 1.0
  %v2501 = vadd.f32 %v2389, 1.0
  %v2502 = vadd.f32 %v2391, 1.0
  %v2503 = vadd.f32 %v2393, 1.0
  %v2504 = vadd.f32 %v2395, 1.0
  %v2505 = vadd.f32 %v2397, 1.0
  %v2506 = vadd.f32 %v2399, 1.0
  %v2507 = vadd.f32 %v2401, 1.0
  %v2508 = vadd.f32 %v2403, 1.0
  %v2509 = vadd.f32 %v2405, 1.0
  %v2510 = vadd.f32 %v2407, 1.0
  %v2511 = vadd.f32 %v2409, 1.0
  %v2512 = vadd.f32 %v2411, 1.0
  %v2513 = vadd.f32 %v2413, 1.0
  %v2514 = vadd.f32 %v2415, 1.0
  %v2515 = vadd.f32 %v2417, 1.0
  %v2516 = vadd.f32 %v2419, 1.0
  %v2517 = vadd.f32 %v2421, 1.0
  %v2518 = vadd.f32 %v2423, 1.0
  %v2519 = vadd.f32 %v2425, 1.0
  %v2520 = vadd.f32 %v2427, 1.0
  %v2521 = vadd.f32 %v2429, 1.0
  %v2522 = vadd.f32 %v2431, 1.0
  %v2523 = vadd.f32 %v2433, 1.0
  %v2524 = vadd.f32 %v2435, 1.0
  %v2525 = vadd.f32 %v2437, 1.0
  %v2526 = vadd.f32 %v2439, 1.0
  %v2527 = vadd.f32 %v2441, 1.0
  %v2528 = vadd.f32 %v2443, 1.0
  %v2529 = vadd.f32 %v2445, 1.0
  %v2530 = vadd.f32 %v2447, 1.0
  %v2531 = vadd.f32 %v2449, 1.0
  %v2532 = vadd.f32 %v2451, 1.0
  %v2533 = vadd.f32 %v2453, 1.0
  %v2534 = vadd.f32 %v2455, 1.0
  %v2535 = vadd.f32 %v2457, 1.0
  %v2536 = vadd.f32 %v2459, 1.0
  %v2537 = vadd.f32 %v2461, 1.0
  %v2538 = vadd.f32 %v2463, 1.0
  %v2539 = vadd.f32 %v2465, 1.0
  %v2540 = vadd.f32 %v2467, 1.0
  %v2541 = vadd.f32 %v2469, 1.0
  %v2542 = vadd.f32 %v2471, 1.0
  %v2543 = vadd.f32 %v2473, 1.0
  %v2544 = vadd.f32 %v2475, 1.0
  %v2545 = vadd.f32 %v2477, 1.0
  %v2546 = vadd.f32 %v2479, 1.0
  %v2547 = vadd.f32 %v2481, 1.0
  %v2548 = vadd.f32 %v2483, 1.0
  %v2549 = vadd.f32 %v2485, 1.0
  %v2550 = vrcp.pop %v2486
  %v2551 = vrcp.pop %v2487
  %v2552 = vrcp.pop %v2488
  %v2553 = vrcp.pop %v2489
  %v2554 = vrcp.pop %v2490
  %v2555 = vrcp.pop %v2491
  %v2556 = vrcp.pop %v2492
  %v2557 = vrcp.pop %v2493
  %v2558 = vrcp.pop %v2494
  %v2559 = vrcp.pop %v2495
  %v2560 = vrcp.pop %v2496
  %v2561 = vrcp.pop %v2497
  %v2562 = vrcp.pop %v2498
  %v2563 = vrcp.pop %v2499
  %v2564 = vrcp.pop %v2500
  %v2565 = vrcp.pop %v2501
  %v2566 = vrcp.pop %v2502
  %v2567 = vrcp.pop %v2503
  %v2568 = vrcp.pop %v2504
  %v2569 = vrcp.pop %v2505
  %v2570 = vrcp.pop %v2506
  %v2571 = vrcp.pop %v2507
  %v2572 = vrcp.pop %v2508
  %v2573 = vrcp.pop %v2509
  %v2574 = vrcp.pop %v2510
  %v2575 = vrcp.pop %v2511
  %v2576 = vrcp.pop %v2512
  %v2577 = vrcp.pop %v2513
  %v2578 = vrcp.pop %v2514
  %v2579 = vrcp.pop %v2515
  %v2580 = vrcp.pop %v2516
  %v2581 = vrcp.pop %v2517
  %v2582 = vrcp.pop %v2518
  %v2583 = vrcp.pop %v2519
  %v2584 = vrcp.pop %v2520
  %v2585 = vrcp.pop %v2521
  %v2586 = vrcp.pop %v2522
  %v2587 = vrcp.pop %v2523
  %v2588 = vrcp.pop %v2524
  %v2589 = vrcp.pop %v2525
  %v2590 = vrcp.pop %v2526
  %v2591 = vrcp.pop %v2527
  %v2592 = vrcp.pop %v2528
  %v2593 = vrcp.pop %v2529
  %v2594 = vrcp.pop %v2530
  %v2595 = vrcp.pop %v2531
  %v2596 = vrcp.pop %v2532
  %v2597 = vrcp.pop %v2533
  %v2598 = vrcp.pop %v2534
  %v2599 = vrcp.pop %v2535
  %v2600 = vrcp.pop %v2536
  %v2601 = vrcp.pop %v2537
  %v2602 = vrcp.pop %v2538
  %v2603 = vrcp.pop %v2539
  %v2604 = vrcp.pop %v2540
  %v2605 = vrcp.pop %v2541
  %v2606 = vrcp.pop %v2542
  %v2607 = vrcp.pop %v2543
  %v2608 = vrcp.pop %v2544
  %v2609 = vrcp.pop %v2545
  %v2610 = vrcp.pop %v2546
  %v2611 = vrcp.pop %v2547
  %v2612 = vrcp.pop %v2548
  %v2613 = vrcp.pop %v2549
  loop: start=0, step=1, limit=64
  $region26: #{tpu_custom_call.1} parent=0 // loop_pre_header
    _
  $region27: #{tpu_custom_call.1} parent=0 // loop_header
    %s2615 = sphi 0, %s2619
    %p2616 = scmp.ge.s32.totalorder %s2615, 64
    %v2620 = vphi 0.0, %v2657
    %v2621 = vphi 0.0, %v2659
    %v2622 = vphi -1e+38, %v2648
  $region28: #{tpu_custom_call.1} parent=0 // loop_header_branch
    %2618 = sbr.rel (%p2616) target = $region32
  $region29: #{tpu_custom_call.1} parent=0 // loop_body
    %s2623 = smul.u32 %s2615, 8
    %s2624 = scalar_lea.vmem [#allocation2], %s2623
    %v2625 = vld [vmem:[%s2624] sm:$0xff]
    %s2626 = scalar_lea.vmem [#allocation3], %s2623
    %v2627 = vld [vmem:[%s2626] sm:$0xff]
    %v2628 = vperm.slane %v88, 4
    %v2629 = vadd.f32 %v2628, %v2625
    %v2630 = vmax.f32 %v2622, %v2629
    %v2631 = vsub.f32 %v2622, %v2630
    %v2632 = vmul.f32 %v2631, 1.442695
    %v2633 = vpow.pop %v2632
    %v2634 = vsub.f32 %v2629, %v2630
    %v2635 = vmul.f32 %v2634, 1.442695
    %v2636 = vpow.pop %v2635
    %v2637 = vmul.f32 %v2633, %v2620
    %v2638 = vmul.f32 %v2636, %v2627
    %v2639 = vadd.f32 %v2637, %v2638
    %v2640 = vmul.f32 %v2633, %v2621
    %v2641 = vadd.f32 %v2640, %v2636
    %v2642 = vrcp.pop %v2641
    %v2643 = vmul.f32 %v2639, %v2642
    %s2644 = scalar_lea.vmem [#allocation4], %s2623
    %2645 = vst.msk [vmem:[%s2644] sm:$0xff] %vm1338, %v2643
    %v2646 = vperm.slane %v88, 3
    %v2647 = vadd.f32 %v2646, %v2622
    %v2648 = vmax.f32 %v2647, %v2625
    %v2649 = vsub.f32 %v2647, %v2648
    %v2650 = vmul.f32 %v2649, 1.442695
    %v2651 = vpow.pop %v2650
    %v2652 = vsub.f32 %v2625, %v2648
    %v2653 = vmul.f32 %v2652, 1.442695
    %v2654 = vpow.pop %v2653
    %v2655 = vmul.f32 %v2651, %v2620
    %v2656 = vmul.f32 %v2654, %v2627
    %v2657 = vadd.f32 %v2655, %v2656
    %v2658 = vmul.f32 %v2651, %v2621
    %v2659 = vadd.f32 %v2658, %v2654
  $region30: #{tpu_custom_call.1} parent=0 // loop_footer
    %s2619 = sadd.s32 1, %s2615
  $region31: #{tpu_custom_call.1} parent=0 // loop_footer_branch
    %2614 = sbr.rel target = $region27
  $region32: #{tpu_custom_call.1} parent=0 // loop_exit
    _
  %v2660 = vld [vmem:[#allocation4] sm:$0xff]
  %v2661 = vld [vmem:[#allocation4 + $0x8] sm:$0xff]
  %v2662 = vld [vmem:[#allocation4 + $0x10] sm:$0xff]
  %v2663 = vld [vmem:[#allocation4 + $0x18] sm:$0xff]
  %v2664 = vld [vmem:[#allocation4 + $0x20] sm:$0xff]
  %v2665 = vld [vmem:[#allocation4 + $0x28] sm:$0xff]
  %v2666 = vld [vmem:[#allocation4 + $0x30] sm:$0xff]
  %v2667 = vld [vmem:[#allocation4 + $0x38] sm:$0xff]
  %v2668 = vld [vmem:[#allocation4 + $0x40] sm:$0xff]
  %v2669 = vld [vmem:[#allocation4 + $0x48] sm:$0xff]
  %v2670 = vld [vmem:[#allocation4 + $0x50] sm:$0xff]
  %v2671 = vld [vmem:[#allocation4 + $0x58] sm:$0xff]
  %v2672 = vld [vmem:[#allocation4 + $0x60] sm:$0xff]
  %v2673 = vld [vmem:[#allocation4 + $0x68] sm:$0xff]
  %v2674 = vld [vmem:[#allocation4 + $0x70] sm:$0xff]
  %v2675 = vld [vmem:[#allocation4 + $0x78] sm:$0xff]
  %v2676 = vld [vmem:[#allocation4 + $0x80] sm:$0xff]
  %v2677 = vld [vmem:[#allocation4 + $0x88] sm:$0xff]
  %v2678 = vld [vmem:[#allocation4 + $0x90] sm:$0xff]
  %v2679 = vld [vmem:[#allocation4 + $0x98] sm:$0xff]
  %v2680 = vld [vmem:[#allocation4 + $0xa0] sm:$0xff]
  %v2681 = vld [vmem:[#allocation4 + $0xa8] sm:$0xff]
  %v2682 = vld [vmem:[#allocation4 + $0xb0] sm:$0xff]
  %v2683 = vld [vmem:[#allocation4 + $0xb8] sm:$0xff]
  %v2684 = vld [vmem:[#allocation4 + $0xc0] sm:$0xff]
  %v2685 = vld [vmem:[#allocation4 + $0xc8] sm:$0xff]
  %v2686 = vld [vmem:[#allocation4 + $0xd0] sm:$0xff]
  %v2687 = vld [vmem:[#allocation4 + $0xd8] sm:$0xff]
  %v2688 = vld [vmem:[#allocation4 + $0xe0] sm:$0xff]
  %v2689 = vld [vmem:[#allocation4 + $0xe8] sm:$0xff]
  %v2690 = vld [vmem:[#allocation4 + $0xf0] sm:$0xff]
  %v2691 = vld [vmem:[#allocation4 + $0xf8] sm:$0xff]
  %v2692 = vld [vmem:[#allocation4 + $0x100] sm:$0xff]
  %v2693 = vld [vmem:[#allocation4 + $0x108] sm:$0xff]
  %v2694 = vld [vmem:[#allocation4 + $0x110] sm:$0xff]
  %v2695 = vld [vmem:[#allocation4 + $0x118] sm:$0xff]
  %v2696 = vld [vmem:[#allocation4 + $0x120] sm:$0xff]
  %v2697 = vld [vmem:[#allocation4 + $0x128] sm:$0xff]
  %v2698 = vld [vmem:[#allocation4 + $0x130] sm:$0xff]
  %v2699 = vld [vmem:[#allocation4 + $0x138] sm:$0xff]
  %v2700 = vld [vmem:[#allocation4 + $0x140] sm:$0xff]
  %v2701 = vld [vmem:[#allocation4 + $0x148] sm:$0xff]
  %v2702 = vld [vmem:[#allocation4 + $0x150] sm:$0xff]
  %v2703 = vld [vmem:[#allocation4 + $0x158] sm:$0xff]
  %v2704 = vld [vmem:[#allocation4 + $0x160] sm:$0xff]
  %v2705 = vld [vmem:[#allocation4 + $0x168] sm:$0xff]
  %v2706 = vld [vmem:[#allocation4 + $0x170] sm:$0xff]
  %v2707 = vld [vmem:[#allocation4 + $0x178] sm:$0xff]
  %v2708 = vld [vmem:[#allocation4 + $0x180] sm:$0xff]
  %v2709 = vld [vmem:[#allocation4 + $0x188] sm:$0xff]
  %v2710 = vld [vmem:[#allocation4 + $0x190] sm:$0xff]
  %v2711 = vld [vmem:[#allocation4 + $0x198] sm:$0xff]
  %v2712 = vld [vmem:[#allocation4 + $0x1a0] sm:$0xff]
  %v2713 = vld [vmem:[#allocation4 + $0x1a8] sm:$0xff]
  %v2714 = vld [vmem:[#allocation4 + $0x1b0] sm:$0xff]
  %v2715 = vld [vmem:[#allocation4 + $0x1b8] sm:$0xff]
  %v2716 = vld [vmem:[#allocation4 + $0x1c0] sm:$0xff]
  %v2717 = vld [vmem:[#allocation4 + $0x1c8] sm:$0xff]
  %v2718 = vld [vmem:[#allocation4 + $0x1d0] sm:$0xff]
  %v2719 = vld [vmem:[#allocation4 + $0x1d8] sm:$0xff]
  %v2720 = vld [vmem:[#allocation4 + $0x1e0] sm:$0xff]
  %v2721 = vld [vmem:[#allocation4 + $0x1e8] sm:$0xff]
  %v2722 = vld [vmem:[#allocation4 + $0x1f0] sm:$0xff]
  %v2723 = vld [vmem:[#allocation4 + $0x1f8] sm:$0xff]
  %v2724 = vmul.f32 %v2550, %v2660
  %v2725 = vmul.f32 %v2551, %v2661
  %v2726 = vmul.f32 %v2552, %v2662
  %v2727 = vmul.f32 %v2553, %v2663
  %v2728 = vmul.f32 %v2554, %v2664
  %v2729 = vmul.f32 %v2555, %v2665
  %v2730 = vmul.f32 %v2556, %v2666
  %v2731 = vmul.f32 %v2557, %v2667
  %v2732 = vmul.f32 %v2558, %v2668
  %v2733 = vmul.f32 %v2559, %v2669
  %v2734 = vmul.f32 %v2560, %v2670
  %v2735 = vmul.f32 %v2561, %v2671
  %v2736 = vmul.f32 %v2562, %v2672
  %v2737 = vmul.f32 %v2563, %v2673
  %v2738 = vmul.f32 %v2564, %v2674
  %v2739 = vmul.f32 %v2565, %v2675
  %v2740 = vmul.f32 %v2566, %v2676
  %v2741 = vmul.f32 %v2567, %v2677
  %v2742 = vmul.f32 %v2568, %v2678
  %v2743 = vmul.f32 %v2569, %v2679
  %v2744 = vmul.f32 %v2570, %v2680
  %v2745 = vmul.f32 %v2571, %v2681
  %v2746 = vmul.f32 %v2572, %v2682
  %v2747 = vmul.f32 %v2573, %v2683
  %v2748 = vmul.f32 %v2574, %v2684
  %v2749 = vmul.f32 %v2575, %v2685
  %v2750 = vmul.f32 %v2576, %v2686
  %v2751 = vmul.f32 %v2577, %v2687
  %v2752 = vmul.f32 %v2578, %v2688
  %v2753 = vmul.f32 %v2579, %v2689
  %v2754 = vmul.f32 %v2580, %v2690
  %v2755 = vmul.f32 %v2581, %v2691
  %v2756 = vmul.f32 %v2582, %v2692
  %v2757 = vmul.f32 %v2583, %v2693
  %v2758 = vmul.f32 %v2584, %v2694
  %v2759 = vmul.f32 %v2585, %v2695
  %v2760 = vmul.f32 %v2586, %v2696
  %v2761 = vmul.f32 %v2587, %v2697
  %v2762 = vmul.f32 %v2588, %v2698
  %v2763 = vmul.f32 %v2589, %v2699
  %v2764 = vmul.f32 %v2590, %v2700
  %v2765 = vmul.f32 %v2591, %v2701
  %v2766 = vmul.f32 %v2592, %v2702
  %v2767 = vmul.f32 %v2593, %v2703
  %v2768 = vmul.f32 %v2594, %v2704
  %v2769 = vmul.f32 %v2595, %v2705
  %v2770 = vmul.f32 %v2596, %v2706
  %v2771 = vmul.f32 %v2597, %v2707
  %v2772 = vmul.f32 %v2598, %v2708
  %v2773 = vmul.f32 %v2599, %v2709
  %v2774 = vmul.f32 %v2600, %v2710
  %v2775 = vmul.f32 %v2601, %v2711
  %v2776 = vmul.f32 %v2602, %v2712
  %v2777 = vmul.f32 %v2603, %v2713
  %v2778 = vmul.f32 %v2604, %v2714
  %v2779 = vmul.f32 %v2605, %v2715
  %v2780 = vmul.f32 %v2606, %v2716
  %v2781 = vmul.f32 %v2607, %v2717
  %v2782 = vmul.f32 %v2608, %v2718
  %v2783 = vmul.f32 %v2609, %v2719
  %v2784 = vmul.f32 %v2610, %v2720
  %v2785 = vmul.f32 %v2611, %v2721
  %v2786 = vmul.f32 %v2612, %v2722
  %v2787 = vmul.f32 %v2613, %v2723
  %v2788 = vpack.c.bf16 %v2725, %v2724
  %v2789 = vpack.c.bf16 %v2727, %v2726
  %v2790 = vpack.c.bf16 %v2729, %v2728
  %v2791 = vpack.c.bf16 %v2731, %v2730
  %v2792 = vpack.c.bf16 %v2733, %v2732
  %v2793 = vpack.c.bf16 %v2735, %v2734
  %v2794 = vpack.c.bf16 %v2737, %v2736
  %v2795 = vpack.c.bf16 %v2739, %v2738
  %v2796 = vpack.c.bf16 %v2741, %v2740
  %v2797 = vpack.c.bf16 %v2743, %v2742
  %v2798 = vpack.c.bf16 %v2745, %v2744
  %v2799 = vpack.c.bf16 %v2747, %v2746
  %v2800 = vpack.c.bf16 %v2749, %v2748
  %v2801 = vpack.c.bf16 %v2751, %v2750
  %v2802 = vpack.c.bf16 %v2753, %v2752
  %v2803 = vpack.c.bf16 %v2755, %v2754
  %v2804 = vpack.c.bf16 %v2757, %v2756
  %v2805 = vpack.c.bf16 %v2759, %v2758
  %v2806 = vpack.c.bf16 %v2761, %v2760
  %v2807 = vpack.c.bf16 %v2763, %v2762
  %v2808 = vpack.c.bf16 %v2765, %v2764
  %v2809 = vpack.c.bf16 %v2767, %v2766
  %v2810 = vpack.c.bf16 %v2769, %v2768
  %v2811 = vpack.c.bf16 %v2771, %v2770
  %v2812 = vpack.c.bf16 %v2773, %v2772
  %v2813 = vpack.c.bf16 %v2775, %v2774
  %v2814 = vpack.c.bf16 %v2777, %v2776
  %v2815 = vpack.c.bf16 %v2779, %v2778
  %v2816 = vpack.c.bf16 %v2781, %v2780
  %v2817 = vpack.c.bf16 %v2783, %v2782
  %v2818 = vpack.c.bf16 %v2785, %v2784
  %v2819 = vpack.c.bf16 %v2787, %v2786
  %v2820 = vld [vmem:[%s5] sm:$0xf]
  %v2821 = vld [vmem:[%s5 + $0x4] sm:$0xf]
  %v2822 = vld [vmem:[%s5 + $0x8] sm:$0xf]
  %v2823 = vld [vmem:[%s5 + $0xc] sm:$0xf]
  %v2828 = vunpack.c.l.b16 %v2820
  %v2829 = vunpack.c.l.b16 %v2821
  %v2830 = vunpack.c.l.b16 %v2822
  %v2831 = vunpack.c.l.b16 %v2823
  %v2832 = vpack.c.b16 %v2829, %v2828
  %v2833 = vpack.c.b16 %v2831, %v2830
  %v2837 = vsel %vm1338, %v2788, 0
  %v2840 = vsel %vm1338, %v2789, 0
  %v2843 = vsel %vm1338, %v2790, 0
  %v2846 = vsel %vm1338, %v2791, 0
  %v2849 = vsel %vm1338, %v2792, 0
  %v2852 = vsel %vm1338, %v2793, 0
  %v2855 = vsel %vm1338, %v2794, 0
  %v2858 = vsel %vm1338, %v2795, 0
  %v2861 = vsel %vm1338, %v2796, 0
  %v2864 = vsel %vm1338, %v2797, 0
  %v2867 = vsel %vm1338, %v2798, 0
  %v2870 = vsel %vm1338, %v2799, 0
  %v2873 = vsel %vm1338, %v2800, 0
  %v2876 = vsel %vm1338, %v2801, 0
  %v2879 = vsel %vm1338, %v2802, 0
  %v2882 = vsel %vm1338, %v2803, 0
  %v2885 = vsel %vm1338, %v2804, 0
  %v2888 = vsel %vm1338, %v2805, 0
  %v2891 = vsel %vm1338, %v2806, 0
  %v2894 = vsel %vm1338, %v2807, 0
  %v2897 = vsel %vm1338, %v2808, 0
  %v2900 = vsel %vm1338, %v2809, 0
  %v2903 = vsel %vm1338, %v2810, 0
  %v2906 = vsel %vm1338, %v2811, 0
  %v2909 = vsel %vm1338, %v2812, 0
  %v2912 = vsel %vm1338, %v2813, 0
  %v2915 = vsel %vm1338, %v2814, 0
  %v2918 = vsel %vm1338, %v2815, 0
  %v2921 = vsel %vm1338, %v2816, 0
  %v2924 = vsel %vm1338, %v2817, 0
  %v2927 = vsel %vm1338, %v2818, 0
  %v2930 = vsel %vm1338, %v2819, 0
  %2932 = vmatpush.bf16.msra.mxu0 0
  %2933 = vmatpush.bf16.msra.mxu0 0
  %2934 = vmatpush.bf16.msra.mxu0 0
  %2935 = vmatpush.bf16.msra.mxu0 0
  %2936 = vmatpush.bf16.msra.mxu0 0
  %2937 = vmatpush.bf16.msra.mxu0 0
  %2938 = vmatpush.bf16.msra.mxu0 %v2833
  %2939 = vmatpush.bf16.msra.mxu0 %v2832
  %2940 = vmatmul.bf16.gmra.mxu0 %v2837
  %v2941 = vpop.f32.mrf.mxu0
  %v2942 = vadd.f32 0.0, %v2941
  %v2943 = vpop.f32.mrf.mxu0
  %v2944 = vadd.f32 0.0, %v2943
  %2945 = vmatmul.bf16.gmra.mxu0 %v2840
  %v2946 = vpop.f32.mrf.mxu0
  %v2947 = vadd.f32 0.0, %v2946
  %v2948 = vpop.f32.mrf.mxu0
  %v2949 = vadd.f32 0.0, %v2948
  %2950 = vmatmul.bf16.gmra.mxu0 %v2843
  %v2951 = vpop.f32.mrf.mxu0
  %v2952 = vadd.f32 0.0, %v2951
  %v2953 = vpop.f32.mrf.mxu0
  %v2954 = vadd.f32 0.0, %v2953
  %2955 = vmatmul.bf16.gmra.mxu0 %v2846
  %v2956 = vpop.f32.mrf.mxu0
  %v2957 = vadd.f32 0.0, %v2956
  %v2958 = vpop.f32.mrf.mxu0
  %v2959 = vadd.f32 0.0, %v2958
  %2960 = vmatmul.bf16.gmra.mxu0 %v2849
  %v2961 = vpop.f32.mrf.mxu0
  %v2962 = vadd.f32 0.0, %v2961
  %v2963 = vpop.f32.mrf.mxu0
  %v2964 = vadd.f32 0.0, %v2963
  %2965 = vmatmul.bf16.gmra.mxu0 %v2852
  %v2966 = vpop.f32.mrf.mxu0
  %v2967 = vadd.f32 0.0, %v2966
  %v2968 = vpop.f32.mrf.mxu0
  %v2969 = vadd.f32 0.0, %v2968
  %2970 = vmatmul.bf16.gmra.mxu0 %v2855
  %v2971 = vpop.f32.mrf.mxu0
  %v2972 = vadd.f32 0.0, %v2971
  %v2973 = vpop.f32.mrf.mxu0
  %v2974 = vadd.f32 0.0, %v2973
  %2975 = vmatmul.bf16.gmra.mxu0 %v2858
  %v2976 = vpop.f32.mrf.mxu0
  %v2977 = vadd.f32 0.0, %v2976
  %v2978 = vpop.f32.mrf.mxu0
  %v2979 = vadd.f32 0.0, %v2978
  %2980 = vmatmul.bf16.gmra.mxu0 %v2861
  %v2981 = vpop.f32.mrf.mxu0
  %v2982 = vadd.f32 0.0, %v2981
  %v2983 = vpop.f32.mrf.mxu0
  %v2984 = vadd.f32 0.0, %v2983
  %2985 = vmatmul.bf16.gmra.mxu0 %v2864
  %v2986 = vpop.f32.mrf.mxu0
  %v2987 = vadd.f32 0.0, %v2986
  %v2988 = vpop.f32.mrf.mxu0
  %v2989 = vadd.f32 0.0, %v2988
  %2990 = vmatmul.bf16.gmra.mxu0 %v2867
  %v2991 = vpop.f32.mrf.mxu0
  %v2992 = vadd.f32 0.0, %v2991
  %v2993 = vpop.f32.mrf.mxu0
  %v2994 = vadd.f32 0.0, %v2993
  %2995 = vmatmul.bf16.gmra.mxu0 %v2870
  %v2996 = vpop.f32.mrf.mxu0
  %v2997 = vadd.f32 0.0, %v2996
  %v2998 = vpop.f32.mrf.mxu0
  %v2999 = vadd.f32 0.0, %v2998
  %3000 = vmatmul.bf16.gmra.mxu0 %v2873
  %v3001 = vpop.f32.mrf.mxu0
  %v3002 = vadd.f32 0.0, %v3001
  %v3003 = vpop.f32.mrf.mxu0
  %v3004 = vadd.f32 0.0, %v3003
  %3005 = vmatmul.bf16.gmra.mxu0 %v2876
  %v3006 = vpop.f32.mrf.mxu0
  %v3007 = vadd.f32 0.0, %v3006
  %v3008 = vpop.f32.mrf.mxu0
  %v3009 = vadd.f32 0.0, %v3008
  %3010 = vmatmul.bf16.gmra.mxu0 %v2879
  %v3011 = vpop.f32.mrf.mxu0
  %v3012 = vadd.f32 0.0, %v3011
  %v3013 = vpop.f32.mrf.mxu0
  %v3014 = vadd.f32 0.0, %v3013
  %3015 = vmatmul.bf16.gmra.mxu0 %v2882
  %v3016 = vpop.f32.mrf.mxu0
  %v3017 = vadd.f32 0.0, %v3016
  %v3018 = vpop.f32.mrf.mxu0
  %v3019 = vadd.f32 0.0, %v3018
  %3020 = vmatmul.bf16.gmra.mxu0 %v2885
  %v3021 = vpop.f32.mrf.mxu0
  %v3022 = vadd.f32 0.0, %v3021
  %v3023 = vpop.f32.mrf.mxu0
  %v3024 = vadd.f32 0.0, %v3023
  %3025 = vmatmul.bf16.gmra.mxu0 %v2888
  %v3026 = vpop.f32.mrf.mxu0
  %v3027 = vadd.f32 0.0, %v3026
  %v3028 = vpop.f32.mrf.mxu0
  %v3029 = vadd.f32 0.0, %v3028
  %3030 = vmatmul.bf16.gmra.mxu0 %v2891
  %v3031 = vpop.f32.mrf.mxu0
  %v3032 = vadd.f32 0.0, %v3031
  %v3033 = vpop.f32.mrf.mxu0
  %v3034 = vadd.f32 0.0, %v3033
  %3035 = vmatmul.bf16.gmra.mxu0 %v2894
  %v3036 = vpop.f32.mrf.mxu0
  %v3037 = vadd.f32 0.0, %v3036
  %v3038 = vpop.f32.mrf.mxu0
  %v3039 = vadd.f32 0.0, %v3038
  %3040 = vmatmul.bf16.gmra.mxu0 %v2897
  %v3041 = vpop.f32.mrf.mxu0
  %v3042 = vadd.f32 0.0, %v3041
  %v3043 = vpop.f32.mrf.mxu0
  %v3044 = vadd.f32 0.0, %v3043
  %3045 = vmatmul.bf16.gmra.mxu0 %v2900
  %v3046 = vpop.f32.mrf.mxu0
  %v3047 = vadd.f32 0.0, %v3046
  %v3048 = vpop.f32.mrf.mxu0
  %v3049 = vadd.f32 0.0, %v3048
  %3050 = vmatmul.bf16.gmra.mxu0 %v2903
  %v3051 = vpop.f32.mrf.mxu0
  %v3052 = vadd.f32 0.0, %v3051
  %v3053 = vpop.f32.mrf.mxu0
  %v3054 = vadd.f32 0.0, %v3053
  %3055 = vmatmul.bf16.gmra.mxu0 %v2906
  %v3056 = vpop.f32.mrf.mxu0
  %v3057 = vadd.f32 0.0, %v3056
  %v3058 = vpop.f32.mrf.mxu0
  %v3059 = vadd.f32 0.0, %v3058
  %3060 = vmatmul.bf16.gmra.mxu0 %v2909
  %v3061 = vpop.f32.mrf.mxu0
  %v3062 = vadd.f32 0.0, %v3061
  %v3063 = vpop.f32.mrf.mxu0
  %v3064 = vadd.f32 0.0, %v3063
  %3065 = vmatmul.bf16.gmra.mxu0 %v2912
  %v3066 = vpop.f32.mrf.mxu0
  %v3067 = vadd.f32 0.0, %v3066
  %v3068 = vpop.f32.mrf.mxu0
  %v3069 = vadd.f32 0.0, %v3068
  %3070 = vmatmul.bf16.gmra.mxu0 %v2915
  %v3071 = vpop.f32.mrf.mxu0
  %v3072 = vadd.f32 0.0, %v3071
  %v3073 = vpop.f32.mrf.mxu0
  %v3074 = vadd.f32 0.0, %v3073
  %3075 = vmatmul.bf16.gmra.mxu0 %v2918
  %v3076 = vpop.f32.mrf.mxu0
  %v3077 = vadd.f32 0.0, %v3076
  %v3078 = vpop.f32.mrf.mxu0
  %v3079 = vadd.f32 0.0, %v3078
  %3080 = vmatmul.bf16.gmra.mxu0 %v2921
  %v3081 = vpop.f32.mrf.mxu0
  %v3082 = vadd.f32 0.0, %v3081
  %v3083 = vpop.f32.mrf.mxu0
  %v3084 = vadd.f32 0.0, %v3083
  %3085 = vmatmul.bf16.gmra.mxu0 %v2924
  %v3086 = vpop.f32.mrf.mxu0
  %v3087 = vadd.f32 0.0, %v3086
  %v3088 = vpop.f32.mrf.mxu0
  %v3089 = vadd.f32 0.0, %v3088
  %3090 = vmatmul.bf16.gmra.mxu0 %v2927
  %v3091 = vpop.f32.mrf.mxu0
  %v3092 = vadd.f32 0.0, %v3091
  %v3093 = vpop.f32.mrf.mxu0
  %v3094 = vadd.f32 0.0, %v3093
  %3095 = vmatmul.bf16.gmra.mxu0 %v2930
  %v3096 = vpop.f32.mrf.mxu0
  %v3097 = vadd.f32 0.0, %v3096
  %v3098 = vpop.f32.mrf.mxu0
  %v3099 = vadd.f32 0.0, %v3098
  %3100 = vdwg.mxu0
  %3101 = vst.msk [vmem:[%s6] sm:$0xff] %vm1338, %v2942
  %3102 = vst.msk [vmem:[%s6 + $0x8] sm:$0xff] %vm1338, %v2944
  %3103 = vst.msk [vmem:[%s6 + $0x10] sm:$0xff] %vm1338, %v2947
  %3104 = vst.msk [vmem:[%s6 + $0x18] sm:$0xff] %vm1338, %v2949
  %3105 = vst.msk [vmem:[%s6 + $0x20] sm:$0xff] %vm1338, %v2952
  %3106 = vst.msk [vmem:[%s6 + $0x28] sm:$0xff] %vm1338, %v2954
  %3107 = vst.msk [vmem:[%s6 + $0x30] sm:$0xff] %vm1338, %v2957
  %3108 = vst.msk [vmem:[%s6 + $0x38] sm:$0xff] %vm1338, %v2959
  %3109 = vst.msk [vmem:[%s6 + $0x40] sm:$0xff] %vm1338, %v2962
  %3110 = vst.msk [vmem:[%s6 + $0x48] sm:$0xff] %vm1338, %v2964
  %3111 = vst.msk [vmem:[%s6 + $0x50] sm:$0xff] %vm1338, %v2967
  %3112 = vst.msk [vmem:[%s6 + $0x58] sm:$0xff] %vm1338, %v2969
  %3113 = vst.msk [vmem:[%s6 + $0x60] sm:$0xff] %vm1338, %v2972
  %3114 = vst.msk [vmem:[%s6 + $0x68] sm:$0xff] %vm1338, %v2974
  %3115 = vst.msk [vmem:[%s6 + $0x70] sm:$0xff] %vm1338, %v2977
  %3116 = vst.msk [vmem:[%s6 + $0x78] sm:$0xff] %vm1338, %v2979
  %3117 = vst.msk [vmem:[%s6 + $0x80] sm:$0xff] %vm1338, %v2982
  %3118 = vst.msk [vmem:[%s6 + $0x88] sm:$0xff] %vm1338, %v2984
  %3119 = vst.msk [vmem:[%s6 + $0x90] sm:$0xff] %vm1338, %v2987
  %3120 = vst.msk [vmem:[%s6 + $0x98] sm:$0xff] %vm1338, %v2989
  %3121 = vst.msk [vmem:[%s6 + $0xa0] sm:$0xff] %vm1338, %v2992
  %3122 = vst.msk [vmem:[%s6 + $0xa8] sm:$0xff] %vm1338, %v2994
  %3123 = vst.msk [vmem:[%s6 + $0xb0] sm:$0xff] %vm1338, %v2997
  %3124 = vst.msk [vmem:[%s6 + $0xb8] sm:$0xff] %vm1338, %v2999
  %3125 = vst.msk [vmem:[%s6 + $0xc0] sm:$0xff] %vm1338, %v3002
  %3126 = vst.msk [vmem:[%s6 + $0xc8] sm:$0xff] %vm1338, %v3004
  %3127 = vst.msk [vmem:[%s6 + $0xd0] sm:$0xff] %vm1338, %v3007
  %3128 = vst.msk [vmem:[%s6 + $0xd8] sm:$0xff] %vm1338, %v3009
  %3129 = vst.msk [vmem:[%s6 + $0xe0] sm:$0xff] %vm1338, %v3012
  %3130 = vst.msk [vmem:[%s6 + $0xe8] sm:$0xff] %vm1338, %v3014
  %3131 = vst.msk [vmem:[%s6 + $0xf0] sm:$0xff] %vm1338, %v3017
  %3132 = vst.msk [vmem:[%s6 + $0xf8] sm:$0xff] %vm1338, %v3019
  %3133 = vst.msk [vmem:[%s6 + $0x100] sm:$0xff] %vm1338, %v3022
  %3134 = vst.msk [vmem:[%s6 + $0x108] sm:$0xff] %vm1338, %v3024
  %3135 = vst.msk [vmem:[%s6 + $0x110] sm:$0xff] %vm1338, %v3027
  %3136 = vst.msk [vmem:[%s6 + $0x118] sm:$0xff] %vm1338, %v3029
  %3137 = vst.msk [vmem:[%s6 + $0x120] sm:$0xff] %vm1338, %v3032
  %3138 = vst.msk [vmem:[%s6 + $0x128] sm:$0xff] %vm1338, %v3034
  %3139 = vst.msk [vmem:[%s6 + $0x130] sm:$0xff] %vm1338, %v3037
  %3140 = vst.msk [vmem:[%s6 + $0x138] sm:$0xff] %vm1338, %v3039
  %3141 = vst.msk [vmem:[%s6 + $0x140] sm:$0xff] %vm1338, %v3042
  %3142 = vst.msk [vmem:[%s6 + $0x148] sm:$0xff] %vm1338, %v3044
  %3143 = vst.msk [vmem:[%s6 + $0x150] sm:$0xff] %vm1338, %v3047
  %3144 = vst.msk [vmem:[%s6 + $0x158] sm:$0xff] %vm1338, %v3049
  %3145 = vst.msk [vmem:[%s6 + $0x160] sm:$0xff] %vm1338, %v3052
  %3146 = vst.msk [vmem:[%s6 + $0x168] sm:$0xff] %vm1338, %v3054
  %3147 = vst.msk [vmem:[%s6 + $0x170] sm:$0xff] %vm1338, %v3057
  %3148 = vst.msk [vmem:[%s6 + $0x178] sm:$0xff] %vm1338, %v3059
  %3149 = vst.msk [vmem:[%s6 + $0x180] sm:$0xff] %vm1338, %v3062
  %3150 = vst.msk [vmem:[%s6 + $0x188] sm:$0xff] %vm1338, %v3064
  %3151 = vst.msk [vmem:[%s6 + $0x190] sm:$0xff] %vm1338, %v3067
  %3152 = vst.msk [vmem:[%s6 + $0x198] sm:$0xff] %vm1338, %v3069
  %3153 = vst.msk [vmem:[%s6 + $0x1a0] sm:$0xff] %vm1338, %v3072
  %3154 = vst.msk [vmem:[%s6 + $0x1a8] sm:$0xff] %vm1338, %v3074
  %3155 = vst.msk [vmem:[%s6 + $0x1b0] sm:$0xff] %vm1338, %v3077
  %3156 = vst.msk [vmem:[%s6 + $0x1b8] sm:$0xff] %vm1338, %v3079
  %3157 = vst.msk [vmem:[%s6 + $0x1c0] sm:$0xff] %vm1338, %v3082
  %3158 = vst.msk [vmem:[%s6 + $0x1c8] sm:$0xff] %vm1338, %v3084
  %3159 = vst.msk [vmem:[%s6 + $0x1d0] sm:$0xff] %vm1338, %v3087
  %3160 = vst.msk [vmem:[%s6 + $0x1d8] sm:$0xff] %vm1338, %v3089
  %3161 = vst.msk [vmem:[%s6 + $0x1e0] sm:$0xff] %vm1338, %v3092
  %3162 = vst.msk [vmem:[%s6 + $0x1e8] sm:$0xff] %vm1338, %v3094
  %3163 = vst.msk [vmem:[%s6 + $0x1f0] sm:$0xff] %vm1338, %v3097
  %3164 = vst.msk [vmem:[%s6 + $0x1f8] sm:$0xff] %vm1338, %v3099
  // Predicated region
  $region33: #{tpu_custom_call.1} parent=0 // pred_check
    _
  $region34: #{tpu_custom_call.1} parent=0 // pred_check_branch
    %3166 = sbr.rel (0) target = $region36
  $region35: #{tpu_custom_call.1} parent=0 // pred_region
    _
  $region36: #{tpu_custom_call.1} parent=0 // pred_fallthru
    _
  // Predicated region
  $region37: #{tpu_custom_call.1} parent=0 // pred_check
    _
  $region38: #{tpu_custom_call.1} parent=0 // pred_check_branch
    %3168 = sbr.rel (0) target = $region40
  $region39: #{tpu_custom_call.1} parent=0 // pred_region
    _
  $region40: #{tpu_custom_call.1} parent=0 // pred_fallthru
    _

</llo_original>
